<compile_context>
chip_gen: v7x
topology: tpu7x:2x2x1
jax: 0.10.0
libtpu: 0.0.40
codegen_flags: <defaults>
</compile_context>

<pallas_src>
import functools

import jax
import jax.numpy as jnp
import numpy as np
from jax.experimental import pallas as pl
from jax.experimental.pallas import tpu as pltpu


def _elu(v):
    # F.elu with alpha=1.0 (clamp exp arg so the unselected branch can't overflow).
    return jnp.where(v > 0, v, jnp.exp(jnp.minimum(v, 0.0)) - 1.0)


# --------------------------------------------------------------------------
# Fused Pallas kernel: one grid step = one batch element, all residual blocks.
# Per block (channels on sublanes, L on lanes):
#   x -> elu -> conv1x1 (C->C/2) -> elu -> conv3 dilated (C/2->C/2)
#     -> elu -> conv1x1 (C/2->C) -> SE gate -> + residual
# --------------------------------------------------------------------------
def _make_fused_kernel(B, C, L, dilations):
    Ch = C // 2
    NB = len(dilations)
    Dmax = max(dilations)
    CDT = jnp.bfloat16            # MXU-native operand dtype; f32 accumulation.

    def kernel(x_ref, w1_ref, b1_ref, w2_ref, b2_ref, w3_ref, b3_ref,
               l1wt_ref, l1b_ref, l2w_ref, l2b_ref, out_ref, pad_ref):
        # Zero ONLY the two halo regions of the L-padded scratch, once per
        # grid step (h is always written at the fixed offset Dmax below, so
        # the halos stay zero for every block / dilation).
        pad_ref[:, :Dmax] = jnp.zeros((Ch, Dmax), pad_ref.dtype)
        pad_ref[:, Dmax + L:] = jnp.zeros((Ch, Dmax), pad_ref.dtype)

        x = x_ref[0].astype(jnp.float32)                          # (C, L)
        for blk in range(NB):                                     # static unroll
            d = dilations[blk]
            residual = x

            # ---- conv1d_1: kernel_size=1, C -> C/2 : (Ch,C)@(C,L) on MXU ----
            h = jnp.dot(w1_ref[blk], _elu(x).astype(CDT),
                        preferred_element_type=jnp.float32) + b1_ref[blk]

            # ---- conv1d_2: kernel_size=3, dilation=d, padding=d ----
            # Store elu(h) ALREADY cast to bf16 into the padded scratch at the
            # fixed offset Dmax, then accumulate three MXU matmuls, one per
            # tap (lane-offset slices at Dmax-d, Dmax, Dmax+d).  No concat,
            # no f32 temp.
            pad_ref[:, Dmax:Dmax + L] = _elu(h).astype(CDT)
            taps = []
            for k in range(3):
                s = Dmax + (k - 1) * d
                taps.append(jnp.dot(w2_ref[blk, k], pad_ref[:, s:s + L],
                                    preferred_element_type=jnp.float32))
            h = taps[0] + taps[1] + taps[2] + b2_ref[blk]

            # ---- conv1d_3: kernel_size=1, C/2 -> C ----
            y3 = jnp.dot(w3_ref[blk], _elu(h).astype(CDT),
                         preferred_element_type=jnp.float32) + b3_ref[blk]

            # ---- SE block: squeeze over L, linear+ReLU twice (matches the
            # PyTorch SEBlock), sigmoid gate.  Kept on the VPU in f32
            # (broadcast-multiply + lane/sublane reductions), gate oriented
            # (C,1) so no transposes are needed. ----
            m = jnp.mean(y3, axis=-1, keepdims=True)                      # (C,1)
            s1 = jnp.maximum(
                jnp.sum(l1wt_ref[blk] * m, axis=0, keepdims=True)
                + l1b_ref[blk], 0.0)                                      # (1,Cse)
            s2 = jnp.maximum(
                jnp.sum(l2w_ref[blk] * s1, axis=-1, keepdims=True)
                + l2b_ref[blk], 0.0)                                      # (C,1)
            gate = jax.nn.sigmoid(s2)

            x = y3 * gate + residual
        out_ref[0] = x.astype(out_ref.dtype)

    return kernel, (Ch, L + 2 * Dmax)


@functools.partial(jax.jit, static_argnames=("dilations",))
def resnet1d_forward(x_ncl, packed, dilations):
    """Forward pass.  x_ncl: (B, C, L), the PyTorch Conv1d layout (no transposes)."""
    B, C, L = x_ncl.shape
    Ch, Cse = C // 2, C // 16
    NB = len(dilations)
    kernel, pad_shape = _make_fused_kernel(B, C, L, dilations)

    vmem = pl.BlockSpec(memory_space=pltpu.MemorySpace.VMEM)
    weight_args = (packed['W1'], packed['B1'], packed['W2'], packed['B2'],
                   packed['W3'], packed['B3'], packed['L1WT'], packed['L1B'],
                   packed['L2W'], packed['L2B'])

    # Advisory cost estimate so XLA schedules around the call (v6e feedback).
    flops = B * NB * (2 * L * (Ch * C + 3 * Ch * Ch + C * Ch) + 4 * C * Cse)
    transcendentals = B * NB * (L * (C + 2 * Ch) + C)
    bytes_accessed = (2 * B * C * L * x_ncl.dtype.itemsize
                      + sum(int(w.size) * w.dtype.itemsize for w in weight_args))

    return pl.pallas_call(
        kernel,
        out_shape=jax.ShapeDtypeStruct((B, C, L), x_ncl.dtype),
        grid=(B,),
        in_specs=[pl.BlockSpec((1, C, L), lambda b: (b, 0, 0))]
                 + [vmem] * len(weight_args),
        out_specs=pl.BlockSpec((1, C, L), lambda b: (b, 0, 0)),
        scratch_shapes=[pltpu.VMEM(pad_shape, jnp.bfloat16)],
        compiler_params=pltpu.CompilerParams(dimension_semantics=("parallel",)),
        cost_estimate=pl.CostEstimate(flops=flops,
                                      transcendentals=transcendentals,
                                      bytes_accessed=bytes_accessed),
    )(x_ncl, *weight_args)


# --------------------------------------------------------------------------
# Parameters: PyTorch-shaped init + one-time packing for the kernel.
# --------------------------------------------------------------------------
def init_params(key, C, num_chunks, dilation_cycle):
    """PyTorch-shaped parameters, deterministic init."""
    Ch, Cse = C // 2, C // 16
    blocks = []
    for _ in range(num_chunks):
        for d in dilation_cycle:
            keys = jax.random.split(key, 11)
            key = keys[0]

            def rnd(k, shape):
                return jax.random.normal(k, shape, jnp.float32) * 0.1

            blocks.append(dict(
                dilation=d,
                w1=rnd(keys[1], (Ch, C, 1)),  b1=rnd(keys[2], (Ch,)),
                w2=rnd(keys[3], (Ch, Ch, 3)), b2=rnd(keys[4], (Ch,)),
                w3=rnd(keys[5], (C, Ch, 1)),  b3=rnd(keys[6], (C,)),
                l1w=rnd(keys[7], (Cse, C)),   l1b=rnd(keys[8], (Cse,)),
                l2w=rnd(keys[9], (C, Cse)),   l2b=rnd(keys[10], (C,)),
            ))
    return blocks


def pack_params(blocks):
    """One-time weight re-layout for the fused NCL-native kernel."""
    CDT = jnp.bfloat16

    def stack(fn, dtype=jnp.float32):
        return jnp.stack([fn(b) for b in blocks]).astype(dtype)

    packed = dict(
        # conv weights in (Cout, Cin) orientation (W @ x with x = (Cin, L)).
        W1=stack(lambda b: b['w1'][:, :, 0], CDT),                   # (NB, Ch, C)
        B1=stack(lambda b: b['b1'][:, None]),                        # (NB, Ch, 1)
        # k=3 conv pre-split per tap: (Cout, Cin, 3) -> (3, Cout, Cin).
        W2=stack(lambda b: jnp.transpose(b['w2'], (2, 0, 1)), CDT),  # (NB, 3, Ch, Ch)
        B2=stack(lambda b: b['b2'][:, None]),                        # (NB, Ch, 1)
        W3=stack(lambda b: b['w3'][:, :, 0], CDT),                   # (NB, C, Ch)
        B3=stack(lambda b: b['b3'][:, None]),                        # (NB, C, 1)
        # SE linears stay f32 (VPU path, not MXU), laid out transpose-free.
        L1WT=stack(lambda b: b['l1w'].T),                            # (NB, C, Cse)
        L1B=stack(lambda b: b['l1b'][None, :]),                      # (NB, 1, Cse)
        L2W=stack(lambda b: b['l2w']),                               # (NB, C, Cse)
        L2B=stack(lambda b: b['l2b'][:, None]),                      # (NB, C, 1)
    )
    dilations = tuple(int(b['dilation']) for b in blocks)
    return packed, dilations


# --------------------------------------------------------------------------
# Pure-JAX f32 reference (mirrors PyTorch semantics via conv_general_dilated).
# --------------------------------------------------------------------------
def ref_forward(x_ncl, blocks):
    def conv(h, w, b, dil, pad):
        y = jax.lax.conv_general_dilated(
            h, w, window_strides=(1,), padding=[(pad, pad)],
            rhs_dilation=(dil,), dimension_numbers=('NCH', 'OIH', 'NCH'))
        return y + b[None, :, None]

    x = x_ncl.astype(jnp.float32)
    for blk in blocks:
        d = int(blk['dilation'])
        res = x
        h = _elu(x)
        h = conv(h, blk['w1'], blk['b1'], 1, 0)
        h = _elu(h)
        h = conv(h, blk['w2'], blk['b2'], d, d)
        h = _elu(h)
        y3 = conv(h, blk['w3'], blk['b3'], 1, 0)
        m = jnp.mean(y3, axis=-1)                               # (B, C)
        s1 = jax.nn.relu(m @ blk['l1w'].T + blk['l1b'])
        # NB: the PyTorch SEBlock applies ReLU after linear2 too, before sigmoid.
        s2 = jax.nn.relu(s1 @ blk['l2w'].T + blk['l2b'])
        g = jax.nn.sigmoid(s2)
        x = y3 * g[:, :, None] + res
    return x


if __name__ == "__main__":
    B, C, L = 2, 32, 16          # num_channels=32 (SE ratio 16 -> hidden = 2)
    num_chunks = 1
    dilation_cycle = [1, 2, 4, 8]

    key = jax.random.PRNGKey(0)
    kx, kp = jax.random.split(key)
    x = jax.random.normal(kx, (B, C, L), jnp.float32)
    blocks = init_params(kp, C, num_chunks, dilation_cycle)
    packed, dilations = pack_params(blocks)

    out = resnet1d_forward(x, packed, dilations)
    out = jax.block_until_ready(out)

    ref = jax.block_until_ready(ref_forward(x, blocks))
    # bf16 MXU operands with f32 accumulation -> slightly loose tolerance.
    np.testing.assert_allclose(np.asarray(out), np.asarray(ref),
                               atol=2e-2, rtol=2e-2)
    print("KERNEL_OK")
</pallas_src>

<mosaic_0001>
module attributes {stable_mosaic.version = 11 : i64} {
  func.func @kernel(%arg0: i32, %arg1: memref<1x32x16xf32, #tpu.memory_space<vmem>>, %arg2: memref<4x16x32xbf16, #tpu.memory_space<vmem>>, %arg3: memref<4x16x1xf32, #tpu.memory_space<vmem>>, %arg4: memref<4x3x16x16xbf16, #tpu.memory_space<vmem>>, %arg5: memref<4x16x1xf32, #tpu.memory_space<vmem>>, %arg6: memref<4x32x16xbf16, #tpu.memory_space<vmem>>, %arg7: memref<4x32x1xf32, #tpu.memory_space<vmem>>, %arg8: memref<4x32x2xf32, #tpu.memory_space<vmem>>, %arg9: memref<4x1x2xf32, #tpu.memory_space<vmem>>, %arg10: memref<4x32x2xf32, #tpu.memory_space<vmem>>, %arg11: memref<4x32x1xf32, #tpu.memory_space<vmem>>, %arg12: memref<1x32x16xf32, #tpu.memory_space<vmem>>, %arg13: memref<16x32xbf16, #tpu.memory_space<vmem>>) attributes {dimension_semantics = [#tpu.dimension_semantics<parallel>], iteration_bounds = array<i64: 2>, scalar_prefetch = 0 : i64, scratch_operands = 1 : i64, tpu.core_type = #tpu.core_type<tc>, window_params = [{transform_indices = @transform_0, window_bounds = array<i64: 1, 32, 16>}, {pipeline_mode = #tpu.pipeline_mode<synchronous>, transform_indices = @transform_1, window_bounds = array<i64: 4, 16, 32>}, {pipeline_mode = #tpu.pipeline_mode<synchronous>, transform_indices = @transform_2, window_bounds = array<i64: 4, 16, 1>}, {pipeline_mode = #tpu.pipeline_mode<synchronous>, transform_indices = @transform_3, window_bounds = array<i64: 4, 3, 16, 16>}, {pipeline_mode = #tpu.pipeline_mode<synchronous>, transform_indices = @transform_4, window_bounds = array<i64: 4, 16, 1>}, {pipeline_mode = #tpu.pipeline_mode<synchronous>, transform_indices = @transform_5, window_bounds = array<i64: 4, 32, 16>}, {pipeline_mode = #tpu.pipeline_mode<synchronous>, transform_indices = @transform_6, window_bounds = array<i64: 4, 32, 1>}, {pipeline_mode = #tpu.pipeline_mode<synchronous>, transform_indices = @transform_7, window_bounds = array<i64: 4, 32, 2>}, {pipeline_mode = #tpu.pipeline_mode<synchronous>, transform_indices = @transform_8, window_bounds = array<i64: 4, 1, 2>}, {pipeline_mode = #tpu.pipeline_mode<synchronous>, transform_indices = @transform_9, window_bounds = array<i64: 4, 32, 2>}, {pipeline_mode = #tpu.pipeline_mode<synchronous>, transform_indices = @transform_10, window_bounds = array<i64: 4, 32, 1>}, {transform_indices = @transform_11, window_bounds = array<i64: 1, 32, 16>}]} {
    %cst = arith.constant 0.000000e+00 : bf16
    %0 = vector.broadcast %cst : bf16 to vector<16x8xbf16>
    %c0 = arith.constant 0 : index
    %c0_0 = arith.constant 0 : index
    %1 = vector.load %arg13[%c0, %c0_0] : memref<16x32xbf16, #tpu.memory_space<vmem>>, vector<16x8xbf16>
    tpu.vector_store %arg13[%c0, %c0_0], %0 {strides = array<i32>} : memref<16x32xbf16, #tpu.memory_space<vmem>>, vector<16x8xbf16>,
    %cst_1 = arith.constant 0.000000e+00 : bf16
    %2 = vector.broadcast %cst_1 : bf16 to vector<16x8xbf16>
    %c0_2 = arith.constant 0 : index
    %c24 = arith.constant 24 : index
    %3 = vector.load %arg13[%c0_2, %c24] : memref<16x32xbf16, #tpu.memory_space<vmem>>, vector<16x8xbf16>
    tpu.vector_store %arg13[%c0_2, %c24], %2 {strides = array<i32>} : memref<16x32xbf16, #tpu.memory_space<vmem>>, vector<16x8xbf16>,
    %c0_3 = arith.constant 0 : index
    %c0_4 = arith.constant 0 : index
    %c0_5 = arith.constant 0 : index
    %4 = vector.load %arg1[%c0_3, %c0_4, %c0_5] : memref<1x32x16xf32, #tpu.memory_space<vmem>>, vector<1x32x16xf32>
    %5 = vector.shape_cast %4 : vector<1x32x16xf32> to vector<32x16xf32>
    %c0_6 = arith.constant 0 : index
    %c0_7 = arith.constant 0 : index
    %c0_8 = arith.constant 0 : index
    %6 = vector.load %arg2[%c0_6, %c0_7, %c0_8] : memref<4x16x32xbf16, #tpu.memory_space<vmem>>, vector<1x16x32xbf16>
    %7 = vector.shape_cast %6 : vector<1x16x32xbf16> to vector<16x32xbf16>
    %cst_9 = arith.constant 0.000000e+00 : f32
    %8 = vector.broadcast %cst_9 : f32 to vector<32x16xf32>
    %9 = arith.cmpf ogt, %5, %8 : vector<32x16xf32>
    %cst_10 = arith.constant 0.000000e+00 : f32
    %10 = vector.broadcast %cst_10 : f32 to vector<32x16xf32>
    %11 = arith.minimumf %5, %10 : vector<32x16xf32>
    %12 = math.exp %11 : vector<32x16xf32>
    %cst_11 = arith.constant 1.000000e+00 : f32
    %13 = vector.broadcast %cst_11 : f32 to vector<32x16xf32>
    %14 = arith.subf %12, %13 : vector<32x16xf32>
    %15 = arith.select %9, %5, %14 : vector<32x16xi1>, vector<32x16xf32>
    %16 = arith.truncf %15 : vector<32x16xf32> to vector<32x16xbf16>
    %cst_12 = arith.constant dense<0.000000e+00> : vector<16x16xf32>
    %17 = tpu.matmul %7, %16, %cst_12 {dimension_numbers = #tpu.dot_dimension_numbers<[1], [0], [0], [1], [0, 0, 1, 1], [], []>} : vector<16x32xbf16>, vector<32x16xbf16>, vector<16x16xf32> -> vector<16x16xf32>
    %c0_13 = arith.constant 0 : index
    %c0_14 = arith.constant 0 : index
    %c0_15 = arith.constant 0 : index
    %18 = vector.load %arg3[%c0_13, %c0_14, %c0_15] : memref<4x16x1xf32, #tpu.memory_space<vmem>>, vector<1x16x1xf32>
    %19 = vector.shape_cast %18 : vector<1x16x1xf32> to vector<16x1xf32>
    %20 = vector.broadcast %19 : vector<16x1xf32> to vector<16x16xf32>
    %21 = arith.addf %17, %20 : vector<16x16xf32>
    %cst_16 = arith.constant 0.000000e+00 : f32
    %22 = vector.broadcast %cst_16 : f32 to vector<16x16xf32>
    %23 = arith.cmpf ogt, %21, %22 : vector<16x16xf32>
    %cst_17 = arith.constant 0.000000e+00 : f32
    %24 = vector.broadcast %cst_17 : f32 to vector<16x16xf32>
    %25 = arith.minimumf %21, %24 : vector<16x16xf32>
    %26 = math.exp %25 : vector<16x16xf32>
    %cst_18 = arith.constant 1.000000e+00 : f32
    %27 = vector.broadcast %cst_18 : f32 to vector<16x16xf32>
    %28 = arith.subf %26, %27 : vector<16x16xf32>
    %29 = arith.select %23, %21, %28 : vector<16x16xi1>, vector<16x16xf32>
    %30 = arith.truncf %29 : vector<16x16xf32> to vector<16x16xbf16>
    %c0_19 = arith.constant 0 : index
    %c8 = arith.constant 8 : index
    %31 = vector.load %arg13[%c0_19, %c8] : memref<16x32xbf16, #tpu.memory_space<vmem>>, vector<16x16xbf16>
    tpu.vector_store %arg13[%c0_19, %c8], %30 {strides = array<i32>} : memref<16x32xbf16, #tpu.memory_space<vmem>>, vector<16x16xbf16>,
    %c0_20 = arith.constant 0 : index
    %c0_21 = arith.constant 0 : index
    %c0_22 = arith.constant 0 : index
    %c0_23 = arith.constant 0 : index
    %32 = vector.load %arg4[%c0_20, %c0_21, %c0_22, %c0_23] : memref<4x3x16x16xbf16, #tpu.memory_space<vmem>>, vector<1x1x16x16xbf16>
    %33 = vector.shape_cast %32 : vector<1x1x16x16xbf16> to vector<16x16xbf16>
    %c0_24 = arith.constant 0 : index
    %c7 = arith.constant 7 : index
    %34 = vector.load %arg13[%c0_24, %c7] : memref<16x32xbf16, #tpu.memory_space<vmem>>, vector<16x16xbf16>
    %cst_25 = arith.constant dense<0.000000e+00> : vector<16x16xf32>
    %35 = tpu.matmul %33, %34, %cst_25 {dimension_numbers = #tpu.dot_dimension_numbers<[1], [0], [0], [1], [0, 0, 1, 1], [], []>} : vector<16x16xbf16>, vector<16x16xbf16>, vector<16x16xf32> -> vector<16x16xf32>
    %c0_26 = arith.constant 0 : index
    %c1 = arith.constant 1 : index
    %c0_27 = arith.constant 0 : index
    %c0_28 = arith.constant 0 : index
    %36 = vector.load %arg4[%c0_26, %c1, %c0_27, %c0_28] : memref<4x3x16x16xbf16, #tpu.memory_space<vmem>>, vector<1x1x16x16xbf16>
    %37 = vector.shape_cast %36 : vector<1x1x16x16xbf16> to vector<16x16xbf16>
    %c0_29 = arith.constant 0 : index
    %c8_30 = arith.constant 8 : index
    %38 = vector.load %arg13[%c0_29, %c8_30] : memref<16x32xbf16, #tpu.memory_space<vmem>>, vector<16x16xbf16>
    %cst_31 = arith.constant dense<0.000000e+00> : vector<16x16xf32>
    %39 = tpu.matmul %37, %38, %cst_31 {dimension_numbers = #tpu.dot_dimension_numbers<[1], [0], [0], [1], [0, 0, 1, 1], [], []>} : vector<16x16xbf16>, vector<16x16xbf16>, vector<16x16xf32> -> vector<16x16xf32>
    %c0_32 = arith.constant 0 : index
    %c2 = arith.constant 2 : index
    %c0_33 = arith.constant 0 : index
    %c0_34 = arith.constant 0 : index
    %40 = vector.load %arg4[%c0_32, %c2, %c0_33, %c0_34] : memref<4x3x16x16xbf16, #tpu.memory_space<vmem>>, vector<1x1x16x16xbf16>
    %41 = vector.shape_cast %40 : vector<1x1x16x16xbf16> to vector<16x16xbf16>
    %c0_35 = arith.constant 0 : index
    %c9 = arith.constant 9 : index
    %42 = vector.load %arg13[%c0_35, %c9] : memref<16x32xbf16, #tpu.memory_space<vmem>>, vector<16x16xbf16>
    %cst_36 = arith.constant dense<0.000000e+00> : vector<16x16xf32>
    %43 = tpu.matmul %41, %42, %cst_36 {dimension_numbers = #tpu.dot_dimension_numbers<[1], [0], [0], [1], [0, 0, 1, 1], [], []>} : vector<16x16xbf16>, vector<16x16xbf16>, vector<16x16xf32> -> vector<16x16xf32>
    %44 = arith.addf %35, %39 : vector<16x16xf32>
    %45 = arith.addf %44, %43 : vector<16x16xf32>
    %c0_37 = arith.constant 0 : index
    %c0_38 = arith.constant 0 : index
    %c0_39 = arith.constant 0 : index
    %46 = vector.load %arg5[%c0_37, %c0_38, %c0_39] : memref<4x16x1xf32, #tpu.memory_space<vmem>>, vector<1x16x1xf32>
    %47 = vector.shape_cast %46 : vector<1x16x1xf32> to vector<16x1xf32>
    %48 = vector.broadcast %47 : vector<16x1xf32> to vector<16x16xf32>
    %49 = arith.addf %45, %48 : vector<16x16xf32>
    %c0_40 = arith.constant 0 : index
    %c0_41 = arith.constant 0 : index
    %c0_42 = arith.constant 0 : index
    %50 = vector.load %arg6[%c0_40, %c0_41, %c0_42] : memref<4x32x16xbf16, #tpu.memory_space<vmem>>, vector<1x32x16xbf16>
    %51 = vector.shape_cast %50 : vector<1x32x16xbf16> to vector<32x16xbf16>
    %cst_43 = arith.constant 0.000000e+00 : f32
    %52 = vector.broadcast %cst_43 : f32 to vector<16x16xf32>
    %53 = arith.cmpf ogt, %49, %52 : vector<16x16xf32>
    %cst_44 = arith.constant 0.000000e+00 : f32
    %54 = vector.broadcast %cst_44 : f32 to vector<16x16xf32>
    %55 = arith.minimumf %49, %54 : vector<16x16xf32>
    %56 = math.exp %55 : vector<16x16xf32>
    %cst_45 = arith.constant 1.000000e+00 : f32
    %57 = vector.broadcast %cst_45 : f32 to vector<16x16xf32>
    %58 = arith.subf %56, %57 : vector<16x16xf32>
    %59 = arith.select %53, %49, %58 : vector<16x16xi1>, vector<16x16xf32>
    %60 = arith.truncf %59 : vector<16x16xf32> to vector<16x16xbf16>
    %cst_46 = arith.constant dense<0.000000e+00> : vector<32x16xf32>
    %61 = tpu.matmul %51, %60, %cst_46 {dimension_numbers = #tpu.dot_dimension_numbers<[1], [0], [0], [1], [0, 0, 1, 1], [], []>} : vector<32x16xbf16>, vector<16x16xbf16>, vector<32x16xf32> -> vector<32x16xf32>
    %c0_47 = arith.constant 0 : index
    %c0_48 = arith.constant 0 : index
    %c0_49 = arith.constant 0 : index
    %62 = vector.load %arg7[%c0_47, %c0_48, %c0_49] : memref<4x32x1xf32, #tpu.memory_space<vmem>>, vector<1x32x1xf32>
    %63 = vector.shape_cast %62 : vector<1x32x1xf32> to vector<32x1xf32>
    %64 = vector.broadcast %63 : vector<32x1xf32> to vector<32x16xf32>
    %65 = arith.addf %61, %64 : vector<32x16xf32>
    %cst_50 = arith.constant dense<0.000000e+00> : vector<32xf32>
    %66 = vector.multi_reduction <add>, %65, %cst_50 [1] : vector<32x16xf32> to vector<32xf32>
    %67 = vector.shape_cast %66 : vector<32xf32> to vector<32x1xf32>
    %cst_51 = arith.constant 1.600000e+01 : f32
    %68 = vector.broadcast %cst_51 : f32 to vector<32x1xf32>
    %69 = arith.divf %67, %68 : vector<32x1xf32>
    %c0_52 = arith.constant 0 : index
    %c0_53 = arith.constant 0 : index
    %c0_54 = arith.constant 0 : index
    %70 = vector.load %arg8[%c0_52, %c0_53, %c0_54] : memref<4x32x2xf32, #tpu.memory_space<vmem>>, vector<1x32x2xf32>
    %71 = vector.shape_cast %70 : vector<1x32x2xf32> to vector<32x2xf32>
    %72 = vector.broadcast %69 : vector<32x1xf32> to vector<32x2xf32>
    %73 = arith.mulf %71, %72 : vector<32x2xf32>
    %cst_55 = arith.constant dense<0.000000e+00> : vector<2xf32>
    %74 = vector.multi_reduction <add>, %73, %cst_55 [0] : vector<32x2xf32> to vector<2xf32>
    %75 = vector.shape_cast %74 : vector<2xf32> to vector<1x2xf32>
    %c0_56 = arith.constant 0 : index
    %c0_57 = arith.constant 0 : index
    %c0_58 = arith.constant 0 : index
    %76 = vector.load %arg9[%c0_56, %c0_57, %c0_58] : memref<4x1x2xf32, #tpu.memory_space<vmem>>, vector<1x1x2xf32>
    %77 = vector.shape_cast %76 : vector<1x1x2xf32> to vector<1x2xf32>
    %78 = arith.addf %75, %77 : vector<1x2xf32>
    %cst_59 = arith.constant 0.000000e+00 : f32
    %79 = vector.broadcast %cst_59 : f32 to vector<1x2xf32>
    %80 = arith.maximumf %78, %79 : vector<1x2xf32>
    %c0_60 = arith.constant 0 : index
    %c0_61 = arith.constant 0 : index
    %c0_62 = arith.constant 0 : index
    %81 = vector.load %arg10[%c0_60, %c0_61, %c0_62] : memref<4x32x2xf32, #tpu.memory_space<vmem>>, vector<1x32x2xf32>
    %82 = vector.shape_cast %81 : vector<1x32x2xf32> to vector<32x2xf32>
    %83 = vector.broadcast %80 : vector<1x2xf32> to vector<32x2xf32>
    %84 = arith.mulf %82, %83 : vector<32x2xf32>
    %cst_63 = arith.constant dense<0.000000e+00> : vector<32xf32>
    %85 = vector.multi_reduction <add>, %84, %cst_63 [1] : vector<32x2xf32> to vector<32xf32>
    %86 = vector.shape_cast %85 : vector<32xf32> to vector<32x1xf32>
    %c0_64 = arith.constant 0 : index
    %c0_65 = arith.constant 0 : index
    %c0_66 = arith.constant 0 : index
    %87 = vector.load %arg11[%c0_64, %c0_65, %c0_66] : memref<4x32x1xf32, #tpu.memory_space<vmem>>, vector<1x32x1xf32>
    %88 = vector.shape_cast %87 : vector<1x32x1xf32> to vector<32x1xf32>
    %89 = arith.addf %86, %88 : vector<32x1xf32>
    %cst_67 = arith.constant 0.000000e+00 : f32
    %90 = vector.broadcast %cst_67 : f32 to vector<32x1xf32>
    %91 = arith.maximumf %89, %90 : vector<32x1xf32>
    %92 = arith.negf %91 : vector<32x1xf32>
    %93 = math.exp %92 : vector<32x1xf32>
    %cst_68 = arith.constant 1.000000e+00 : f32
    %94 = vector.broadcast %cst_68 : f32 to vector<32x1xf32>
    %95 = arith.addf %94, %93 : vector<32x1xf32>
    %96 = arith.divf %94, %95 : vector<32x1xf32>
    %97 = vector.broadcast %96 : vector<32x1xf32> to vector<32x16xf32>
    %98 = arith.mulf %65, %97 : vector<32x16xf32>
    %99 = arith.addf %98, %5 : vector<32x16xf32>
    %c1_69 = arith.constant 1 : index
    %c0_70 = arith.constant 0 : index
    %c0_71 = arith.constant 0 : index
    %100 = vector.load %arg2[%c1_69, %c0_70, %c0_71] : memref<4x16x32xbf16, #tpu.memory_space<vmem>>, vector<1x16x32xbf16>
    %101 = vector.shape_cast %100 : vector<1x16x32xbf16> to vector<16x32xbf16>
    %cst_72 = arith.constant 0.000000e+00 : f32
    %102 = vector.broadcast %cst_72 : f32 to vector<32x16xf32>
    %103 = arith.cmpf ogt, %99, %102 : vector<32x16xf32>
    %cst_73 = arith.constant 0.000000e+00 : f32
    %104 = vector.broadcast %cst_73 : f32 to vector<32x16xf32>
    %105 = arith.minimumf %99, %104 : vector<32x16xf32>
    %106 = math.exp %105 : vector<32x16xf32>
    %cst_74 = arith.constant 1.000000e+00 : f32
    %107 = vector.broadcast %cst_74 : f32 to vector<32x16xf32>
    %108 = arith.subf %106, %107 : vector<32x16xf32>
    %109 = arith.select %103, %99, %108 : vector<32x16xi1>, vector<32x16xf32>
    %110 = arith.truncf %109 : vector<32x16xf32> to vector<32x16xbf16>
    %cst_75 = arith.constant dense<0.000000e+00> : vector<16x16xf32>
    %111 = tpu.matmul %101, %110, %cst_75 {dimension_numbers = #tpu.dot_dimension_numbers<[1], [0], [0], [1], [0, 0, 1, 1], [], []>} : vector<16x32xbf16>, vector<32x16xbf16>, vector<16x16xf32> -> vector<16x16xf32>
    %c1_76 = arith.constant 1 : index
    %c0_77 = arith.constant 0 : index
    %c0_78 = arith.constant 0 : index
    %112 = vector.load %arg3[%c1_76, %c0_77, %c0_78] : memref<4x16x1xf32, #tpu.memory_space<vmem>>, vector<1x16x1xf32>
    %113 = vector.shape_cast %112 : vector<1x16x1xf32> to vector<16x1xf32>
    %114 = vector.broadcast %113 : vector<16x1xf32> to vector<16x16xf32>
    %115 = arith.addf %111, %114 : vector<16x16xf32>
    %cst_79 = arith.constant 0.000000e+00 : f32
    %116 = vector.broadcast %cst_79 : f32 to vector<16x16xf32>
    %117 = arith.cmpf ogt, %115, %116 : vector<16x16xf32>
    %cst_80 = arith.constant 0.000000e+00 : f32
    %118 = vector.broadcast %cst_80 : f32 to vector<16x16xf32>
    %119 = arith.minimumf %115, %118 : vector<16x16xf32>
    %120 = math.exp %119 : vector<16x16xf32>
    %cst_81 = arith.constant 1.000000e+00 : f32
    %121 = vector.broadcast %cst_81 : f32 to vector<16x16xf32>
    %122 = arith.subf %120, %121 : vector<16x16xf32>
    %123 = arith.select %117, %115, %122 : vector<16x16xi1>, vector<16x16xf32>
    %124 = arith.truncf %123 : vector<16x16xf32> to vector<16x16xbf16>
    %c0_82 = arith.constant 0 : index
    %c8_83 = arith.constant 8 : index
    %125 = vector.load %arg13[%c0_82, %c8_83] : memref<16x32xbf16, #tpu.memory_space<vmem>>, vector<16x16xbf16>
    tpu.vector_store %arg13[%c0_82, %c8_83], %124 {strides = array<i32>} : memref<16x32xbf16, #tpu.memory_space<vmem>>, vector<16x16xbf16>,
    %c1_84 = arith.constant 1 : index
    %c0_85 = arith.constant 0 : index
    %c0_86 = arith.constant 0 : index
    %c0_87 = arith.constant 0 : index
    %126 = vector.load %arg4[%c1_84, %c0_85, %c0_86, %c0_87] : memref<4x3x16x16xbf16, #tpu.memory_space<vmem>>, vector<1x1x16x16xbf16>
    %127 = vector.shape_cast %126 : vector<1x1x16x16xbf16> to vector<16x16xbf16>
    %c0_88 = arith.constant 0 : index
    %c6 = arith.constant 6 : index
    %128 = vector.load %arg13[%c0_88, %c6] : memref<16x32xbf16, #tpu.memory_space<vmem>>, vector<16x16xbf16>
    %cst_89 = arith.constant dense<0.000000e+00> : vector<16x16xf32>
    %129 = tpu.matmul %127, %128, %cst_89 {dimension_numbers = #tpu.dot_dimension_numbers<[1], [0], [0], [1], [0, 0, 1, 1], [], []>} : vector<16x16xbf16>, vector<16x16xbf16>, vector<16x16xf32> -> vector<16x16xf32>
    %c1_90 = arith.constant 1 : index
    %c1_91 = arith.constant 1 : index
    %c0_92 = arith.constant 0 : index
    %c0_93 = arith.constant 0 : index
    %130 = vector.load %arg4[%c1_90, %c1_91, %c0_92, %c0_93] : memref<4x3x16x16xbf16, #tpu.memory_space<vmem>>, vector<1x1x16x16xbf16>
    %131 = vector.shape_cast %130 : vector<1x1x16x16xbf16> to vector<16x16xbf16>
    %c0_94 = arith.constant 0 : index
    %c8_95 = arith.constant 8 : index
    %132 = vector.load %arg13[%c0_94, %c8_95] : memref<16x32xbf16, #tpu.memory_space<vmem>>, vector<16x16xbf16>
    %cst_96 = arith.constant dense<0.000000e+00> : vector<16x16xf32>
    %133 = tpu.matmul %131, %132, %cst_96 {dimension_numbers = #tpu.dot_dimension_numbers<[1], [0], [0], [1], [0, 0, 1, 1], [], []>} : vector<16x16xbf16>, vector<16x16xbf16>, vector<16x16xf32> -> vector<16x16xf32>
    %c1_97 = arith.constant 1 : index
    %c2_98 = arith.constant 2 : index
    %c0_99 = arith.constant 0 : index
    %c0_100 = arith.constant 0 : index
    %134 = vector.load %arg4[%c1_97, %c2_98, %c0_99, %c0_100] : memref<4x3x16x16xbf16, #tpu.memory_space<vmem>>, vector<1x1x16x16xbf16>
    %135 = vector.shape_cast %134 : vector<1x1x16x16xbf16> to vector<16x16xbf16>
    %c0_101 = arith.constant 0 : index
    %c10 = arith.constant 10 : index
    %136 = vector.load %arg13[%c0_101, %c10] : memref<16x32xbf16, #tpu.memory_space<vmem>>, vector<16x16xbf16>
    %cst_102 = arith.constant dense<0.000000e+00> : vector<16x16xf32>
    %137 = tpu.matmul %135, %136, %cst_102 {dimension_numbers = #tpu.dot_dimension_numbers<[1], [0], [0], [1], [0, 0, 1, 1], [], []>} : vector<16x16xbf16>, vector<16x16xbf16>, vector<16x16xf32> -> vector<16x16xf32>
    %138 = arith.addf %129, %133 : vector<16x16xf32>
    %139 = arith.addf %138, %137 : vector<16x16xf32>
    %c1_103 = arith.constant 1 : index
    %c0_104 = arith.constant 0 : index
    %c0_105 = arith.constant 0 : index
    %140 = vector.load %arg5[%c1_103, %c0_104, %c0_105] : memref<4x16x1xf32, #tpu.memory_space<vmem>>, vector<1x16x1xf32>
    %141 = vector.shape_cast %140 : vector<1x16x1xf32> to vector<16x1xf32>
    %142 = vector.broadcast %141 : vector<16x1xf32> to vector<16x16xf32>
    %143 = arith.addf %139, %142 : vector<16x16xf32>
    %c1_106 = arith.constant 1 : index
    %c0_107 = arith.constant 0 : index
    %c0_108 = arith.constant 0 : index
    %144 = vector.load %arg6[%c1_106, %c0_107, %c0_108] : memref<4x32x16xbf16, #tpu.memory_space<vmem>>, vector<1x32x16xbf16>
    %145 = vector.shape_cast %144 : vector<1x32x16xbf16> to vector<32x16xbf16>
    %cst_109 = arith.constant 0.000000e+00 : f32
    %146 = vector.broadcast %cst_109 : f32 to vector<16x16xf32>
    %147 = arith.cmpf ogt, %143, %146 : vector<16x16xf32>
    %cst_110 = arith.constant 0.000000e+00 : f32
    %148 = vector.broadcast %cst_110 : f32 to vector<16x16xf32>
    %149 = arith.minimumf %143, %148 : vector<16x16xf32>
    %150 = math.exp %149 : vector<16x16xf32>
    %cst_111 = arith.constant 1.000000e+00 : f32
    %151 = vector.broadcast %cst_111 : f32 to vector<16x16xf32>
    %152 = arith.subf %150, %151 : vector<16x16xf32>
    %153 = arith.select %147, %143, %152 : vector<16x16xi1>, vector<16x16xf32>
    %154 = arith.truncf %153 : vector<16x16xf32> to vector<16x16xbf16>
    %cst_112 = arith.constant dense<0.000000e+00> : vector<32x16xf32>
    %155 = tpu.matmul %145, %154, %cst_112 {dimension_numbers = #tpu.dot_dimension_numbers<[1], [0], [0], [1], [0, 0, 1, 1], [], []>} : vector<32x16xbf16>, vector<16x16xbf16>, vector<32x16xf32> -> vector<32x16xf32>
    %c1_113 = arith.constant 1 : index
    %c0_114 = arith.constant 0 : index
    %c0_115 = arith.constant 0 : index
    %156 = vector.load %arg7[%c1_113, %c0_114, %c0_115] : memref<4x32x1xf32, #tpu.memory_space<vmem>>, vector<1x32x1xf32>
    %157 = vector.shape_cast %156 : vector<1x32x1xf32> to vector<32x1xf32>
    %158 = vector.broadcast %157 : vector<32x1xf32> to vector<32x16xf32>
    %159 = arith.addf %155, %158 : vector<32x16xf32>
    %cst_116 = arith.constant dense<0.000000e+00> : vector<32xf32>
    %160 = vector.multi_reduction <add>, %159, %cst_116 [1] : vector<32x16xf32> to vector<32xf32>
    %161 = vector.shape_cast %160 : vector<32xf32> to vector<32x1xf32>
    %cst_117 = arith.constant 1.600000e+01 : f32
    %162 = vector.broadcast %cst_117 : f32 to vector<32x1xf32>
    %163 = arith.divf %161, %162 : vector<32x1xf32>
    %c1_118 = arith.constant 1 : index
    %c0_119 = arith.constant 0 : index
    %c0_120 = arith.constant 0 : index
    %164 = vector.load %arg8[%c1_118, %c0_119, %c0_120] : memref<4x32x2xf32, #tpu.memory_space<vmem>>, vector<1x32x2xf32>
    %165 = vector.shape_cast %164 : vector<1x32x2xf32> to vector<32x2xf32>
    %166 = vector.broadcast %163 : vector<32x1xf32> to vector<32x2xf32>
    %167 = arith.mulf %165, %166 : vector<32x2xf32>
    %cst_121 = arith.constant dense<0.000000e+00> : vector<2xf32>
    %168 = vector.multi_reduction <add>, %167, %cst_121 [0] : vector<32x2xf32> to vector<2xf32>
    %169 = vector.shape_cast %168 : vector<2xf32> to vector<1x2xf32>
    %c1_122 = arith.constant 1 : index
    %c0_123 = arith.constant 0 : index
    %c0_124 = arith.constant 0 : index
    %170 = vector.load %arg9[%c1_122, %c0_123, %c0_124] : memref<4x1x2xf32, #tpu.memory_space<vmem>>, vector<1x1x2xf32>
    %171 = vector.shape_cast %170 : vector<1x1x2xf32> to vector<1x2xf32>
    %172 = arith.addf %169, %171 : vector<1x2xf32>
    %cst_125 = arith.constant 0.000000e+00 : f32
    %173 = vector.broadcast %cst_125 : f32 to vector<1x2xf32>
    %174 = arith.maximumf %172, %173 : vector<1x2xf32>
    %c1_126 = arith.constant 1 : index
    %c0_127 = arith.constant 0 : index
    %c0_128 = arith.constant 0 : index
    %175 = vector.load %arg10[%c1_126, %c0_127, %c0_128] : memref<4x32x2xf32, #tpu.memory_space<vmem>>, vector<1x32x2xf32>
    %176 = vector.shape_cast %175 : vector<1x32x2xf32> to vector<32x2xf32>
    %177 = vector.broadcast %174 : vector<1x2xf32> to vector<32x2xf32>
    %178 = arith.mulf %176, %177 : vector<32x2xf32>
    %cst_129 = arith.constant dense<0.000000e+00> : vector<32xf32>
    %179 = vector.multi_reduction <add>, %178, %cst_129 [1] : vector<32x2xf32> to vector<32xf32>
    %180 = vector.shape_cast %179 : vector<32xf32> to vector<32x1xf32>
    %c1_130 = arith.constant 1 : index
    %c0_131 = arith.constant 0 : index
    %c0_132 = arith.constant 0 : index
    %181 = vector.load %arg11[%c1_130, %c0_131, %c0_132] : memref<4x32x1xf32, #tpu.memory_space<vmem>>, vector<1x32x1xf32>
    %182 = vector.shape_cast %181 : vector<1x32x1xf32> to vector<32x1xf32>
    %183 = arith.addf %180, %182 : vector<32x1xf32>
    %cst_133 = arith.constant 0.000000e+00 : f32
    %184 = vector.broadcast %cst_133 : f32 to vector<32x1xf32>
    %185 = arith.maximumf %183, %184 : vector<32x1xf32>
    %186 = arith.negf %185 : vector<32x1xf32>
    %187 = math.exp %186 : vector<32x1xf32>
    %cst_134 = arith.constant 1.000000e+00 : f32
    %188 = vector.broadcast %cst_134 : f32 to vector<32x1xf32>
    %189 = arith.addf %188, %187 : vector<32x1xf32>
    %190 = arith.divf %188, %189 : vector<32x1xf32>
    %191 = vector.broadcast %190 : vector<32x1xf32> to vector<32x16xf32>
    %192 = arith.mulf %159, %191 : vector<32x16xf32>
    %193 = arith.addf %192, %99 : vector<32x16xf32>
    %c2_135 = arith.constant 2 : index
    %c0_136 = arith.constant 0 : index
    %c0_137 = arith.constant 0 : index
    %194 = vector.load %arg2[%c2_135, %c0_136, %c0_137] : memref<4x16x32xbf16, #tpu.memory_space<vmem>>, vector<1x16x32xbf16>
    %195 = vector.shape_cast %194 : vector<1x16x32xbf16> to vector<16x32xbf16>
    %cst_138 = arith.constant 0.000000e+00 : f32
    %196 = vector.broadcast %cst_138 : f32 to vector<32x16xf32>
    %197 = arith.cmpf ogt, %193, %196 : vector<32x16xf32>
    %cst_139 = arith.constant 0.000000e+00 : f32
    %198 = vector.broadcast %cst_139 : f32 to vector<32x16xf32>
    %199 = arith.minimumf %193, %198 : vector<32x16xf32>
    %200 = math.exp %199 : vector<32x16xf32>
    %cst_140 = arith.constant 1.000000e+00 : f32
    %201 = vector.broadcast %cst_140 : f32 to vector<32x16xf32>
    %202 = arith.subf %200, %201 : vector<32x16xf32>
    %203 = arith.select %197, %193, %202 : vector<32x16xi1>, vector<32x16xf32>
    %204 = arith.truncf %203 : vector<32x16xf32> to vector<32x16xbf16>
    %cst_141 = arith.constant dense<0.000000e+00> : vector<16x16xf32>
    %205 = tpu.matmul %195, %204, %cst_141 {dimension_numbers = #tpu.dot_dimension_numbers<[1], [0], [0], [1], [0, 0, 1, 1], [], []>} : vector<16x32xbf16>, vector<32x16xbf16>, vector<16x16xf32> -> vector<16x16xf32>
    %c2_142 = arith.constant 2 : index
    %c0_143 = arith.constant 0 : index
    %c0_144 = arith.constant 0 : index
    %206 = vector.load %arg3[%c2_142, %c0_143, %c0_144] : memref<4x16x1xf32, #tpu.memory_space<vmem>>, vector<1x16x1xf32>
    %207 = vector.shape_cast %206 : vector<1x16x1xf32> to vector<16x1xf32>
    %208 = vector.broadcast %207 : vector<16x1xf32> to vector<16x16xf32>
    %209 = arith.addf %205, %208 : vector<16x16xf32>
    %cst_145 = arith.constant 0.000000e+00 : f32
    %210 = vector.broadcast %cst_145 : f32 to vector<16x16xf32>
    %211 = arith.cmpf ogt, %209, %210 : vector<16x16xf32>
    %cst_146 = arith.constant 0.000000e+00 : f32
    %212 = vector.broadcast %cst_146 : f32 to vector<16x16xf32>
    %213 = arith.minimumf %209, %212 : vector<16x16xf32>
    %214 = math.exp %213 : vector<16x16xf32>
    %cst_147 = arith.constant 1.000000e+00 : f32
    %215 = vector.broadcast %cst_147 : f32 to vector<16x16xf32>
    %216 = arith.subf %214, %215 : vector<16x16xf32>
    %217 = arith.select %211, %209, %216 : vector<16x16xi1>, vector<16x16xf32>
    %218 = arith.truncf %217 : vector<16x16xf32> to vector<16x16xbf16>
    %c0_148 = arith.constant 0 : index
    %c8_149 = arith.constant 8 : index
    %219 = vector.load %arg13[%c0_148, %c8_149] : memref<16x32xbf16, #tpu.memory_space<vmem>>, vector<16x16xbf16>
    tpu.vector_store %arg13[%c0_148, %c8_149], %218 {strides = array<i32>} : memref<16x32xbf16, #tpu.memory_space<vmem>>, vector<16x16xbf16>,
    %c2_150 = arith.constant 2 : index
    %c0_151 = arith.constant 0 : index
    %c0_152 = arith.constant 0 : index
    %c0_153 = arith.constant 0 : index
    %220 = vector.load %arg4[%c2_150, %c0_151, %c0_152, %c0_153] : memref<4x3x16x16xbf16, #tpu.memory_space<vmem>>, vector<1x1x16x16xbf16>
    %221 = vector.shape_cast %220 : vector<1x1x16x16xbf16> to vector<16x16xbf16>
    %c0_154 = arith.constant 0 : index
    %c4 = arith.constant 4 : index
    %222 = vector.load %arg13[%c0_154, %c4] : memref<16x32xbf16, #tpu.memory_space<vmem>>, vector<16x16xbf16>
    %cst_155 = arith.constant dense<0.000000e+00> : vector<16x16xf32>
    %223 = tpu.matmul %221, %222, %cst_155 {dimension_numbers = #tpu.dot_dimension_numbers<[1], [0], [0], [1], [0, 0, 1, 1], [], []>} : vector<16x16xbf16>, vector<16x16xbf16>, vector<16x16xf32> -> vector<16x16xf32>
    %c2_156 = arith.constant 2 : index
    %c1_157 = arith.constant 1 : index
    %c0_158 = arith.constant 0 : index
    %c0_159 = arith.constant 0 : index
    %224 = vector.load %arg4[%c2_156, %c1_157, %c0_158, %c0_159] : memref<4x3x16x16xbf16, #tpu.memory_space<vmem>>, vector<1x1x16x16xbf16>
    %225 = vector.shape_cast %224 : vector<1x1x16x16xbf16> to vector<16x16xbf16>
    %c0_160 = arith.constant 0 : index
    %c8_161 = arith.constant 8 : index
    %226 = vector.load %arg13[%c0_160, %c8_161] : memref<16x32xbf16, #tpu.memory_space<vmem>>, vector<16x16xbf16>
    %cst_162 = arith.constant dense<0.000000e+00> : vector<16x16xf32>
    %227 = tpu.matmul %225, %226, %cst_162 {dimension_numbers = #tpu.dot_dimension_numbers<[1], [0], [0], [1], [0, 0, 1, 1], [], []>} : vector<16x16xbf16>, vector<16x16xbf16>, vector<16x16xf32> -> vector<16x16xf32>
    %c2_163 = arith.constant 2 : index
    %c2_164 = arith.constant 2 : index
    %c0_165 = arith.constant 0 : index
    %c0_166 = arith.constant 0 : index
    %228 = vector.load %arg4[%c2_163, %c2_164, %c0_165, %c0_166] : memref<4x3x16x16xbf16, #tpu.memory_space<vmem>>, vector<1x1x16x16xbf16>
    %229 = vector.shape_cast %228 : vector<1x1x16x16xbf16> to vector<16x16xbf16>
    %c0_167 = arith.constant 0 : index
    %c12 = arith.constant 12 : index
    %230 = vector.load %arg13[%c0_167, %c12] : memref<16x32xbf16, #tpu.memory_space<vmem>>, vector<16x16xbf16>
    %cst_168 = arith.constant dense<0.000000e+00> : vector<16x16xf32>
    %231 = tpu.matmul %229, %230, %cst_168 {dimension_numbers = #tpu.dot_dimension_numbers<[1], [0], [0], [1], [0, 0, 1, 1], [], []>} : vector<16x16xbf16>, vector<16x16xbf16>, vector<16x16xf32> -> vector<16x16xf32>
    %232 = arith.addf %223, %227 : vector<16x16xf32>
    %233 = arith.addf %232, %231 : vector<16x16xf32>
    %c2_169 = arith.constant 2 : index
    %c0_170 = arith.constant 0 : index
    %c0_171 = arith.constant 0 : index
    %234 = vector.load %arg5[%c2_169, %c0_170, %c0_171] : memref<4x16x1xf32, #tpu.memory_space<vmem>>, vector<1x16x1xf32>
    %235 = vector.shape_cast %234 : vector<1x16x1xf32> to vector<16x1xf32>
    %236 = vector.broadcast %235 : vector<16x1xf32> to vector<16x16xf32>
    %237 = arith.addf %233, %236 : vector<16x16xf32>
    %c2_172 = arith.constant 2 : index
    %c0_173 = arith.constant 0 : index
    %c0_174 = arith.constant 0 : index
    %238 = vector.load %arg6[%c2_172, %c0_173, %c0_174] : memref<4x32x16xbf16, #tpu.memory_space<vmem>>, vector<1x32x16xbf16>
    %239 = vector.shape_cast %238 : vector<1x32x16xbf16> to vector<32x16xbf16>
    %cst_175 = arith.constant 0.000000e+00 : f32
    %240 = vector.broadcast %cst_175 : f32 to vector<16x16xf32>
    %241 = arith.cmpf ogt, %237, %240 : vector<16x16xf32>
    %cst_176 = arith.constant 0.000000e+00 : f32
    %242 = vector.broadcast %cst_176 : f32 to vector<16x16xf32>
    %243 = arith.minimumf %237, %242 : vector<16x16xf32>
    %244 = math.exp %243 : vector<16x16xf32>
    %cst_177 = arith.constant 1.000000e+00 : f32
    %245 = vector.broadcast %cst_177 : f32 to vector<16x16xf32>
    %246 = arith.subf %244, %245 : vector<16x16xf32>
    %247 = arith.select %241, %237, %246 : vector<16x16xi1>, vector<16x16xf32>
    %248 = arith.truncf %247 : vector<16x16xf32> to vector<16x16xbf16>
    %cst_178 = arith.constant dense<0.000000e+00> : vector<32x16xf32>
    %249 = tpu.matmul %239, %248, %cst_178 {dimension_numbers = #tpu.dot_dimension_numbers<[1], [0], [0], [1], [0, 0, 1, 1], [], []>} : vector<32x16xbf16>, vector<16x16xbf16>, vector<32x16xf32> -> vector<32x16xf32>
    %c2_179 = arith.constant 2 : index
    %c0_180 = arith.constant 0 : index
    %c0_181 = arith.constant 0 : index
    %250 = vector.load %arg7[%c2_179, %c0_180, %c0_181] : memref<4x32x1xf32, #tpu.memory_space<vmem>>, vector<1x32x1xf32>
    %251 = vector.shape_cast %250 : vector<1x32x1xf32> to vector<32x1xf32>
    %252 = vector.broadcast %251 : vector<32x1xf32> to vector<32x16xf32>
    %253 = arith.addf %249, %252 : vector<32x16xf32>
    %cst_182 = arith.constant dense<0.000000e+00> : vector<32xf32>
    %254 = vector.multi_reduction <add>, %253, %cst_182 [1] : vector<32x16xf32> to vector<32xf32>
    %255 = vector.shape_cast %254 : vector<32xf32> to vector<32x1xf32>
    %cst_183 = arith.constant 1.600000e+01 : f32
    %256 = vector.broadcast %cst_183 : f32 to vector<32x1xf32>
    %257 = arith.divf %255, %256 : vector<32x1xf32>
    %c2_184 = arith.constant 2 : index
    %c0_185 = arith.constant 0 : index
    %c0_186 = arith.constant 0 : index
    %258 = vector.load %arg8[%c2_184, %c0_185, %c0_186] : memref<4x32x2xf32, #tpu.memory_space<vmem>>, vector<1x32x2xf32>
    %259 = vector.shape_cast %258 : vector<1x32x2xf32> to vector<32x2xf32>
    %260 = vector.broadcast %257 : vector<32x1xf32> to vector<32x2xf32>
    %261 = arith.mulf %259, %260 : vector<32x2xf32>
    %cst_187 = arith.constant dense<0.000000e+00> : vector<2xf32>
    %262 = vector.multi_reduction <add>, %261, %cst_187 [0] : vector<32x2xf32> to vector<2xf32>
    %263 = vector.shape_cast %262 : vector<2xf32> to vector<1x2xf32>
    %c2_188 = arith.constant 2 : index
    %c0_189 = arith.constant 0 : index
    %c0_190 = arith.constant 0 : index
    %264 = vector.load %arg9[%c2_188, %c0_189, %c0_190] : memref<4x1x2xf32, #tpu.memory_space<vmem>>, vector<1x1x2xf32>
    %265 = vector.shape_cast %264 : vector<1x1x2xf32> to vector<1x2xf32>
    %266 = arith.addf %263, %265 : vector<1x2xf32>
    %cst_191 = arith.constant 0.000000e+00 : f32
    %267 = vector.broadcast %cst_191 : f32 to vector<1x2xf32>
    %268 = arith.maximumf %266, %267 : vector<1x2xf32>
    %c2_192 = arith.constant 2 : index
    %c0_193 = arith.constant 0 : index
    %c0_194 = arith.constant 0 : index
    %269 = vector.load %arg10[%c2_192, %c0_193, %c0_194] : memref<4x32x2xf32, #tpu.memory_space<vmem>>, vector<1x32x2xf32>
    %270 = vector.shape_cast %269 : vector<1x32x2xf32> to vector<32x2xf32>
    %271 = vector.broadcast %268 : vector<1x2xf32> to vector<32x2xf32>
    %272 = arith.mulf %270, %271 : vector<32x2xf32>
    %cst_195 = arith.constant dense<0.000000e+00> : vector<32xf32>
    %273 = vector.multi_reduction <add>, %272, %cst_195 [1] : vector<32x2xf32> to vector<32xf32>
    %274 = vector.shape_cast %273 : vector<32xf32> to vector<32x1xf32>
    %c2_196 = arith.constant 2 : index
    %c0_197 = arith.constant 0 : index
    %c0_198 = arith.constant 0 : index
    %275 = vector.load %arg11[%c2_196, %c0_197, %c0_198] : memref<4x32x1xf32, #tpu.memory_space<vmem>>, vector<1x32x1xf32>
    %276 = vector.shape_cast %275 : vector<1x32x1xf32> to vector<32x1xf32>
    %277 = arith.addf %274, %276 : vector<32x1xf32>
    %cst_199 = arith.constant 0.000000e+00 : f32
    %278 = vector.broadcast %cst_199 : f32 to vector<32x1xf32>
    %279 = arith.maximumf %277, %278 : vector<32x1xf32>
    %280 = arith.negf %279 : vector<32x1xf32>
    %281 = math.exp %280 : vector<32x1xf32>
    %cst_200 = arith.constant 1.000000e+00 : f32
    %282 = vector.broadcast %cst_200 : f32 to vector<32x1xf32>
    %283 = arith.addf %282, %281 : vector<32x1xf32>
    %284 = arith.divf %282, %283 : vector<32x1xf32>
    %285 = vector.broadcast %284 : vector<32x1xf32> to vector<32x16xf32>
    %286 = arith.mulf %253, %285 : vector<32x16xf32>
    %287 = arith.addf %286, %193 : vector<32x16xf32>
    %c3 = arith.constant 3 : index
    %c0_201 = arith.constant 0 : index
    %c0_202 = arith.constant 0 : index
    %288 = vector.load %arg2[%c3, %c0_201, %c0_202] : memref<4x16x32xbf16, #tpu.memory_space<vmem>>, vector<1x16x32xbf16>
    %289 = vector.shape_cast %288 : vector<1x16x32xbf16> to vector<16x32xbf16>
    %cst_203 = arith.constant 0.000000e+00 : f32
    %290 = vector.broadcast %cst_203 : f32 to vector<32x16xf32>
    %291 = arith.cmpf ogt, %287, %290 : vector<32x16xf32>
    %cst_204 = arith.constant 0.000000e+00 : f32
    %292 = vector.broadcast %cst_204 : f32 to vector<32x16xf32>
    %293 = arith.minimumf %287, %292 : vector<32x16xf32>
    %294 = math.exp %293 : vector<32x16xf32>
    %cst_205 = arith.constant 1.000000e+00 : f32
    %295 = vector.broadcast %cst_205 : f32 to vector<32x16xf32>
    %296 = arith.subf %294, %295 : vector<32x16xf32>
    %297 = arith.select %291, %287, %296 : vector<32x16xi1>, vector<32x16xf32>
    %298 = arith.truncf %297 : vector<32x16xf32> to vector<32x16xbf16>
    %cst_206 = arith.constant dense<0.000000e+00> : vector<16x16xf32>
    %299 = tpu.matmul %289, %298, %cst_206 {dimension_numbers = #tpu.dot_dimension_numbers<[1], [0], [0], [1], [0, 0, 1, 1], [], []>} : vector<16x32xbf16>, vector<32x16xbf16>, vector<16x16xf32> -> vector<16x16xf32>
    %c3_207 = arith.constant 3 : index
    %c0_208 = arith.constant 0 : index
    %c0_209 = arith.constant 0 : index
    %300 = vector.load %arg3[%c3_207, %c0_208, %c0_209] : memref<4x16x1xf32, #tpu.memory_space<vmem>>, vector<1x16x1xf32>
    %301 = vector.shape_cast %300 : vector<1x16x1xf32> to vector<16x1xf32>
    %302 = vector.broadcast %301 : vector<16x1xf32> to vector<16x16xf32>
    %303 = arith.addf %299, %302 : vector<16x16xf32>
    %cst_210 = arith.constant 0.000000e+00 : f32
    %304 = vector.broadcast %cst_210 : f32 to vector<16x16xf32>
    %305 = arith.cmpf ogt, %303, %304 : vector<16x16xf32>
    %cst_211 = arith.constant 0.000000e+00 : f32
    %306 = vector.broadcast %cst_211 : f32 to vector<16x16xf32>
    %307 = arith.minimumf %303, %306 : vector<16x16xf32>
    %308 = math.exp %307 : vector<16x16xf32>
    %cst_212 = arith.constant 1.000000e+00 : f32
    %309 = vector.broadcast %cst_212 : f32 to vector<16x16xf32>
    %310 = arith.subf %308, %309 : vector<16x16xf32>
    %311 = arith.select %305, %303, %310 : vector<16x16xi1>, vector<16x16xf32>
    %312 = arith.truncf %311 : vector<16x16xf32> to vector<16x16xbf16>
    %c0_213 = arith.constant 0 : index
    %c8_214 = arith.constant 8 : index
    %313 = vector.load %arg13[%c0_213, %c8_214] : memref<16x32xbf16, #tpu.memory_space<vmem>>, vector<16x16xbf16>
    tpu.vector_store %arg13[%c0_213, %c8_214], %312 {strides = array<i32>} : memref<16x32xbf16, #tpu.memory_space<vmem>>, vector<16x16xbf16>,
    %c3_215 = arith.constant 3 : index
    %c0_216 = arith.constant 0 : index
    %c0_217 = arith.constant 0 : index
    %c0_218 = arith.constant 0 : index
    %314 = vector.load %arg4[%c3_215, %c0_216, %c0_217, %c0_218] : memref<4x3x16x16xbf16, #tpu.memory_space<vmem>>, vector<1x1x16x16xbf16>
    %315 = vector.shape_cast %314 : vector<1x1x16x16xbf16> to vector<16x16xbf16>
    %c0_219 = arith.constant 0 : index
    %c0_220 = arith.constant 0 : index
    %316 = vector.load %arg13[%c0_219, %c0_220] : memref<16x32xbf16, #tpu.memory_space<vmem>>, vector<16x16xbf16>
    %cst_221 = arith.constant dense<0.000000e+00> : vector<16x16xf32>
    %317 = tpu.matmul %315, %316, %cst_221 {dimension_numbers = #tpu.dot_dimension_numbers<[1], [0], [0], [1], [0, 0, 1, 1], [], []>} : vector<16x16xbf16>, vector<16x16xbf16>, vector<16x16xf32> -> vector<16x16xf32>
    %c3_222 = arith.constant 3 : index
    %c1_223 = arith.constant 1 : index
    %c0_224 = arith.constant 0 : index
    %c0_225 = arith.constant 0 : index
    %318 = vector.load %arg4[%c3_222, %c1_223, %c0_224, %c0_225] : memref<4x3x16x16xbf16, #tpu.memory_space<vmem>>, vector<1x1x16x16xbf16>
    %319 = vector.shape_cast %318 : vector<1x1x16x16xbf16> to vector<16x16xbf16>
    %c0_226 = arith.constant 0 : index
    %c8_227 = arith.constant 8 : index
    %320 = vector.load %arg13[%c0_226, %c8_227] : memref<16x32xbf16, #tpu.memory_space<vmem>>, vector<16x16xbf16>
    %cst_228 = arith.constant dense<0.000000e+00> : vector<16x16xf32>
    %321 = tpu.matmul %319, %320, %cst_228 {dimension_numbers = #tpu.dot_dimension_numbers<[1], [0], [0], [1], [0, 0, 1, 1], [], []>} : vector<16x16xbf16>, vector<16x16xbf16>, vector<16x16xf32> -> vector<16x16xf32>
    %c3_229 = arith.constant 3 : index
    %c2_230 = arith.constant 2 : index
    %c0_231 = arith.constant 0 : index
    %c0_232 = arith.constant 0 : index
    %322 = vector.load %arg4[%c3_229, %c2_230, %c0_231, %c0_232] : memref<4x3x16x16xbf16, #tpu.memory_space<vmem>>, vector<1x1x16x16xbf16>
    %323 = vector.shape_cast %322 : vector<1x1x16x16xbf16> to vector<16x16xbf16>
    %c0_233 = arith.constant 0 : index
    %c16 = arith.constant 16 : index
    %324 = vector.load %arg13[%c0_233, %c16] : memref<16x32xbf16, #tpu.memory_space<vmem>>, vector<16x16xbf16>
    %cst_234 = arith.constant dense<0.000000e+00> : vector<16x16xf32>
    %325 = tpu.matmul %323, %324, %cst_234 {dimension_numbers = #tpu.dot_dimension_numbers<[1], [0], [0], [1], [0, 0, 1, 1], [], []>} : vector<16x16xbf16>, vector<16x16xbf16>, vector<16x16xf32> -> vector<16x16xf32>
    %326 = arith.addf %317, %321 : vector<16x16xf32>
    %327 = arith.addf %326, %325 : vector<16x16xf32>
    %c3_235 = arith.constant 3 : index
    %c0_236 = arith.constant 0 : index
    %c0_237 = arith.constant 0 : index
    %328 = vector.load %arg5[%c3_235, %c0_236, %c0_237] : memref<4x16x1xf32, #tpu.memory_space<vmem>>, vector<1x16x1xf32>
    %329 = vector.shape_cast %328 : vector<1x16x1xf32> to vector<16x1xf32>
    %330 = vector.broadcast %329 : vector<16x1xf32> to vector<16x16xf32>
    %331 = arith.addf %327, %330 : vector<16x16xf32>
    %c3_238 = arith.constant 3 : index
    %c0_239 = arith.constant 0 : index
    %c0_240 = arith.constant 0 : index
    %332 = vector.load %arg6[%c3_238, %c0_239, %c0_240] : memref<4x32x16xbf16, #tpu.memory_space<vmem>>, vector<1x32x16xbf16>
    %333 = vector.shape_cast %332 : vector<1x32x16xbf16> to vector<32x16xbf16>
    %cst_241 = arith.constant 0.000000e+00 : f32
    %334 = vector.broadcast %cst_241 : f32 to vector<16x16xf32>
    %335 = arith.cmpf ogt, %331, %334 : vector<16x16xf32>
    %cst_242 = arith.constant 0.000000e+00 : f32
    %336 = vector.broadcast %cst_242 : f32 to vector<16x16xf32>
    %337 = arith.minimumf %331, %336 : vector<16x16xf32>
    %338 = math.exp %337 : vector<16x16xf32>
    %cst_243 = arith.constant 1.000000e+00 : f32
    %339 = vector.broadcast %cst_243 : f32 to vector<16x16xf32>
    %340 = arith.subf %338, %339 : vector<16x16xf32>
    %341 = arith.select %335, %331, %340 : vector<16x16xi1>, vector<16x16xf32>
    %342 = arith.truncf %341 : vector<16x16xf32> to vector<16x16xbf16>
    %cst_244 = arith.constant dense<0.000000e+00> : vector<32x16xf32>
    %343 = tpu.matmul %333, %342, %cst_244 {dimension_numbers = #tpu.dot_dimension_numbers<[1], [0], [0], [1], [0, 0, 1, 1], [], []>} : vector<32x16xbf16>, vector<16x16xbf16>, vector<32x16xf32> -> vector<32x16xf32>
    %c3_245 = arith.constant 3 : index
    %c0_246 = arith.constant 0 : index
    %c0_247 = arith.constant 0 : index
    %344 = vector.load %arg7[%c3_245, %c0_246, %c0_247] : memref<4x32x1xf32, #tpu.memory_space<vmem>>, vector<1x32x1xf32>
    %345 = vector.shape_cast %344 : vector<1x32x1xf32> to vector<32x1xf32>
    %346 = vector.broadcast %345 : vector<32x1xf32> to vector<32x16xf32>
    %347 = arith.addf %343, %346 : vector<32x16xf32>
    %cst_248 = arith.constant dense<0.000000e+00> : vector<32xf32>
    %348 = vector.multi_reduction <add>, %347, %cst_248 [1] : vector<32x16xf32> to vector<32xf32>
    %349 = vector.shape_cast %348 : vector<32xf32> to vector<32x1xf32>
    %cst_249 = arith.constant 1.600000e+01 : f32
    %350 = vector.broadcast %cst_249 : f32 to vector<32x1xf32>
    %351 = arith.divf %349, %350 : vector<32x1xf32>
    %c3_250 = arith.constant 3 : index
    %c0_251 = arith.constant 0 : index
    %c0_252 = arith.constant 0 : index
    %352 = vector.load %arg8[%c3_250, %c0_251, %c0_252] : memref<4x32x2xf32, #tpu.memory_space<vmem>>, vector<1x32x2xf32>
    %353 = vector.shape_cast %352 : vector<1x32x2xf32> to vector<32x2xf32>
    %354 = vector.broadcast %351 : vector<32x1xf32> to vector<32x2xf32>
    %355 = arith.mulf %353, %354 : vector<32x2xf32>
    %cst_253 = arith.constant dense<0.000000e+00> : vector<2xf32>
    %356 = vector.multi_reduction <add>, %355, %cst_253 [0] : vector<32x2xf32> to vector<2xf32>
    %357 = vector.shape_cast %356 : vector<2xf32> to vector<1x2xf32>
    %c3_254 = arith.constant 3 : index
    %c0_255 = arith.constant 0 : index
    %c0_256 = arith.constant 0 : index
    %358 = vector.load %arg9[%c3_254, %c0_255, %c0_256] : memref<4x1x2xf32, #tpu.memory_space<vmem>>, vector<1x1x2xf32>
    %359 = vector.shape_cast %358 : vector<1x1x2xf32> to vector<1x2xf32>
    %360 = arith.addf %357, %359 : vector<1x2xf32>
    %cst_257 = arith.constant 0.000000e+00 : f32
    %361 = vector.broadcast %cst_257 : f32 to vector<1x2xf32>
    %362 = arith.maximumf %360, %361 : vector<1x2xf32>
    %c3_258 = arith.constant 3 : index
    %c0_259 = arith.constant 0 : index
    %c0_260 = arith.constant 0 : index
    %363 = vector.load %arg10[%c3_258, %c0_259, %c0_260] : memref<4x32x2xf32, #tpu.memory_space<vmem>>, vector<1x32x2xf32>
    %364 = vector.shape_cast %363 : vector<1x32x2xf32> to vector<32x2xf32>
    %365 = vector.broadcast %362 : vector<1x2xf32> to vector<32x2xf32>
    %366 = arith.mulf %364, %365 : vector<32x2xf32>
    %cst_261 = arith.constant dense<0.000000e+00> : vector<32xf32>
    %367 = vector.multi_reduction <add>, %366, %cst_261 [1] : vector<32x2xf32> to vector<32xf32>
    %368 = vector.shape_cast %367 : vector<32xf32> to vector<32x1xf32>
    %c3_262 = arith.constant 3 : index
    %c0_263 = arith.constant 0 : index
    %c0_264 = arith.constant 0 : index
    %369 = vector.load %arg11[%c3_262, %c0_263, %c0_264] : memref<4x32x1xf32, #tpu.memory_space<vmem>>, vector<1x32x1xf32>
    %370 = vector.shape_cast %369 : vector<1x32x1xf32> to vector<32x1xf32>
    %371 = arith.addf %368, %370 : vector<32x1xf32>
    %cst_265 = arith.constant 0.000000e+00 : f32
    %372 = vector.broadcast %cst_265 : f32 to vector<32x1xf32>
    %373 = arith.maximumf %371, %372 : vector<32x1xf32>
    %374 = arith.negf %373 : vector<32x1xf32>
    %375 = math.exp %374 : vector<32x1xf32>
    %cst_266 = arith.constant 1.000000e+00 : f32
    %376 = vector.broadcast %cst_266 : f32 to vector<32x1xf32>
    %377 = arith.addf %376, %375 : vector<32x1xf32>
    %378 = arith.divf %376, %377 : vector<32x1xf32>
    %379 = vector.broadcast %378 : vector<32x1xf32> to vector<32x16xf32>
    %380 = arith.mulf %347, %379 : vector<32x16xf32>
    %381 = arith.addf %380, %287 : vector<32x16xf32>
    %c0_267 = arith.constant 0 : index
    %c0_268 = arith.constant 0 : index
    %c0_269 = arith.constant 0 : index
    %382 = vector.load %arg12[%c0_267, %c0_268, %c0_269] : memref<1x32x16xf32, #tpu.memory_space<vmem>>, vector<1x32x16xf32>
    %383 = vector.shape_cast %382 : vector<1x32x16xf32> to vector<32x16xf32>
    %384 = vector.shape_cast %381 : vector<32x16xf32> to vector<1x32x16xf32>
    tpu.vector_store %arg12[%c0_267, %c0_268, %c0_269], %384 {strides = array<i32>} : memref<1x32x16xf32, #tpu.memory_space<vmem>>, vector<1x32x16xf32>,
    return
  }
  func.func @transform_0(%arg0: i32) -> (i32, i32, i32) {
    %c0_i32 = arith.constant 0 : i32
    %c0_i32_0 = arith.constant 0 : i32
    %c0_i32_1 = arith.constant 0 : i32
    return %arg0, %c0_i32, %c0_i32_0 : i32, i32, i32
  }
  func.func @transform_1(%arg0: i32) -> (i32, i32, i32) {
    %c0_i32 = arith.constant 0 : i32
    %c0_i32_0 = arith.constant 0 : i32
    %c0_i32_1 = arith.constant 0 : i32
    %c0_i32_2 = arith.constant 0 : i32
    return %c0_i32, %c0_i32_0, %c0_i32_1 : i32, i32, i32
  }
  func.func @transform_2(%arg0: i32) -> (i32, i32, i32) {
    %c0_i32 = arith.constant 0 : i32
    %c0_i32_0 = arith.constant 0 : i32
    %c0_i32_1 = arith.constant 0 : i32
    %c0_i32_2 = arith.constant 0 : i32
    return %c0_i32, %c0_i32_0, %c0_i32_1 : i32, i32, i32
  }
  func.func @transform_3(%arg0: i32) -> (i32, i32, i32, i32) {
    %c0_i32 = arith.constant 0 : i32
    %c0_i32_0 = arith.constant 0 : i32
    %c0_i32_1 = arith.constant 0 : i32
    %c0_i32_2 = arith.constant 0 : i32
    %c0_i32_3 = arith.constant 0 : i32
    return %c0_i32, %c0_i32_0, %c0_i32_1, %c0_i32_2 : i32, i32, i32, i32
  }
  func.func @transform_4(%arg0: i32) -> (i32, i32, i32) {
    %c0_i32 = arith.constant 0 : i32
    %c0_i32_0 = arith.constant 0 : i32
    %c0_i32_1 = arith.constant 0 : i32
    %c0_i32_2 = arith.constant 0 : i32
    return %c0_i32, %c0_i32_0, %c0_i32_1 : i32, i32, i32
  }
  func.func @transform_5(%arg0: i32) -> (i32, i32, i32) {
    %c0_i32 = arith.constant 0 : i32
    %c0_i32_0 = arith.constant 0 : i32
    %c0_i32_1 = arith.constant 0 : i32
    %c0_i32_2 = arith.constant 0 : i32
    return %c0_i32, %c0_i32_0, %c0_i32_1 : i32, i32, i32
  }
  func.func @transform_6(%arg0: i32) -> (i32, i32, i32) {
    %c0_i32 = arith.constant 0 : i32
    %c0_i32_0 = arith.constant 0 : i32
    %c0_i32_1 = arith.constant 0 : i32
    %c0_i32_2 = arith.constant 0 : i32
    return %c0_i32, %c0_i32_0, %c0_i32_1 : i32, i32, i32
  }
  func.func @transform_7(%arg0: i32) -> (i32, i32, i32) {
    %c0_i32 = arith.constant 0 : i32
    %c0_i32_0 = arith.constant 0 : i32
    %c0_i32_1 = arith.constant 0 : i32
    %c0_i32_2 = arith.constant 0 : i32
    return %c0_i32, %c0_i32_0, %c0_i32_1 : i32, i32, i32
  }
  func.func @transform_8(%arg0: i32) -> (i32, i32, i32) {
    %c0_i32 = arith.constant 0 : i32
    %c0_i32_0 = arith.constant 0 : i32
    %c0_i32_1 = arith.constant 0 : i32
    %c0_i32_2 = arith.constant 0 : i32
    return %c0_i32, %c0_i32_0, %c0_i32_1 : i32, i32, i32
  }
  func.func @transform_9(%arg0: i32) -> (i32, i32, i32) {
    %c0_i32 = arith.constant 0 : i32
    %c0_i32_0 = arith.constant 0 : i32
    %c0_i32_1 = arith.constant 0 : i32
    %c0_i32_2 = arith.constant 0 : i32
    return %c0_i32, %c0_i32_0, %c0_i32_1 : i32, i32, i32
  }
  func.func @transform_10(%arg0: i32) -> (i32, i32, i32) {
    %c0_i32 = arith.constant 0 : i32
    %c0_i32_0 = arith.constant 0 : i32
    %c0_i32_1 = arith.constant 0 : i32
    %c0_i32_2 = arith.constant 0 : i32
    return %c0_i32, %c0_i32_0, %c0_i32_1 : i32, i32, i32
  }
  func.func @transform_11(%arg0: i32) -> (i32, i32, i32) {
    %c0_i32 = arith.constant 0 : i32
    %c0_i32_0 = arith.constant 0 : i32
    %c0_i32_1 = arith.constant 0 : i32
    return %arg0, %c0_i32, %c0_i32_0 : i32, i32, i32
  }
}

</mosaic_0001>

<llo_original>
// kernel: resnet1d_forward.1
$region0: #{resnet1d_forward.1}
  #allocation0 [shape = 'u32[]', space=smem, size = 0x4, offset = 0x4, fixed_abs, tag = 'smem constant byte address 0x4 - core index']
  #allocation1 [shape = 'u32[144,128]{1,0:T(1,128)}', space=vmem, size = 0x12000, scoped, tag = 'internal scratch']
  #allocation2 [shape = 'bf16[16,32]{1,0:T(16,128)(2,1)}', space=vmem, size = 0x1000, scoped, tag = 'scratch operand']
  %s0 = inlined_call_operand.vmem [shape: f32[2,32,16], index: 0, kind: input, shape index: {}]
  %s1 = inlined_call_operand.vmem [shape: bf16[4,16,32], index: 1, kind: input, shape index: {}]
  %s2 = inlined_call_operand.vmem [shape: f32[4,16,1], index: 2, kind: input, shape index: {}]
  %s3 = inlined_call_operand.vmem [shape: bf16[4,3,16,16], index: 3, kind: input, shape index: {}]
  %s4 = inlined_call_operand.vmem [shape: f32[4,16,1], index: 4, kind: input, shape index: {}]
  %s5 = inlined_call_operand.vmem [shape: bf16[4,32,16], index: 5, kind: input, shape index: {}]
  %s6 = inlined_call_operand.vmem [shape: f32[4,32,1], index: 6, kind: input, shape index: {}]
  %s7 = inlined_call_operand.vmem [shape: f32[4,32,2], index: 7, kind: input, shape index: {}]
  %s8 = inlined_call_operand.vmem [shape: f32[4,1,2], index: 8, kind: input, shape index: {}]
  %s9 = inlined_call_operand.vmem [shape: f32[4,32,2], index: 9, kind: input, shape index: {}]
  %s10 = inlined_call_operand.vmem [shape: f32[4,32,1], index: 10, kind: input, shape index: {}]
  %s11 = inlined_call_operand.vmem [shape: f32[2,32,16], index: 11, kind: output, shape index: {}]
  %s12 = sld [smem:[#allocation0]]
  $region77: #{resnet1d_forward.1} parent=0
    _
  %s14 = ssub.s32 1, %s12
  %s15 = scalar_select 0, %s14, %s12
  loop: start=0, step=1, limit=4
  $region2: #{resnet1d_forward.1} parent=0 // loop_pre_header
    _
  $region3: #{resnet1d_forward.1} parent=0 // loop_header
    %s17 = sphi 0, %s21
    %p18 = scmp.ge.s32.totalorder %s17, 4
    %s27 = sphi 0, %s29
    %s30 = sphi 0, %s27
    %s31 = sphi 0, %s30
    %s47 = sphi 0, %s31
    %s51 = sphi 0, %s51
    %s53 = sphi 0, %s51
    %s54 = sphi 0, %s53
    %s68 = sphi 0, %s54
    %s72 = sphi 0, %s72
    %s74 = sphi 0, %s72
    %s75 = sphi 0, %s74
    %s89 = sphi 0, %s75
    %s93 = sphi 0, %s93
    %s95 = sphi 0, %s93
    %s96 = sphi 0, %s95
    %s110 = sphi 0, %s96
    %s114 = sphi 0, %s114
    %s116 = sphi 0, %s114
    %s117 = sphi 0, %s116
    %s131 = sphi 0, %s117
    %s135 = sphi 0, %s135
    %s137 = sphi 0, %s135
    %s138 = sphi 0, %s137
    %s152 = sphi 0, %s138
    %s156 = sphi 0, %s156
    %s158 = sphi 0, %s156
    %s159 = sphi 0, %s158
    %s173 = sphi 0, %s159
    %s177 = sphi 0, %s177
    %s179 = sphi 0, %s177
    %s180 = sphi 0, %s179
    %s194 = sphi 0, %s180
    %s198 = sphi 0, %s198
    %s200 = sphi 0, %s198
    %s201 = sphi 0, %s200
    %s215 = sphi 0, %s201
    %s219 = sphi 0, %s219
    %s221 = sphi 0, %s219
    %s222 = sphi 0, %s221
    %s236 = sphi 0, %s222
    %s240 = sphi 0, %s240
    %s242 = sphi 0, %s240
    %s243 = sphi 0, %s242
    %s257 = sphi 0, %s243
    %s263 = sphi 0, %s265
    %s266 = sphi 0, %s263
    %s267 = sphi 0, %s266
    %s283 = sphi 0, %s267
  $region4: #{resnet1d_forward.1} parent=0 // loop_header_branch
    %20 = sbr.rel (%p18) target = $region8
  $region5: #{resnet1d_forward.1} parent=0 // loop_body
    %s22 = ssub.s32 %s17, 1
    %s23 = ssub.s32 %s17, 2
    %s24 = sadd.s32 %s17, 1
    %s25 = ssub.s32 %s17, %s24
    %p26 = scmp.eq.s32.totalorder %s25, 0
    %s28 = sadd.s32 %s27, 1
    %s29 = scalar_select %p26, %s27, %s28
    %p32 = pneg %p26
    %p33 = scmp.eq.s32.totalorder %s17, 1
    %p34 = por %p32, %p33
    %p35 = scmp.ne.s32.totalorder %s27, %s30
    %p36 = scmp.eq.s32.totalorder %s17, 0
    %p37 = por %p35, %p36
    %p38 = scmp.ne.s32.totalorder %s27, %s30
    %p39 = scmp.eq.s32.totalorder %s22, 1
    %p40 = por %p38, %p39
    %p41 = scmp.ne.s32.totalorder %s30, %s31
    %p42 = scmp.eq.s32.totalorder %s22, 0
    %p43 = por %p41, %p42
    %p44 = scmp.ne.s32.totalorder %s30, %s31
    %p45 = scmp.eq.s32.totalorder %s23, 1
    %p46 = por %p44, %p45
    %p48 = scmp.ne.s32.totalorder %s31, %s47
    %p49 = scmp.eq.s32.totalorder %s23, 0
    %p50 = por %p48, %p49
    %s52 = sadd.s32 %s51, 1
    %p55 = scmp.eq.s32.totalorder %s17, 1
    %p56 = scmp.ne.s32.totalorder %s51, %s53
    %p57 = scmp.eq.s32.totalorder %s17, 0
    %p58 = por %p56, %p57
    %p59 = scmp.ne.s32.totalorder %s51, %s53
    %p60 = scmp.eq.s32.totalorder %s22, 1
    %p61 = por %p59, %p60
    %p62 = scmp.ne.s32.totalorder %s53, %s54
    %p63 = scmp.eq.s32.totalorder %s22, 0
    %p64 = por %p62, %p63
    %p65 = scmp.ne.s32.totalorder %s53, %s54
    %p66 = scmp.eq.s32.totalorder %s23, 1
    %p67 = por %p65, %p66
    %p69 = scmp.ne.s32.totalorder %s54, %s68
    %p70 = scmp.eq.s32.totalorder %s23, 0
    %p71 = por %p69, %p70
    %s73 = sadd.s32 %s72, 1
    %p76 = scmp.eq.s32.totalorder %s17, 1
    %p77 = scmp.ne.s32.totalorder %s72, %s74
    %p78 = scmp.eq.s32.totalorder %s17, 0
    %p79 = por %p77, %p78
    %p80 = scmp.ne.s32.totalorder %s72, %s74
    %p81 = scmp.eq.s32.totalorder %s22, 1
    %p82 = por %p80, %p81
    %p83 = scmp.ne.s32.totalorder %s74, %s75
    %p84 = scmp.eq.s32.totalorder %s22, 0
    %p85 = por %p83, %p84
    %p86 = scmp.ne.s32.totalorder %s74, %s75
    %p87 = scmp.eq.s32.totalorder %s23, 1
    %p88 = por %p86, %p87
    %p90 = scmp.ne.s32.totalorder %s75, %s89
    %p91 = scmp.eq.s32.totalorder %s23, 0
    %p92 = por %p90, %p91
    %s94 = sadd.s32 %s93, 1
    %p97 = scmp.eq.s32.totalorder %s17, 1
    %p98 = scmp.ne.s32.totalorder %s93, %s95
    %p99 = scmp.eq.s32.totalorder %s17, 0
    %p100 = por %p98, %p99
    %p101 = scmp.ne.s32.totalorder %s93, %s95
    %p102 = scmp.eq.s32.totalorder %s22, 1
    %p103 = por %p101, %p102
    %p104 = scmp.ne.s32.totalorder %s95, %s96
    %p105 = scmp.eq.s32.totalorder %s22, 0
    %p106 = por %p104, %p105
    %p107 = scmp.ne.s32.totalorder %s95, %s96
    %p108 = scmp.eq.s32.totalorder %s23, 1
    %p109 = por %p107, %p108
    %p111 = scmp.ne.s32.totalorder %s96, %s110
    %p112 = scmp.eq.s32.totalorder %s23, 0
    %p113 = por %p111, %p112
    %s115 = sadd.s32 %s114, 1
    %p118 = scmp.eq.s32.totalorder %s17, 1
    %p119 = scmp.ne.s32.totalorder %s114, %s116
    %p120 = scmp.eq.s32.totalorder %s17, 0
    %p121 = por %p119, %p120
    %p122 = scmp.ne.s32.totalorder %s114, %s116
    %p123 = scmp.eq.s32.totalorder %s22, 1
    %p124 = por %p122, %p123
    %p125 = scmp.ne.s32.totalorder %s116, %s117
    %p126 = scmp.eq.s32.totalorder %s22, 0
    %p127 = por %p125, %p126
    %p128 = scmp.ne.s32.totalorder %s116, %s117
    %p129 = scmp.eq.s32.totalorder %s23, 1
    %p130 = por %p128, %p129
    %p132 = scmp.ne.s32.totalorder %s117, %s131
    %p133 = scmp.eq.s32.totalorder %s23, 0
    %p134 = por %p132, %p133
    %s136 = sadd.s32 %s135, 1
    %p139 = scmp.eq.s32.totalorder %s17, 1
    %p140 = scmp.ne.s32.totalorder %s135, %s137
    %p141 = scmp.eq.s32.totalorder %s17, 0
    %p142 = por %p140, %p141
    %p143 = scmp.ne.s32.totalorder %s135, %s137
    %p144 = scmp.eq.s32.totalorder %s22, 1
    %p145 = por %p143, %p144
    %p146 = scmp.ne.s32.totalorder %s137, %s138
    %p147 = scmp.eq.s32.totalorder %s22, 0
    %p148 = por %p146, %p147
    %p149 = scmp.ne.s32.totalorder %s137, %s138
    %p150 = scmp.eq.s32.totalorder %s23, 1
    %p151 = por %p149, %p150
    %p153 = scmp.ne.s32.totalorder %s138, %s152
    %p154 = scmp.eq.s32.totalorder %s23, 0
    %p155 = por %p153, %p154
    %s157 = sadd.s32 %s156, 1
    %p160 = scmp.eq.s32.totalorder %s17, 1
    %p161 = scmp.ne.s32.totalorder %s156, %s158
    %p162 = scmp.eq.s32.totalorder %s17, 0
    %p163 = por %p161, %p162
    %p164 = scmp.ne.s32.totalorder %s156, %s158
    %p165 = scmp.eq.s32.totalorder %s22, 1
    %p166 = por %p164, %p165
    %p167 = scmp.ne.s32.totalorder %s158, %s159
    %p168 = scmp.eq.s32.totalorder %s22, 0
    %p169 = por %p167, %p168
    %p170 = scmp.ne.s32.totalorder %s158, %s159
    %p171 = scmp.eq.s32.totalorder %s23, 1
    %p172 = por %p170, %p171
    %p174 = scmp.ne.s32.totalorder %s159, %s173
    %p175 = scmp.eq.s32.totalorder %s23, 0
    %p176 = por %p174, %p175
    %s178 = sadd.s32 %s177, 1
    %p181 = scmp.eq.s32.totalorder %s17, 1
    %p182 = scmp.ne.s32.totalorder %s177, %s179
    %p183 = scmp.eq.s32.totalorder %s17, 0
    %p184 = por %p182, %p183
    %p185 = scmp.ne.s32.totalorder %s177, %s179
    %p186 = scmp.eq.s32.totalorder %s22, 1
    %p187 = por %p185, %p186
    %p188 = scmp.ne.s32.totalorder %s179, %s180
    %p189 = scmp.eq.s32.totalorder %s22, 0
    %p190 = por %p188, %p189
    %p191 = scmp.ne.s32.totalorder %s179, %s180
    %p192 = scmp.eq.s32.totalorder %s23, 1
    %p193 = por %p191, %p192
    %p195 = scmp.ne.s32.totalorder %s180, %s194
    %p196 = scmp.eq.s32.totalorder %s23, 0
    %p197 = por %p195, %p196
    %s199 = sadd.s32 %s198, 1
    %p202 = scmp.eq.s32.totalorder %s17, 1
    %p203 = scmp.ne.s32.totalorder %s198, %s200
    %p204 = scmp.eq.s32.totalorder %s17, 0
    %p205 = por %p203, %p204
    %p206 = scmp.ne.s32.totalorder %s198, %s200
    %p207 = scmp.eq.s32.totalorder %s22, 1
    %p208 = por %p206, %p207
    %p209 = scmp.ne.s32.totalorder %s200, %s201
    %p210 = scmp.eq.s32.totalorder %s22, 0
    %p211 = por %p209, %p210
    %p212 = scmp.ne.s32.totalorder %s200, %s201
    %p213 = scmp.eq.s32.totalorder %s23, 1
    %p214 = por %p212, %p213
    %p216 = scmp.ne.s32.totalorder %s201, %s215
    %p217 = scmp.eq.s32.totalorder %s23, 0
    %p218 = por %p216, %p217
    %s220 = sadd.s32 %s219, 1
    %p223 = scmp.eq.s32.totalorder %s17, 1
    %p224 = scmp.ne.s32.totalorder %s219, %s221
    %p225 = scmp.eq.s32.totalorder %s17, 0
    %p226 = por %p224, %p225
    %p227 = scmp.ne.s32.totalorder %s219, %s221
    %p228 = scmp.eq.s32.totalorder %s22, 1
    %p229 = por %p227, %p228
    %p230 = scmp.ne.s32.totalorder %s221, %s222
    %p231 = scmp.eq.s32.totalorder %s22, 0
    %p232 = por %p230, %p231
    %p233 = scmp.ne.s32.totalorder %s221, %s222
    %p234 = scmp.eq.s32.totalorder %s23, 1
    %p235 = por %p233, %p234
    %p237 = scmp.ne.s32.totalorder %s222, %s236
    %p238 = scmp.eq.s32.totalorder %s23, 0
    %p239 = por %p237, %p238
    %s241 = sadd.s32 %s240, 1
    %p244 = scmp.eq.s32.totalorder %s17, 1
    %p245 = scmp.ne.s32.totalorder %s240, %s242
    %p246 = scmp.eq.s32.totalorder %s17, 0
    %p247 = por %p245, %p246
    %p248 = scmp.ne.s32.totalorder %s240, %s242
    %p249 = scmp.eq.s32.totalorder %s22, 1
    %p250 = por %p248, %p249
    %p251 = scmp.ne.s32.totalorder %s242, %s243
    %p252 = scmp.eq.s32.totalorder %s22, 0
    %p253 = por %p251, %p252
    %p254 = scmp.ne.s32.totalorder %s242, %s243
    %p255 = scmp.eq.s32.totalorder %s23, 1
    %p256 = por %p254, %p255
    %p258 = scmp.ne.s32.totalorder %s243, %s257
    %p259 = scmp.eq.s32.totalorder %s23, 0
    %p260 = por %p258, %p259
    %s261 = ssub.s32 %s17, %s24
    %p262 = scmp.eq.s32.totalorder %s261, 0
    %s264 = sadd.s32 %s263, 1
    %s265 = scalar_select %p262, %s263, %s264
    %p268 = pneg %p262
    %p269 = scmp.eq.s32.totalorder %s17, 1
    %p270 = por %p268, %p269
    %p271 = scmp.ne.s32.totalorder %s263, %s266
    %p272 = scmp.eq.s32.totalorder %s17, 0
    %p273 = por %p271, %p272
    %p274 = scmp.ne.s32.totalorder %s263, %s266
    %p275 = scmp.eq.s32.totalorder %s22, 1
    %p276 = por %p274, %p275
    %p277 = scmp.ne.s32.totalorder %s266, %s267
    %p278 = scmp.eq.s32.totalorder %s22, 0
    %p279 = por %p277, %p278
    %p280 = scmp.ne.s32.totalorder %s266, %s267
    %p281 = scmp.eq.s32.totalorder %s23, 1
    %p282 = por %p280, %p281
    %p284 = scmp.ne.s32.totalorder %s267, %s283
    %p285 = scmp.eq.s32.totalorder %s23, 0
    %p286 = por %p284, %p285
    %p287 = scmp.le.s32.totalorder 1, %s17
    %p288 = scmp.lt.s32.totalorder %s17, 3
    %p289 = pnand %p287, %p288
    %p290 = pneg %p289
    // Predicated region
    $region9: #{resnet1d_forward.1} parent=5 // pred_check
      _
    $region10: #{resnet1d_forward.1} parent=5 // pred_check_branch
      %292 = sbr.rel (%p289) target = $region12
    $region11: #{resnet1d_forward.1} parent=5 // pred_region
      %s293 = ssub.s32 %s17, 1
      // Predicated region
      $region13: #{resnet1d_forward.1} parent=11 // pred_check
        %p294 = pneg %p64
      $region14: #{resnet1d_forward.1} parent=11 // pred_check_branch
        %296 = sbr.rel (%p294) target = $region16
      $region15: #{resnet1d_forward.1} parent=11 // pred_region
        _
      $region16: #{resnet1d_forward.1} parent=11 // pred_fallthru
        _
      // Predicated region
      $region17: #{resnet1d_forward.1} parent=11 // pred_check
        %p297 = pneg %p85
      $region18: #{resnet1d_forward.1} parent=11 // pred_check_branch
        %299 = sbr.rel (%p297) target = $region20
      $region19: #{resnet1d_forward.1} parent=11 // pred_region
        _
      $region20: #{resnet1d_forward.1} parent=11 // pred_fallthru
        _
      // Predicated region
      $region21: #{resnet1d_forward.1} parent=11 // pred_check
        %p300 = pneg %p106
      $region22: #{resnet1d_forward.1} parent=11 // pred_check_branch
        %302 = sbr.rel (%p300) target = $region24
      $region23: #{resnet1d_forward.1} parent=11 // pred_region
        _
      $region24: #{resnet1d_forward.1} parent=11 // pred_fallthru
        _
      // Predicated region
      $region25: #{resnet1d_forward.1} parent=11 // pred_check
        %p303 = pneg %p127
      $region26: #{resnet1d_forward.1} parent=11 // pred_check_branch
        %305 = sbr.rel (%p303) target = $region28
      $region27: #{resnet1d_forward.1} parent=11 // pred_region
        _
      $region28: #{resnet1d_forward.1} parent=11 // pred_fallthru
        _
      // Predicated region
      $region29: #{resnet1d_forward.1} parent=11 // pred_check
        %p306 = pneg %p148
      $region30: #{resnet1d_forward.1} parent=11 // pred_check_branch
        %308 = sbr.rel (%p306) target = $region32
      $region31: #{resnet1d_forward.1} parent=11 // pred_region
        _
      $region32: #{resnet1d_forward.1} parent=11 // pred_fallthru
        _
      // Predicated region
      $region33: #{resnet1d_forward.1} parent=11 // pred_check
        %p309 = pneg %p169
      $region34: #{resnet1d_forward.1} parent=11 // pred_check_branch
        %311 = sbr.rel (%p309) target = $region36
      $region35: #{resnet1d_forward.1} parent=11 // pred_region
        _
      $region36: #{resnet1d_forward.1} parent=11 // pred_fallthru
        _
      // Predicated region
      $region37: #{resnet1d_forward.1} parent=11 // pred_check
        %p312 = pneg %p190
      $region38: #{resnet1d_forward.1} parent=11 // pred_check_branch
        %314 = sbr.rel (%p312) target = $region40
      $region39: #{resnet1d_forward.1} parent=11 // pred_region
        _
      $region40: #{resnet1d_forward.1} parent=11 // pred_fallthru
        _
      // Predicated region
      $region41: #{resnet1d_forward.1} parent=11 // pred_check
        %p315 = pneg %p211
      $region42: #{resnet1d_forward.1} parent=11 // pred_check_branch
        %317 = sbr.rel (%p315) target = $region44
      $region43: #{resnet1d_forward.1} parent=11 // pred_region
        _
      $region44: #{resnet1d_forward.1} parent=11 // pred_fallthru
        _
      // Predicated region
      $region45: #{resnet1d_forward.1} parent=11 // pred_check
        %p318 = pneg %p232
      $region46: #{resnet1d_forward.1} parent=11 // pred_check_branch
        %320 = sbr.rel (%p318) target = $region48
      $region47: #{resnet1d_forward.1} parent=11 // pred_region
        _
      $region48: #{resnet1d_forward.1} parent=11 // pred_fallthru
        _
      // Predicated region
      $region49: #{resnet1d_forward.1} parent=11 // pred_check
        %p321 = pneg %p253
      $region50: #{resnet1d_forward.1} parent=11 // pred_check_branch
        %323 = sbr.rel (%p321) target = $region52
      $region51: #{resnet1d_forward.1} parent=11 // pred_region
        _
      $region52: #{resnet1d_forward.1} parent=11 // pred_fallthru
        _
    $region12: #{resnet1d_forward.1} parent=5 // pred_fallthru
      _
    %p324 = scmp.lt.s32.totalorder %s17, 2
    // Predicated region
    $region53: #{resnet1d_forward.1} parent=5 // pred_check
      %p325 = pneg %p324
    $region54: #{resnet1d_forward.1} parent=5 // pred_check_branch
      %327 = sbr.rel (%p325) target = $region56
    $region55: #{resnet1d_forward.1} parent=5 // pred_region
      // Predicated region
      $region57: #{resnet1d_forward.1} parent=55 // pred_check
        %p328 = pneg %p37
      $region58: #{resnet1d_forward.1} parent=55 // pred_check_branch
        %330 = sbr.rel (%p328) target = $region60
      $region59: #{resnet1d_forward.1} parent=55 // pred_region
        %p331 = scmp.lt.s32.totalorder %s17, 1
        %s332 = scalar_select %p331, %s17, 1
        %s333 = smul.addr %s332, 4
        %s334 = smul.addr %s333, 8
        %s335 = scalar_lea.vmem %s0, %s334
      $region60: #{resnet1d_forward.1} parent=55 // pred_fallthru
        _
    $region56: #{resnet1d_forward.1} parent=5 // pred_fallthru
      _
    %p336 = scmp.le.s32.totalorder 1, %s17
    %p337 = scmp.lt.s32.totalorder %s17, 3
    %p338 = pnand %p336, %p337
    %p339 = pneg %p338
    // Predicated region
    $region61: #{resnet1d_forward.1} parent=5 // pred_check
      _
    $region62: #{resnet1d_forward.1} parent=5 // pred_check_branch
      %341 = sbr.rel (%p338) target = $region64
    $region63: #{resnet1d_forward.1} parent=5 // pred_region
      %s342 = ssub.s32 %s17, 1
      %p343 = scmp.lt.s32.totalorder %s22, 1
      %s344 = scalar_select %p343, %s22, 1
      %s345 = smul.addr %s344, 4
      %s346 = smul.addr %s345, 8
      %s347 = scalar_lea.vmem %s0, %s346
      %p348 = pneg %p43
      %p349 = pneg %p40
      %p350 = pneg %p64
      %p351 = pneg %p61
      %p352 = pneg %p85
      %p353 = pneg %p82
      %p354 = pneg %p106
      %p355 = pneg %p103
      %p356 = pneg %p127
      %p357 = pneg %p124
      %p358 = pneg %p148
      %p359 = pneg %p145
      %p360 = pneg %p169
      %p361 = pneg %p166
      %p362 = pneg %p190
      %p363 = pneg %p187
      %p364 = pneg %p211
      %p365 = pneg %p208
      %p366 = pneg %p232
      %p367 = pneg %p229
      %p368 = pneg %p253
      %p369 = pneg %p250
      %p370 = pneg %p279
      %p371 = pneg %p276
      %p372 = scmp.lt.s32.totalorder %s22, 1
      %s373 = scalar_select %p372, %s22, 1
      %s374 = smul.addr %s373, 4
      %s375 = smul.addr %s374, 8
      %s376 = scalar_lea.vmem %s11, %s375
      %p377 = scmp.lt.s32.totalorder %s22, 1
      %s378 = scalar_select %p377, %s22, 1
      %s379 = smul.addr %s378, 4
      %s380 = smul.addr %s379, 8
      %s381 = scalar_lea.vmem %s0, %s380
      %p382 = scmp.lt.s32.totalorder %s22, 1
      %s383 = scalar_select %p382, %s22, 1
      %s384 = smul.addr %s383, 4
      %s385 = smul.addr %s384, 8
      %s386 = scalar_lea.vmem %s11, %s385
      %vm388 = vcmask 64512
      %389 = vst.msk [vmem:[#allocation2] sm:$0xff] %vm388, 0
      %vm390 = vcmask 261312
      %391 = vst.msk [vmem:[#allocation2] sm:$0xff] %vm390, 0
      %v392 = vld [vmem:[%s381] sm:$0xff]
      %v393 = vld [vmem:[%s381 + $0x8] sm:$0xff]
      %v394 = vld [vmem:[%s381 + $0x10] sm:$0xff]
      %v395 = vld [vmem:[%s381 + $0x18] sm:$0xff]
      %v396 = vld [vmem:[%s1] sm:$0xf]
      %v397 = vld [vmem:[%s1 + $0x4] sm:$0xf]
      %vm398 = vcmp.gt.f32.partialorder %v392, 0.0
      %vm399 = vcmp.gt.f32.partialorder %v393, 0.0
      %vm400 = vcmp.gt.f32.partialorder %v394, 0.0
      %vm401 = vcmp.gt.f32.partialorder %v395, 0.0
      %v402 = vmin.f32 %v392, 0.0
      %v403 = vmin.f32 %v393, 0.0
      %v404 = vmin.f32 %v394, 0.0
      %v405 = vmin.f32 %v395, 0.0
      %v406 = vmul.f32 %v402, 1.442695
      %v407 = vpow.pop %v406
      %v408 = vmul.f32 %v403, 1.442695
      %v409 = vpow.pop %v408
      %v410 = vmul.f32 %v404, 1.442695
      %v411 = vpow.pop %v410
      %v412 = vmul.f32 %v405, 1.442695
      %v413 = vpow.pop %v412
      %v414 = vsub.f32 %v407, 1.0
      %v415 = vsub.f32 %v409, 1.0
      %v416 = vsub.f32 %v411, 1.0
      %v417 = vsub.f32 %v413, 1.0
      %v418 = vsel %vm398, %v392, %v414
      %v419 = vsel %vm399, %v393, %v415
      %v420 = vsel %vm400, %v394, %v416
      %v421 = vsel %vm401, %v395, %v417
      %v422 = vpack.c.bf16 %v419, %v418
      %v423 = vpack.c.bf16 %v421, %v420
      %v424 = vld [vmem:[%s2] sm:$0xff]
      %v425 = vld [vmem:[%s2 + $0x8] sm:$0xff]
      %427 = vset.pattern.permute.xlu0 0
      %428 = vperm.xlu0 %427, %v424
      %v429 = vpop.permute.xlu0 %428
      %432 = vset.pattern.permute.xlu0 0
      %433 = vperm.xlu0 %432, %v425
      %v434 = vpop.permute.xlu0 %433
      %v438 = vunpack.c.l.b16 %v396
      %v439 = vunpack.c.l.b16 %v397
      %v440 = vpack.c.b16 %v439, %v438
      %vm441 = vcmask 261120
      %v443 = vsel %vm441, %v440, 0
      %445 = vmatprep.subr.bf16.mxu0 0
      %446 = vmatpush1.bf16.msra.mxu0 %v422
      %447 = vmatprep.subr.bf16.mxu0 0
      %448 = vmatpush1.bf16.msra.mxu0 %v423
      %449 = vmatprep.subr.bf16.mxu0 0
      %450 = vmatpush1.bf16.msra.mxu0 0
      %451 = vmatprep.subr.bf16.mxu0 0
      %452 = vmatpush1.bf16.msra.mxu0 0
      %453 = vmatprep.subr.bf16.mxu0 0
      %454 = vmatpush1.bf16.msra.mxu0 0
      %455 = vmatprep.subr.bf16.mxu0 0
      %456 = vmatpush1.bf16.msra.mxu0 0
      %457 = vmatprep.subr.bf16.mxu0 0
      %458 = vmatpush1.bf16.msra.mxu0 0
      %459 = vmatprep.subr.bf16.mxu0 0
      %460 = vmatpush1.bf16.msra.mxu0 0
      %461 = vmatprep.subr.bf16.mxu0 0
      %462 = vmatpush1.bf16.msra.mxu0 0
      %463 = vmatprep.subr.bf16.mxu0 0
      %464 = vmatpush1.bf16.msra.mxu0 0
      %465 = vmatprep.subr.bf16.mxu0 0
      %466 = vmatpush1.bf16.msra.mxu0 0
      %467 = vmatprep.subr.bf16.mxu0 0
      %468 = vmatpush1.bf16.msra.mxu0 0
      %469 = vmatprep.subr.bf16.mxu0 0
      %470 = vmatpush1.bf16.msra.mxu0 0
      %471 = vmatprep.subr.bf16.mxu0 0
      %472 = vmatpush1.bf16.msra.mxu0 0
      %473 = vmatprep.subr.bf16.mxu0 0
      %474 = vmatpush1.bf16.msra.mxu0 0
      %475 = vmatprep.subr.bf16.mxu0 0
      %476 = vmatpush1.bf16.msra.mxu0 0
      %477 = vmatprep.mubr.bf16.mxu0 0
      %478 = vmatmul.mubr.bf16.gmra.mrb[0].mxu0 %v443
      %v479 = vpop.f32.mrb[0].mxu0
      %v480 = vadd.f32 %v429, %v479
      %v481 = vpop.f32.mrb[0].mxu0
      %v482 = vpop.f32.mrb[0].mxu0
      %v483 = vadd.f32 %v434, %v482
      %v484 = vpop.f32.mrb[0].mxu0
      %485 = vdwg.mxu0
      %vm486 = vcmp.gt.f32.partialorder %v480, 0.0
      %vm487 = vcmp.gt.f32.partialorder %v483, 0.0
      %v488 = vmin.f32 %v480, 0.0
      %v489 = vmin.f32 %v483, 0.0
      %v490 = vmul.f32 %v488, 1.442695
      %v491 = vpow.pop %v490
      %v492 = vmul.f32 %v489, 1.442695
      %v493 = vpow.pop %v492
      %v494 = vsub.f32 %v491, 1.0
      %v495 = vsub.f32 %v493, 1.0
      %v496 = vsel %vm486, %v480, %v494
      %v497 = vsel %vm487, %v483, %v495
      %v498 = vpack.c.bf16 %v497, %v496
      %500 = vrot.lane.b32.xlu0 %v498, 8
      %v501 = vpop.permute.xlu0 %500
      %vm503 = vcmask 195648
      %504 = vst.msk [vmem:[#allocation2] sm:$0xff] %vm503, %v501
      %v505 = vld [vmem:[%s3] sm:$0xf]
      %v506 = vld [vmem:[%s3 + $0x4] sm:$0xf]
      %v507 = vld [vmem:[#allocation2] sm:$0xff]
      %s508 = scalar_lea.vmem %s3, 8
      %v509 = vld [vmem:[%s508] sm:$0xf]
      %v510 = vld [vmem:[%s508 + $0x4] sm:$0xf]
      %v513 = vunpack.c.l.b16 %v509
      %v514 = vunpack.c.l.b16 %v510
      %v515 = vpack.c.b16 %v514, %v513
      %517 = vrot.lane.b32.xlu0 %v507, 120
      %v518 = vpop.permute.xlu0 %517
      %vm520 = vcmask 130048
      %v522 = vsel %vm520, %v515, 0
      %524 = vmatprep.subr.bf16.mxu0 0
      %525 = vmatpush1.bf16.msra.mxu0 %v518
      %526 = vmatprep.subr.bf16.mxu0 0
      %527 = vmatpush1.bf16.msra.mxu0 0
      %528 = vmatprep.subr.bf16.mxu0 0
      %529 = vmatpush1.bf16.msra.mxu0 0
      %530 = vmatprep.subr.bf16.mxu0 0
      %531 = vmatpush1.bf16.msra.mxu0 0
      %532 = vmatprep.subr.bf16.mxu0 0
      %533 = vmatpush1.bf16.msra.mxu0 0
      %534 = vmatprep.subr.bf16.mxu0 0
      %535 = vmatpush1.bf16.msra.mxu0 0
      %536 = vmatprep.subr.bf16.mxu0 0
      %537 = vmatpush1.bf16.msra.mxu0 0
      %538 = vmatprep.subr.bf16.mxu0 0
      %539 = vmatpush1.bf16.msra.mxu0 0
      %540 = vmatprep.subr.bf16.mxu0 0
      %541 = vmatpush1.bf16.msra.mxu0 0
      %542 = vmatprep.subr.bf16.mxu0 0
      %543 = vmatpush1.bf16.msra.mxu0 0
      %544 = vmatprep.subr.bf16.mxu0 0
      %545 = vmatpush1.bf16.msra.mxu0 0
      %546 = vmatprep.subr.bf16.mxu0 0
      %547 = vmatpush1.bf16.msra.mxu0 0
      %548 = vmatprep.subr.bf16.mxu0 0
      %549 = vmatpush1.bf16.msra.mxu0 0
      %550 = vmatprep.subr.bf16.mxu0 0
      %551 = vmatpush1.bf16.msra.mxu0 0
      %552 = vmatprep.subr.bf16.mxu0 0
      %553 = vmatpush1.bf16.msra.mxu0 0
      %554 = vmatprep.subr.bf16.mxu0 0
      %555 = vmatpush1.bf16.msra.mxu0 0
      %556 = vmatprep.mubr.bf16.mxu0 0
      %557 = vmatmul.mubr.bf16.gmra.mrb[0].mxu0 %v522
      %v558 = vpop.f32.mrb[0].mxu0
      %v559 = vadd.f32 0.0, %v558
      %v560 = vpop.f32.mrb[0].mxu0
      %v561 = vpop.f32.mrb[0].mxu0
      %v562 = vadd.f32 0.0, %v561
      %v563 = vpop.f32.mrb[0].mxu0
      %564 = vdwg.mxu0
      %s565 = scalar_lea.vmem %s3, 16
      %v566 = vld [vmem:[%s565] sm:$0xf]
      %v567 = vld [vmem:[%s565 + $0x4] sm:$0xf]
      %v570 = vunpack.c.l.b16 %v566
      %v571 = vunpack.c.l.b16 %v567
      %v572 = vpack.c.b16 %v571, %v570
      %573 = vrot.lane.b32.xlu0 %v507, 119
      %v574 = vpop.permute.xlu0 %573
      %v577 = vsel %vm520, %v572, 0
      %579 = vmatprep.subr.bf16.mxu0 0
      %580 = vmatpush1.bf16.msra.mxu0 %v574
      %581 = vmatprep.subr.bf16.mxu0 0
      %582 = vmatpush1.bf16.msra.mxu0 0
      %583 = vmatprep.subr.bf16.mxu0 0
      %584 = vmatpush1.bf16.msra.mxu0 0
      %585 = vmatprep.subr.bf16.mxu0 0
      %586 = vmatpush1.bf16.msra.mxu0 0
      %587 = vmatprep.subr.bf16.mxu0 0
      %588 = vmatpush1.bf16.msra.mxu0 0
      %589 = vmatprep.subr.bf16.mxu0 0
      %590 = vmatpush1.bf16.msra.mxu0 0
      %591 = vmatprep.subr.bf16.mxu0 0
      %592 = vmatpush1.bf16.msra.mxu0 0
      %593 = vmatprep.subr.bf16.mxu0 0
      %594 = vmatpush1.bf16.msra.mxu0 0
      %595 = vmatprep.subr.bf16.mxu0 0
      %596 = vmatpush1.bf16.msra.mxu0 0
      %597 = vmatprep.subr.bf16.mxu0 0
      %598 = vmatpush1.bf16.msra.mxu0 0
      %599 = vmatprep.subr.bf16.mxu0 0
      %600 = vmatpush1.bf16.msra.mxu0 0
      %601 = vmatprep.subr.bf16.mxu0 0
      %602 = vmatpush1.bf16.msra.mxu0 0
      %603 = vmatprep.subr.bf16.mxu0 0
      %604 = vmatpush1.bf16.msra.mxu0 0
      %605 = vmatprep.subr.bf16.mxu0 0
      %606 = vmatpush1.bf16.msra.mxu0 0
      %607 = vmatprep.subr.bf16.mxu0 0
      %608 = vmatpush1.bf16.msra.mxu0 0
      %609 = vmatprep.subr.bf16.mxu0 0
      %610 = vmatpush1.bf16.msra.mxu0 0
      %611 = vmatprep.mubr.bf16.mxu0 0
      %612 = vmatmul.mubr.bf16.gmra.mrb[0].mxu0 %v577
      %v613 = vpop.f32.mrb[0].mxu0
      %v614 = vadd.f32 0.0, %v613
      %v615 = vpop.f32.mrb[0].mxu0
      %v616 = vpop.f32.mrb[0].mxu0
      %v617 = vadd.f32 0.0, %v616
      %v618 = vpop.f32.mrb[0].mxu0
      %619 = vdwg.mxu0
      %v622 = vunpack.c.l.b16 %v505
      %v623 = vunpack.c.l.b16 %v506
      %v624 = vpack.c.b16 %v623, %v622
      %625 = vrot.lane.b32.xlu0 %v507, 121
      %v626 = vpop.permute.xlu0 %625
      %v629 = vsel %vm520, %v624, 0
      %631 = vmatprep.subr.bf16.mxu0 0
      %632 = vmatpush1.bf16.msra.mxu0 %v626
      %633 = vmatprep.subr.bf16.mxu0 0
      %634 = vmatpush1.bf16.msra.mxu0 0
      %635 = vmatprep.subr.bf16.mxu0 0
      %636 = vmatpush1.bf16.msra.mxu0 0
      %637 = vmatprep.subr.bf16.mxu0 0
      %638 = vmatpush1.bf16.msra.mxu0 0
      %639 = vmatprep.subr.bf16.mxu0 0
      %640 = vmatpush1.bf16.msra.mxu0 0
      %641 = vmatprep.subr.bf16.mxu0 0
      %642 = vmatpush1.bf16.msra.mxu0 0
      %643 = vmatprep.subr.bf16.mxu0 0
      %644 = vmatpush1.bf16.msra.mxu0 0
      %645 = vmatprep.subr.bf16.mxu0 0
      %646 = vmatpush1.bf16.msra.mxu0 0
      %647 = vmatprep.subr.bf16.mxu0 0
      %648 = vmatpush1.bf16.msra.mxu0 0
      %649 = vmatprep.subr.bf16.mxu0 0
      %650 = vmatpush1.bf16.msra.mxu0 0
      %651 = vmatprep.subr.bf16.mxu0 0
      %652 = vmatpush1.bf16.msra.mxu0 0
      %653 = vmatprep.subr.bf16.mxu0 0
      %654 = vmatpush1.bf16.msra.mxu0 0
      %655 = vmatprep.subr.bf16.mxu0 0
      %656 = vmatpush1.bf16.msra.mxu0 0
      %657 = vmatprep.subr.bf16.mxu0 0
      %658 = vmatpush1.bf16.msra.mxu0 0
      %659 = vmatprep.subr.bf16.mxu0 0
      %660 = vmatpush1.bf16.msra.mxu0 0
      %661 = vmatprep.subr.bf16.mxu0 0
      %662 = vmatpush1.bf16.msra.mxu0 0
      %663 = vmatprep.mubr.bf16.mxu0 0
      %664 = vmatmul.mubr.bf16.gmra.mrb[0].mxu0 %v629
      %v665 = vpop.f32.mrb[0].mxu0
      %v666 = vadd.f32 %v559, %v665
      %v667 = vpop.f32.mrb[0].mxu0
      %v668 = vpop.f32.mrb[0].mxu0
      %v669 = vadd.f32 %v562, %v668
      %v670 = vpop.f32.mrb[0].mxu0
      %671 = vdwg.mxu0
      %v672 = vadd.f32 %v666, %v614
      %v673 = vadd.f32 %v669, %v617
      %v674 = vld [vmem:[%s4] sm:$0xff]
      %v675 = vld [vmem:[%s4 + $0x8] sm:$0xff]
      %677 = vset.pattern.permute.xlu0 0
      %678 = vperm.xlu0 %677, %v674
      %v679 = vpop.permute.xlu0 %678
      %682 = vset.pattern.permute.xlu0 0
      %683 = vperm.xlu0 %682, %v675
      %v684 = vpop.permute.xlu0 %683
      %v686 = vadd.f32 %v672, %v679
      %v687 = vadd.f32 %v673, %v684
      %v688 = vld [vmem:[%s5] sm:$0xf]
      %v689 = vld [vmem:[%s5 + $0x4] sm:$0xf]
      %v690 = vld [vmem:[%s5 + $0x8] sm:$0xf]
      %v691 = vld [vmem:[%s5 + $0xc] sm:$0xf]
      %vm692 = vcmp.gt.f32.partialorder %v686, 0.0
      %vm693 = vcmp.gt.f32.partialorder %v687, 0.0
      %v694 = vmin.f32 %v686, 0.0
      %v695 = vmin.f32 %v687, 0.0
      %v696 = vmul.f32 %v694, 1.442695
      %v697 = vpow.pop %v696
      %v698 = vmul.f32 %v695, 1.442695
      %v699 = vpow.pop %v698
      %v700 = vsub.f32 %v697, 1.0
      %v701 = vsub.f32 %v699, 1.0
      %v702 = vsel %vm692, %v686, %v700
      %v703 = vsel %vm693, %v687, %v701
      %v704 = vpack.c.bf16 %v703, %v702
      %v705 = vld [vmem:[%s6] sm:$0xff]
      %v706 = vld [vmem:[%s6 + $0x8] sm:$0xff]
      %v707 = vld [vmem:[%s6 + $0x10] sm:$0xff]
      %v708 = vld [vmem:[%s6 + $0x18] sm:$0xff]
      %710 = vset.pattern.permute.xlu0 0
      %711 = vperm.xlu0 %710, %v705
      %v712 = vpop.permute.xlu0 %711
      %715 = vset.pattern.permute.xlu0 0
      %716 = vperm.xlu0 %715, %v706
      %v717 = vpop.permute.xlu0 %716
      %720 = vset.pattern.permute.xlu0 0
      %721 = vperm.xlu0 %720, %v707
      %v722 = vpop.permute.xlu0 %721
      %725 = vset.pattern.permute.xlu0 0
      %726 = vperm.xlu0 %725, %v708
      %v727 = vpop.permute.xlu0 %726
      %v733 = vunpack.c.l.b16 %v688
      %v734 = vunpack.c.l.b16 %v689
      %v735 = vunpack.c.l.b16 %v690
      %v736 = vunpack.c.l.b16 %v691
      %v737 = vpack.c.b16 %v734, %v733
      %v738 = vpack.c.b16 %v736, %v735
      %v740 = vsel %vm520, %v737, 0
      %v743 = vsel %vm520, %v738, 0
      %745 = vmatprep.subr.bf16.mxu0 0
      %746 = vmatpush1.bf16.msra.mxu0 %v704
      %747 = vmatprep.subr.bf16.mxu0 0
      %748 = vmatpush1.bf16.msra.mxu0 0
      %749 = vmatprep.subr.bf16.mxu0 0
      %750 = vmatpush1.bf16.msra.mxu0 0
      %751 = vmatprep.subr.bf16.mxu0 0
      %752 = vmatpush1.bf16.msra.mxu0 0
      %753 = vmatprep.subr.bf16.mxu0 0
      %754 = vmatpush1.bf16.msra.mxu0 0
      %755 = vmatprep.subr.bf16.mxu0 0
      %756 = vmatpush1.bf16.msra.mxu0 0
      %757 = vmatprep.subr.bf16.mxu0 0
      %758 = vmatpush1.bf16.msra.mxu0 0
      %759 = vmatprep.subr.bf16.mxu0 0
      %760 = vmatpush1.bf16.msra.mxu0 0
      %761 = vmatprep.subr.bf16.mxu0 0
      %762 = vmatpush1.bf16.msra.mxu0 0
      %763 = vmatprep.subr.bf16.mxu0 0
      %764 = vmatpush1.bf16.msra.mxu0 0
      %765 = vmatprep.subr.bf16.mxu0 0
      %766 = vmatpush1.bf16.msra.mxu0 0
      %767 = vmatprep.subr.bf16.mxu0 0
      %768 = vmatpush1.bf16.msra.mxu0 0
      %769 = vmatprep.subr.bf16.mxu0 0
      %770 = vmatpush1.bf16.msra.mxu0 0
      %771 = vmatprep.subr.bf16.mxu0 0
      %772 = vmatpush1.bf16.msra.mxu0 0
      %773 = vmatprep.subr.bf16.mxu0 0
      %774 = vmatpush1.bf16.msra.mxu0 0
      %775 = vmatprep.subr.bf16.mxu0 0
      %776 = vmatpush1.bf16.msra.mxu0 0
      %777 = vmatprep.mubr.bf16.mxu0 0
      %778 = vmatmul.mubr.bf16.gmra.mrb[0].mxu0 %v740
      %v779 = vpop.f32.mrb[0].mxu0
      %v780 = vadd.f32 %v712, %v779
      %v781 = vpop.f32.mrb[0].mxu0
      %v782 = vpop.f32.mrb[0].mxu0
      %v783 = vadd.f32 %v717, %v782
      %v784 = vpop.f32.mrb[0].mxu0
      %785 = vmatprep.mubr.bf16.mxu0 0
      %786 = vmatmul.mubr.bf16.gmra.mrb[0].mxu0 %v743
      %v787 = vpop.f32.mrb[0].mxu0
      %v788 = vadd.f32 %v722, %v787
      %v789 = vpop.f32.mrb[0].mxu0
      %v790 = vpop.f32.mrb[0].mxu0
      %v791 = vadd.f32 %v727, %v790
      %v792 = vpop.f32.mrb[0].mxu0
      %793 = vdwg.mxu0
      %v794 = vsel %vm520, %v780, 0.0
      %795 = vadd.xlane.f32.xlu0 %v794
      %v796 = vpop.xlane.xlu0 %795
      %v797 = vsel %vm520, %v783, 0.0
      %798 = vadd.xlane.f32.xlu0 %v797
      %v799 = vpop.xlane.xlu0 %798
      %v800 = vsel %vm520, %v788, 0.0
      %801 = vadd.xlane.f32.xlu0 %v800
      %v802 = vpop.xlane.xlu0 %801
      %v803 = vsel %vm520, %v791, 0.0
      %804 = vadd.xlane.f32.xlu0 %v803
      %v805 = vpop.xlane.xlu0 %804
      %v806 = vrcp.pop 16.0
      %v807 = vmul.f32 %v796, %v806
      %v808 = vmul.f32 %v799, %v806
      %v809 = vmul.f32 %v802, %v806
      %v810 = vmul.f32 %v805, %v806
      %v811 = vld [vmem:[%s7] sm:$0xff]
      %v812 = vld [vmem:[%s7 + $0x8] sm:$0xff]
      %v813 = vld [vmem:[%s7 + $0x10] sm:$0xff]
      %v814 = vld [vmem:[%s7 + $0x18] sm:$0xff]
      %v815 = vmul.f32 %v811, %v807
      %v816 = vmul.f32 %v812, %v808
      %v817 = vmul.f32 %v813, %v809
      %v818 = vmul.f32 %v814, %v810
      %vm819 = vcmask 15360
      %v820 = vsel %vm819, %v815, 0.0
      %v821 = vsel %vm819, %v816, 0.0
      %v822 = vadd.f32 %v820, %v821
      %v823 = vsel %vm819, %v817, 0.0
      %v824 = vadd.f32 %v822, %v823
      %v825 = vsel %vm819, %v818, 0.0
      %v826 = vadd.f32 %v824, %v825
      %v827 = vrot.slane %v826, 4
      %v828 = vadd.f32 %v826, %v827
      %v829 = vrot.slane %v828, 2
      %v830 = vadd.f32 %v828, %v829
      %v831 = vrot.slane %v830, 1
      %v832 = vadd.f32 %v830, %v831
      %v833 = vld [vmem:[%s8] sm:$0x1]
      %v834 = vadd.f32 %v832, %v833
      %v835 = vmax.f32 %v834, 0.0
      %v836 = vld [vmem:[%s9] sm:$0xff]
      %v837 = vld [vmem:[%s9 + $0x8] sm:$0xff]
      %v838 = vld [vmem:[%s9 + $0x10] sm:$0xff]
      %v839 = vld [vmem:[%s9 + $0x18] sm:$0xff]
      %v840 = vlaneseq
      %v841 = vshrl.u32 %v840, 7
      %v842 = vsub.s32 0, %v841
      %v843 = vrot.slane %v835, %v842
      %v844 = vmul.f32 %v836, %v843
      %v845 = vmul.f32 %v837, %v843
      %v846 = vmul.f32 %v838, %v843
      %v847 = vmul.f32 %v839, %v843
      %v848 = vsel %vm819, %v844, 0.0
      %849 = vadd.xlane.f32.xlu0 %v848
      %v850 = vpop.xlane.xlu0 %849
      %v851 = vsel %vm819, %v845, 0.0
      %852 = vadd.xlane.f32.xlu0 %v851
      %v853 = vpop.xlane.xlu0 %852
      %v854 = vsel %vm819, %v846, 0.0
      %855 = vadd.xlane.f32.xlu0 %v854
      %v856 = vpop.xlane.xlu0 %855
      %v857 = vsel %vm819, %v847, 0.0
      %858 = vadd.xlane.f32.xlu0 %v857
      %v859 = vpop.xlane.xlu0 %858
      %v860 = vld [vmem:[%s10] sm:$0xff]
      %v861 = vld [vmem:[%s10 + $0x8] sm:$0xff]
      %v862 = vld [vmem:[%s10 + $0x10] sm:$0xff]
      %v863 = vld [vmem:[%s10 + $0x18] sm:$0xff]
      %v864 = vadd.f32 %v850, %v860
      %v865 = vadd.f32 %v853, %v861
      %v866 = vadd.f32 %v856, %v862
      %v867 = vadd.f32 %v859, %v863
      %v868 = vmax.f32 %v864, 0.0
      %v869 = vmax.f32 %v865, 0.0
      %v870 = vmax.f32 %v866, 0.0
      %v871 = vmax.f32 %v867, 0.0
      %v872 = vxor.u32 %v868, 2147483648
      %v873 = vxor.u32 %v869, 2147483648
      %v874 = vxor.u32 %v870, 2147483648
      %v875 = vxor.u32 %v871, 2147483648
      %v876 = vmul.f32 %v872, 1.442695
      %v877 = vpow.pop %v876
      %v878 = vmul.f32 %v873, 1.442695
      %v879 = vpow.pop %v878
      %v880 = vmul.f32 %v874, 1.442695
      %v881 = vpow.pop %v880
      %v882 = vmul.f32 %v875, 1.442695
      %v883 = vpow.pop %v882
      %v884 = vadd.f32 %v877, 1.0
      %v885 = vadd.f32 %v879, 1.0
      %v886 = vadd.f32 %v881, 1.0
      %v887 = vadd.f32 %v883, 1.0
      %v888 = vrcp.pop %v884
      %v889 = vmul.f32 1.0, %v888
      %v890 = vrcp.pop %v885
      %v891 = vmul.f32 1.0, %v890
      %v892 = vrcp.pop %v886
      %v893 = vmul.f32 1.0, %v892
      %v894 = vrcp.pop %v887
      %v895 = vmul.f32 1.0, %v894
      %897 = vset.pattern.permute.xlu0 0
      %898 = vperm.xlu0 %897, %v889
      %v899 = vpop.permute.xlu0 %898
      %902 = vset.pattern.permute.xlu0 0
      %903 = vperm.xlu0 %902, %v891
      %v904 = vpop.permute.xlu0 %903
      %907 = vset.pattern.permute.xlu0 0
      %908 = vperm.xlu0 %907, %v893
      %v909 = vpop.permute.xlu0 %908
      %912 = vset.pattern.permute.xlu0 0
      %913 = vperm.xlu0 %912, %v895
      %v914 = vpop.permute.xlu0 %913
      %v916 = vmul.f32 %v780, %v899
      %v917 = vmul.f32 %v783, %v904
      %v918 = vmul.f32 %v788, %v909
      %v919 = vmul.f32 %v791, %v914
      %v920 = vadd.f32 %v916, %v392
      %v921 = vadd.f32 %v917, %v393
      %v922 = vadd.f32 %v918, %v394
      %v923 = vadd.f32 %v919, %v395
      %s924 = scalar_lea.vmem %s1, 8
      %v925 = vld [vmem:[%s924] sm:$0xf]
      %v926 = vld [vmem:[%s924 + $0x4] sm:$0xf]
      %vm927 = vcmp.gt.f32.partialorder %v920, 0.0
      %vm928 = vcmp.gt.f32.partialorder %v921, 0.0
      %vm929 = vcmp.gt.f32.partialorder %v922, 0.0
      %vm930 = vcmp.gt.f32.partialorder %v923, 0.0
      %v931 = vmin.f32 %v920, 0.0
      %v932 = vmin.f32 %v921, 0.0
      %v933 = vmin.f32 %v922, 0.0
      %v934 = vmin.f32 %v923, 0.0
      %v935 = vmul.f32 %v931, 1.442695
      %v936 = vpow.pop %v935
      %v937 = vmul.f32 %v932, 1.442695
      %v938 = vpow.pop %v937
      %v939 = vmul.f32 %v933, 1.442695
      %v940 = vpow.pop %v939
      %v941 = vmul.f32 %v934, 1.442695
      %v942 = vpow.pop %v941
      %v943 = vsub.f32 %v936, 1.0
      %v944 = vsub.f32 %v938, 1.0
      %v945 = vsub.f32 %v940, 1.0
      %v946 = vsub.f32 %v942, 1.0
      %v947 = vsel %vm927, %v920, %v943
      %v948 = vsel %vm928, %v921, %v944
      %v949 = vsel %vm929, %v922, %v945
      %v950 = vsel %vm930, %v923, %v946
      %v951 = vpack.c.bf16 %v948, %v947
      %v952 = vpack.c.bf16 %v950, %v949
      %s953 = scalar_lea.vmem %s2, 16
      %v954 = vld [vmem:[%s953] sm:$0xff]
      %v955 = vld [vmem:[%s953 + $0x8] sm:$0xff]
      %957 = vset.pattern.permute.xlu0 0
      %958 = vperm.xlu0 %957, %v954
      %v959 = vpop.permute.xlu0 %958
      %962 = vset.pattern.permute.xlu0 0
      %963 = vperm.xlu0 %962, %v955
      %v964 = vpop.permute.xlu0 %963
      %v968 = vunpack.c.l.b16 %v925
      %v969 = vunpack.c.l.b16 %v926
      %v970 = vpack.c.b16 %v969, %v968
      %v972 = vsel %vm441, %v970, 0
      %974 = vmatprep.subr.bf16.mxu0 0
      %975 = vmatpush1.bf16.msra.mxu0 %v951
      %976 = vmatprep.subr.bf16.mxu0 0
      %977 = vmatpush1.bf16.msra.mxu0 %v952
      %978 = vmatprep.subr.bf16.mxu0 0
      %979 = vmatpush1.bf16.msra.mxu0 0
      %980 = vmatprep.subr.bf16.mxu0 0
      %981 = vmatpush1.bf16.msra.mxu0 0
      %982 = vmatprep.subr.bf16.mxu0 0
      %983 = vmatpush1.bf16.msra.mxu0 0
      %984 = vmatprep.subr.bf16.mxu0 0
      %985 = vmatpush1.bf16.msra.mxu0 0
      %986 = vmatprep.subr.bf16.mxu0 0
      %987 = vmatpush1.bf16.msra.mxu0 0
      %988 = vmatprep.subr.bf16.mxu0 0
      %989 = vmatpush1.bf16.msra.mxu0 0
      %990 = vmatprep.subr.bf16.mxu0 0
      %991 = vmatpush1.bf16.msra.mxu0 0
      %992 = vmatprep.subr.bf16.mxu0 0
      %993 = vmatpush1.bf16.msra.mxu0 0
      %994 = vmatprep.subr.bf16.mxu0 0
      %995 = vmatpush1.bf16.msra.mxu0 0
      %996 = vmatprep.subr.bf16.mxu0 0
      %997 = vmatpush1.bf16.msra.mxu0 0
      %998 = vmatprep.subr.bf16.mxu0 0
      %999 = vmatpush1.bf16.msra.mxu0 0
      %1000 = vmatprep.subr.bf16.mxu0 0
      %1001 = vmatpush1.bf16.msra.mxu0 0
      %1002 = vmatprep.subr.bf16.mxu0 0
      %1003 = vmatpush1.bf16.msra.mxu0 0
      %1004 = vmatprep.subr.bf16.mxu0 0
      %1005 = vmatpush1.bf16.msra.mxu0 0
      %1006 = vmatprep.mubr.bf16.mxu0 0
      %1007 = vmatmul.mubr.bf16.gmra.mrb[0].mxu0 %v972
      %v1008 = vpop.f32.mrb[0].mxu0
      %v1009 = vadd.f32 %v959, %v1008
      %v1010 = vpop.f32.mrb[0].mxu0
      %v1011 = vpop.f32.mrb[0].mxu0
      %v1012 = vadd.f32 %v964, %v1011
      %v1013 = vpop.f32.mrb[0].mxu0
      %1014 = vdwg.mxu0
      %vm1015 = vcmp.gt.f32.partialorder %v1009, 0.0
      %vm1016 = vcmp.gt.f32.partialorder %v1012, 0.0
      %v1017 = vmin.f32 %v1009, 0.0
      %v1018 = vmin.f32 %v1012, 0.0
      %v1019 = vmul.f32 %v1017, 1.442695
      %v1020 = vpow.pop %v1019
      %v1021 = vmul.f32 %v1018, 1.442695
      %v1022 = vpow.pop %v1021
      %v1023 = vsub.f32 %v1020, 1.0
      %v1024 = vsub.f32 %v1022, 1.0
      %v1025 = vsel %vm1015, %v1009, %v1023
      %v1026 = vsel %vm1016, %v1012, %v1024
      %v1027 = vpack.c.bf16 %v1026, %v1025
      %1029 = vrot.lane.b32.xlu0 %v1027, 8
      %v1030 = vpop.permute.xlu0 %1029
      %1032 = vst.msk [vmem:[#allocation2] sm:$0xff] %vm503, %v1030
      %s1033 = scalar_lea.vmem %s3, 24
      %v1034 = vld [vmem:[%s1033] sm:$0xf]
      %v1035 = vld [vmem:[%s1033 + $0x4] sm:$0xf]
      %v1036 = vld [vmem:[#allocation2] sm:$0xff]
      %s1037 = scalar_lea.vmem %s3, 32
      %v1038 = vld [vmem:[%s1037] sm:$0xf]
      %v1039 = vld [vmem:[%s1037 + $0x4] sm:$0xf]
      %v1042 = vunpack.c.l.b16 %v1038
      %v1043 = vunpack.c.l.b16 %v1039
      %v1044 = vpack.c.b16 %v1043, %v1042
      %1046 = vrot.lane.b32.xlu0 %v1036, 120
      %v1047 = vpop.permute.xlu0 %1046
      %v1050 = vsel %vm520, %v1044, 0
      %1052 = vmatprep.subr.bf16.mxu0 0
      %1053 = vmatpush1.bf16.msra.mxu0 %v1047
      %1054 = vmatprep.subr.bf16.mxu0 0
      %1055 = vmatpush1.bf16.msra.mxu0 0
      %1056 = vmatprep.subr.bf16.mxu0 0
      %1057 = vmatpush1.bf16.msra.mxu0 0
      %1058 = vmatprep.subr.bf16.mxu0 0
      %1059 = vmatpush1.bf16.msra.mxu0 0
      %1060 = vmatprep.subr.bf16.mxu0 0
      %1061 = vmatpush1.bf16.msra.mxu0 0
      %1062 = vmatprep.subr.bf16.mxu0 0
      %1063 = vmatpush1.bf16.msra.mxu0 0
      %1064 = vmatprep.subr.bf16.mxu0 0
      %1065 = vmatpush1.bf16.msra.mxu0 0
      %1066 = vmatprep.subr.bf16.mxu0 0
      %1067 = vmatpush1.bf16.msra.mxu0 0
      %1068 = vmatprep.subr.bf16.mxu0 0
      %1069 = vmatpush1.bf16.msra.mxu0 0
      %1070 = vmatprep.subr.bf16.mxu0 0
      %1071 = vmatpush1.bf16.msra.mxu0 0
      %1072 = vmatprep.subr.bf16.mxu0 0
      %1073 = vmatpush1.bf16.msra.mxu0 0
      %1074 = vmatprep.subr.bf16.mxu0 0
      %1075 = vmatpush1.bf16.msra.mxu0 0
      %1076 = vmatprep.subr.bf16.mxu0 0
      %1077 = vmatpush1.bf16.msra.mxu0 0
      %1078 = vmatprep.subr.bf16.mxu0 0
      %1079 = vmatpush1.bf16.msra.mxu0 0
      %1080 = vmatprep.subr.bf16.mxu0 0
      %1081 = vmatpush1.bf16.msra.mxu0 0
      %1082 = vmatprep.subr.bf16.mxu0 0
      %1083 = vmatpush1.bf16.msra.mxu0 0
      %1084 = vmatprep.mubr.bf16.mxu0 0
      %1085 = vmatmul.mubr.bf16.gmra.mrb[0].mxu0 %v1050
      %v1086 = vpop.f32.mrb[0].mxu0
      %v1087 = vadd.f32 0.0, %v1086
      %v1088 = vpop.f32.mrb[0].mxu0
      %v1089 = vpop.f32.mrb[0].mxu0
      %v1090 = vadd.f32 0.0, %v1089
      %v1091 = vpop.f32.mrb[0].mxu0
      %1092 = vdwg.mxu0
      %s1093 = scalar_lea.vmem %s3, 40
      %v1094 = vld [vmem:[%s1093] sm:$0xf]
      %v1095 = vld [vmem:[%s1093 + $0x4] sm:$0xf]
      %v1098 = vunpack.c.l.b16 %v1094
      %v1099 = vunpack.c.l.b16 %v1095
      %v1100 = vpack.c.b16 %v1099, %v1098
      %1101 = vrot.lane.b32.xlu0 %v1036, 118
      %v1102 = vpop.permute.xlu0 %1101
      %v1105 = vsel %vm520, %v1100, 0
      %1107 = vmatprep.subr.bf16.mxu0 0
      %1108 = vmatpush1.bf16.msra.mxu0 %v1102
      %1109 = vmatprep.subr.bf16.mxu0 0
      %1110 = vmatpush1.bf16.msra.mxu0 0
      %1111 = vmatprep.subr.bf16.mxu0 0
      %1112 = vmatpush1.bf16.msra.mxu0 0
      %1113 = vmatprep.subr.bf16.mxu0 0
      %1114 = vmatpush1.bf16.msra.mxu0 0
      %1115 = vmatprep.subr.bf16.mxu0 0
      %1116 = vmatpush1.bf16.msra.mxu0 0
      %1117 = vmatprep.subr.bf16.mxu0 0
      %1118 = vmatpush1.bf16.msra.mxu0 0
      %1119 = vmatprep.subr.bf16.mxu0 0
      %1120 = vmatpush1.bf16.msra.mxu0 0
      %1121 = vmatprep.subr.bf16.mxu0 0
      %1122 = vmatpush1.bf16.msra.mxu0 0
      %1123 = vmatprep.subr.bf16.mxu0 0
      %1124 = vmatpush1.bf16.msra.mxu0 0
      %1125 = vmatprep.subr.bf16.mxu0 0
      %1126 = vmatpush1.bf16.msra.mxu0 0
      %1127 = vmatprep.subr.bf16.mxu0 0
      %1128 = vmatpush1.bf16.msra.mxu0 0
      %1129 = vmatprep.subr.bf16.mxu0 0
      %1130 = vmatpush1.bf16.msra.mxu0 0
      %1131 = vmatprep.subr.bf16.mxu0 0
      %1132 = vmatpush1.bf16.msra.mxu0 0
      %1133 = vmatprep.subr.bf16.mxu0 0
      %1134 = vmatpush1.bf16.msra.mxu0 0
      %1135 = vmatprep.subr.bf16.mxu0 0
      %1136 = vmatpush1.bf16.msra.mxu0 0
      %1137 = vmatprep.subr.bf16.mxu0 0
      %1138 = vmatpush1.bf16.msra.mxu0 0
      %1139 = vmatprep.mubr.bf16.mxu0 0
      %1140 = vmatmul.mubr.bf16.gmra.mrb[0].mxu0 %v1105
      %v1141 = vpop.f32.mrb[0].mxu0
      %v1142 = vadd.f32 0.0, %v1141
      %v1143 = vpop.f32.mrb[0].mxu0
      %v1144 = vpop.f32.mrb[0].mxu0
      %v1145 = vadd.f32 0.0, %v1144
      %v1146 = vpop.f32.mrb[0].mxu0
      %1147 = vdwg.mxu0
      %v1150 = vunpack.c.l.b16 %v1034
      %v1151 = vunpack.c.l.b16 %v1035
      %v1152 = vpack.c.b16 %v1151, %v1150
      %1153 = vrot.lane.b32.xlu0 %v1036, 122
      %v1154 = vpop.permute.xlu0 %1153
      %v1157 = vsel %vm520, %v1152, 0
      %1159 = vmatprep.subr.bf16.mxu0 0
      %1160 = vmatpush1.bf16.msra.mxu0 %v1154
      %1161 = vmatprep.subr.bf16.mxu0 0
      %1162 = vmatpush1.bf16.msra.mxu0 0
      %1163 = vmatprep.subr.bf16.mxu0 0
      %1164 = vmatpush1.bf16.msra.mxu0 0
      %1165 = vmatprep.subr.bf16.mxu0 0
      %1166 = vmatpush1.bf16.msra.mxu0 0
      %1167 = vmatprep.subr.bf16.mxu0 0
      %1168 = vmatpush1.bf16.msra.mxu0 0
      %1169 = vmatprep.subr.bf16.mxu0 0
      %1170 = vmatpush1.bf16.msra.mxu0 0
      %1171 = vmatprep.subr.bf16.mxu0 0
      %1172 = vmatpush1.bf16.msra.mxu0 0
      %1173 = vmatprep.subr.bf16.mxu0 0
      %1174 = vmatpush1.bf16.msra.mxu0 0
      %1175 = vmatprep.subr.bf16.mxu0 0
      %1176 = vmatpush1.bf16.msra.mxu0 0
      %1177 = vmatprep.subr.bf16.mxu0 0
      %1178 = vmatpush1.bf16.msra.mxu0 0
      %1179 = vmatprep.subr.bf16.mxu0 0
      %1180 = vmatpush1.bf16.msra.mxu0 0
      %1181 = vmatprep.subr.bf16.mxu0 0
      %1182 = vmatpush1.bf16.msra.mxu0 0
      %1183 = vmatprep.subr.bf16.mxu0 0
      %1184 = vmatpush1.bf16.msra.mxu0 0
      %1185 = vmatprep.subr.bf16.mxu0 0
      %1186 = vmatpush1.bf16.msra.mxu0 0
      %1187 = vmatprep.subr.bf16.mxu0 0
      %1188 = vmatpush1.bf16.msra.mxu0 0
      %1189 = vmatprep.subr.bf16.mxu0 0
      %1190 = vmatpush1.bf16.msra.mxu0 0
      %1191 = vmatprep.mubr.bf16.mxu0 0
      %1192 = vmatmul.mubr.bf16.gmra.mrb[0].mxu0 %v1157
      %v1193 = vpop.f32.mrb[0].mxu0
      %v1194 = vadd.f32 %v1087, %v1193
      %v1195 = vpop.f32.mrb[0].mxu0
      %v1196 = vpop.f32.mrb[0].mxu0
      %v1197 = vadd.f32 %v1090, %v1196
      %v1198 = vpop.f32.mrb[0].mxu0
      %1199 = vdwg.mxu0
      %v1200 = vadd.f32 %v1194, %v1142
      %v1201 = vadd.f32 %v1197, %v1145
      %s1202 = scalar_lea.vmem %s4, 16
      %v1203 = vld [vmem:[%s1202] sm:$0xff]
      %v1204 = vld [vmem:[%s1202 + $0x8] sm:$0xff]
      %1206 = vset.pattern.permute.xlu0 0
      %1207 = vperm.xlu0 %1206, %v1203
      %v1208 = vpop.permute.xlu0 %1207
      %1211 = vset.pattern.permute.xlu0 0
      %1212 = vperm.xlu0 %1211, %v1204
      %v1213 = vpop.permute.xlu0 %1212
      %v1215 = vadd.f32 %v1200, %v1208
      %v1216 = vadd.f32 %v1201, %v1213
      %s1217 = scalar_lea.vmem %s5, 16
      %v1218 = vld [vmem:[%s1217] sm:$0xf]
      %v1219 = vld [vmem:[%s1217 + $0x4] sm:$0xf]
      %v1220 = vld [vmem:[%s1217 + $0x8] sm:$0xf]
      %v1221 = vld [vmem:[%s1217 + $0xc] sm:$0xf]
      %vm1222 = vcmp.gt.f32.partialorder %v1215, 0.0
      %vm1223 = vcmp.gt.f32.partialorder %v1216, 0.0
      %v1224 = vmin.f32 %v1215, 0.0
      %v1225 = vmin.f32 %v1216, 0.0
      %v1226 = vmul.f32 %v1224, 1.442695
      %v1227 = vpow.pop %v1226
      %v1228 = vmul.f32 %v1225, 1.442695
      %v1229 = vpow.pop %v1228
      %v1230 = vsub.f32 %v1227, 1.0
      %v1231 = vsub.f32 %v1229, 1.0
      %v1232 = vsel %vm1222, %v1215, %v1230
      %v1233 = vsel %vm1223, %v1216, %v1231
      %v1234 = vpack.c.bf16 %v1233, %v1232
      %s1235 = scalar_lea.vmem %s6, 32
      %v1236 = vld [vmem:[%s1235] sm:$0xff]
      %v1237 = vld [vmem:[%s1235 + $0x8] sm:$0xff]
      %v1238 = vld [vmem:[%s1235 + $0x10] sm:$0xff]
      %v1239 = vld [vmem:[%s1235 + $0x18] sm:$0xff]
      %1241 = vset.pattern.permute.xlu0 0
      %1242 = vperm.xlu0 %1241, %v1236
      %v1243 = vpop.permute.xlu0 %1242
      %1246 = vset.pattern.permute.xlu0 0
      %1247 = vperm.xlu0 %1246, %v1237
      %v1248 = vpop.permute.xlu0 %1247
      %1251 = vset.pattern.permute.xlu0 0
      %1252 = vperm.xlu0 %1251, %v1238
      %v1253 = vpop.permute.xlu0 %1252
      %1256 = vset.pattern.permute.xlu0 0
      %1257 = vperm.xlu0 %1256, %v1239
      %v1258 = vpop.permute.xlu0 %1257
      %v1264 = vunpack.c.l.b16 %v1218
      %v1265 = vunpack.c.l.b16 %v1219
      %v1266 = vunpack.c.l.b16 %v1220
      %v1267 = vunpack.c.l.b16 %v1221
      %v1268 = vpack.c.b16 %v1265, %v1264
      %v1269 = vpack.c.b16 %v1267, %v1266
      %v1271 = vsel %vm520, %v1268, 0
      %v1274 = vsel %vm520, %v1269, 0
      %1276 = vmatprep.subr.bf16.mxu0 0
      %1277 = vmatpush1.bf16.msra.mxu0 %v1234
      %1278 = vmatprep.subr.bf16.mxu0 0
      %1279 = vmatpush1.bf16.msra.mxu0 0
      %1280 = vmatprep.subr.bf16.mxu0 0
      %1281 = vmatpush1.bf16.msra.mxu0 0
      %1282 = vmatprep.subr.bf16.mxu0 0
      %1283 = vmatpush1.bf16.msra.mxu0 0
      %1284 = vmatprep.subr.bf16.mxu0 0
      %1285 = vmatpush1.bf16.msra.mxu0 0
      %1286 = vmatprep.subr.bf16.mxu0 0
      %1287 = vmatpush1.bf16.msra.mxu0 0
      %1288 = vmatprep.subr.bf16.mxu0 0
      %1289 = vmatpush1.bf16.msra.mxu0 0
      %1290 = vmatprep.subr.bf16.mxu0 0
      %1291 = vmatpush1.bf16.msra.mxu0 0
      %1292 = vmatprep.subr.bf16.mxu0 0
      %1293 = vmatpush1.bf16.msra.mxu0 0
      %1294 = vmatprep.subr.bf16.mxu0 0
      %1295 = vmatpush1.bf16.msra.mxu0 0
      %1296 = vmatprep.subr.bf16.mxu0 0
      %1297 = vmatpush1.bf16.msra.mxu0 0
      %1298 = vmatprep.subr.bf16.mxu0 0
      %1299 = vmatpush1.bf16.msra.mxu0 0
      %1300 = vmatprep.subr.bf16.mxu0 0
      %1301 = vmatpush1.bf16.msra.mxu0 0
      %1302 = vmatprep.subr.bf16.mxu0 0
      %1303 = vmatpush1.bf16.msra.mxu0 0
      %1304 = vmatprep.subr.bf16.mxu0 0
      %1305 = vmatpush1.bf16.msra.mxu0 0
      %1306 = vmatprep.subr.bf16.mxu0 0
      %1307 = vmatpush1.bf16.msra.mxu0 0
      %1308 = vmatprep.mubr.bf16.mxu0 0
      %1309 = vmatmul.mubr.bf16.gmra.mrb[0].mxu0 %v1271
      %v1310 = vpop.f32.mrb[0].mxu0
      %v1311 = vadd.f32 %v1243, %v1310
      %v1312 = vpop.f32.mrb[0].mxu0
      %v1313 = vpop.f32.mrb[0].mxu0
      %v1314 = vadd.f32 %v1248, %v1313
      %v1315 = vpop.f32.mrb[0].mxu0
      %1316 = vmatprep.mubr.bf16.mxu0 0
      %1317 = vmatmul.mubr.bf16.gmra.mrb[0].mxu0 %v1274
      %v1318 = vpop.f32.mrb[0].mxu0
      %v1319 = vadd.f32 %v1253, %v1318
      %v1320 = vpop.f32.mrb[0].mxu0
      %v1321 = vpop.f32.mrb[0].mxu0
      %v1322 = vadd.f32 %v1258, %v1321
      %v1323 = vpop.f32.mrb[0].mxu0
      %1324 = vdwg.mxu0
      %v1325 = vsel %vm520, %v1311, 0.0
      %1326 = vadd.xlane.f32.xlu0 %v1325
      %v1327 = vpop.xlane.xlu0 %1326
      %v1328 = vsel %vm520, %v1314, 0.0
      %1329 = vadd.xlane.f32.xlu0 %v1328
      %v1330 = vpop.xlane.xlu0 %1329
      %v1331 = vsel %vm520, %v1319, 0.0
      %1332 = vadd.xlane.f32.xlu0 %v1331
      %v1333 = vpop.xlane.xlu0 %1332
      %v1334 = vsel %vm520, %v1322, 0.0
      %1335 = vadd.xlane.f32.xlu0 %v1334
      %v1336 = vpop.xlane.xlu0 %1335
      %v1337 = vmul.f32 %v1327, %v806
      %v1338 = vmul.f32 %v1330, %v806
      %v1339 = vmul.f32 %v1333, %v806
      %v1340 = vmul.f32 %v1336, %v806
      %s1341 = scalar_lea.vmem %s7, 32
      %v1342 = vld [vmem:[%s1341] sm:$0xff]
      %v1343 = vld [vmem:[%s1341 + $0x8] sm:$0xff]
      %v1344 = vld [vmem:[%s1341 + $0x10] sm:$0xff]
      %v1345 = vld [vmem:[%s1341 + $0x18] sm:$0xff]
      %v1346 = vmul.f32 %v1342, %v1337
      %v1347 = vmul.f32 %v1343, %v1338
      %v1348 = vmul.f32 %v1344, %v1339
      %v1349 = vmul.f32 %v1345, %v1340
      %v1350 = vsel %vm819, %v1346, 0.0
      %v1351 = vsel %vm819, %v1347, 0.0
      %v1352 = vadd.f32 %v1350, %v1351
      %v1353 = vsel %vm819, %v1348, 0.0
      %v1354 = vadd.f32 %v1352, %v1353
      %v1355 = vsel %vm819, %v1349, 0.0
      %v1356 = vadd.f32 %v1354, %v1355
      %v1357 = vrot.slane %v1356, 4
      %v1358 = vadd.f32 %v1356, %v1357
      %v1359 = vrot.slane %v1358, 2
      %v1360 = vadd.f32 %v1358, %v1359
      %v1361 = vrot.slane %v1360, 1
      %v1362 = vadd.f32 %v1360, %v1361
      %s1363 = scalar_lea.vmem %s8, 1
      %v1364 = vld [vmem:[%s1363] sm:$0x1]
      %v1365 = vadd.f32 %v1362, %v1364
      %v1366 = vmax.f32 %v1365, 0.0
      %s1367 = scalar_lea.vmem %s9, 32
      %v1368 = vld [vmem:[%s1367] sm:$0xff]
      %v1369 = vld [vmem:[%s1367 + $0x8] sm:$0xff]
      %v1370 = vld [vmem:[%s1367 + $0x10] sm:$0xff]
      %v1371 = vld [vmem:[%s1367 + $0x18] sm:$0xff]
      %v1372 = vlaneseq
      %v1373 = vshrl.u32 %v1372, 7
      %v1374 = vsub.s32 0, %v1373
      %v1375 = vrot.slane %v1366, %v1374
      %v1376 = vmul.f32 %v1368, %v1375
      %v1377 = vmul.f32 %v1369, %v1375
      %v1378 = vmul.f32 %v1370, %v1375
      %v1379 = vmul.f32 %v1371, %v1375
      %v1380 = vsel %vm819, %v1376, 0.0
      %1381 = vadd.xlane.f32.xlu0 %v1380
      %v1382 = vpop.xlane.xlu0 %1381
      %v1383 = vsel %vm819, %v1377, 0.0
      %1384 = vadd.xlane.f32.xlu0 %v1383
      %v1385 = vpop.xlane.xlu0 %1384
      %v1386 = vsel %vm819, %v1378, 0.0
      %1387 = vadd.xlane.f32.xlu0 %v1386
      %v1388 = vpop.xlane.xlu0 %1387
      %v1389 = vsel %vm819, %v1379, 0.0
      %1390 = vadd.xlane.f32.xlu0 %v1389
      %v1391 = vpop.xlane.xlu0 %1390
      %s1392 = scalar_lea.vmem %s10, 32
      %v1393 = vld [vmem:[%s1392] sm:$0xff]
      %v1394 = vld [vmem:[%s1392 + $0x8] sm:$0xff]
      %v1395 = vld [vmem:[%s1392 + $0x10] sm:$0xff]
      %v1396 = vld [vmem:[%s1392 + $0x18] sm:$0xff]
      %v1397 = vadd.f32 %v1382, %v1393
      %v1398 = vadd.f32 %v1385, %v1394
      %v1399 = vadd.f32 %v1388, %v1395
      %v1400 = vadd.f32 %v1391, %v1396
      %v1401 = vmax.f32 %v1397, 0.0
      %v1402 = vmax.f32 %v1398, 0.0
      %v1403 = vmax.f32 %v1399, 0.0
      %v1404 = vmax.f32 %v1400, 0.0
      %v1405 = vxor.u32 %v1401, 2147483648
      %v1406 = vxor.u32 %v1402, 2147483648
      %v1407 = vxor.u32 %v1403, 2147483648
      %v1408 = vxor.u32 %v1404, 2147483648
      %v1409 = vmul.f32 %v1405, 1.442695
      %v1410 = vpow.pop %v1409
      %v1411 = vmul.f32 %v1406, 1.442695
      %v1412 = vpow.pop %v1411
      %v1413 = vmul.f32 %v1407, 1.442695
      %v1414 = vpow.pop %v1413
      %v1415 = vmul.f32 %v1408, 1.442695
      %v1416 = vpow.pop %v1415
      %v1417 = vadd.f32 %v1410, 1.0
      %v1418 = vadd.f32 %v1412, 1.0
      %v1419 = vadd.f32 %v1414, 1.0
      %v1420 = vadd.f32 %v1416, 1.0
      %v1421 = vrcp.pop %v1417
      %v1422 = vmul.f32 1.0, %v1421
      %v1423 = vrcp.pop %v1418
      %v1424 = vmul.f32 1.0, %v1423
      %v1425 = vrcp.pop %v1419
      %v1426 = vmul.f32 1.0, %v1425
      %v1427 = vrcp.pop %v1420
      %v1428 = vmul.f32 1.0, %v1427
      %1430 = vset.pattern.permute.xlu0 0
      %1431 = vperm.xlu0 %1430, %v1422
      %v1432 = vpop.permute.xlu0 %1431
      %1435 = vset.pattern.permute.xlu0 0
      %1436 = vperm.xlu0 %1435, %v1424
      %v1437 = vpop.permute.xlu0 %1436
      %1440 = vset.pattern.permute.xlu0 0
      %1441 = vperm.xlu0 %1440, %v1426
      %v1442 = vpop.permute.xlu0 %1441
      %1445 = vset.pattern.permute.xlu0 0
      %1446 = vperm.xlu0 %1445, %v1428
      %v1447 = vpop.permute.xlu0 %1446
      %v1449 = vmul.f32 %v1311, %v1432
      %v1450 = vmul.f32 %v1314, %v1437
      %v1451 = vmul.f32 %v1319, %v1442
      %v1452 = vmul.f32 %v1322, %v1447
      %v1453 = vadd.f32 %v1449, %v920
      %v1454 = vadd.f32 %v1450, %v921
      %v1455 = vadd.f32 %v1451, %v922
      %v1456 = vadd.f32 %v1452, %v923
      %s1457 = scalar_lea.vmem %s1, 16
      %v1458 = vld [vmem:[%s1457] sm:$0xf]
      %v1459 = vld [vmem:[%s1457 + $0x4] sm:$0xf]
      %vm1460 = vcmp.gt.f32.partialorder %v1453, 0.0
      %vm1461 = vcmp.gt.f32.partialorder %v1454, 0.0
      %vm1462 = vcmp.gt.f32.partialorder %v1455, 0.0
      %vm1463 = vcmp.gt.f32.partialorder %v1456, 0.0
      %v1464 = vmin.f32 %v1453, 0.0
      %v1465 = vmin.f32 %v1454, 0.0
      %v1466 = vmin.f32 %v1455, 0.0
      %v1467 = vmin.f32 %v1456, 0.0
      %v1468 = vmul.f32 %v1464, 1.442695
      %v1469 = vpow.pop %v1468
      %v1470 = vmul.f32 %v1465, 1.442695
      %v1471 = vpow.pop %v1470
      %v1472 = vmul.f32 %v1466, 1.442695
      %v1473 = vpow.pop %v1472
      %v1474 = vmul.f32 %v1467, 1.442695
      %v1475 = vpow.pop %v1474
      %v1476 = vsub.f32 %v1469, 1.0
      %v1477 = vsub.f32 %v1471, 1.0
      %v1478 = vsub.f32 %v1473, 1.0
      %v1479 = vsub.f32 %v1475, 1.0
      %v1480 = vsel %vm1460, %v1453, %v1476
      %v1481 = vsel %vm1461, %v1454, %v1477
      %v1482 = vsel %vm1462, %v1455, %v1478
      %v1483 = vsel %vm1463, %v1456, %v1479
      %v1484 = vpack.c.bf16 %v1481, %v1480
      %v1485 = vpack.c.bf16 %v1483, %v1482
      %s1486 = scalar_lea.vmem %s2, 32
      %v1487 = vld [vmem:[%s1486] sm:$0xff]
      %v1488 = vld [vmem:[%s1486 + $0x8] sm:$0xff]
      %1490 = vset.pattern.permute.xlu0 0
      %1491 = vperm.xlu0 %1490, %v1487
      %v1492 = vpop.permute.xlu0 %1491
      %1495 = vset.pattern.permute.xlu0 0
      %1496 = vperm.xlu0 %1495, %v1488
      %v1497 = vpop.permute.xlu0 %1496
      %v1501 = vunpack.c.l.b16 %v1458
      %v1502 = vunpack.c.l.b16 %v1459
      %v1503 = vpack.c.b16 %v1502, %v1501
      %v1505 = vsel %vm441, %v1503, 0
      %1507 = vmatprep.subr.bf16.mxu0 0
      %1508 = vmatpush1.bf16.msra.mxu0 %v1484
      %1509 = vmatprep.subr.bf16.mxu0 0
      %1510 = vmatpush1.bf16.msra.mxu0 %v1485
      %1511 = vmatprep.subr.bf16.mxu0 0
      %1512 = vmatpush1.bf16.msra.mxu0 0
      %1513 = vmatprep.subr.bf16.mxu0 0
      %1514 = vmatpush1.bf16.msra.mxu0 0
      %1515 = vmatprep.subr.bf16.mxu0 0
      %1516 = vmatpush1.bf16.msra.mxu0 0
      %1517 = vmatprep.subr.bf16.mxu0 0
      %1518 = vmatpush1.bf16.msra.mxu0 0
      %1519 = vmatprep.subr.bf16.mxu0 0
      %1520 = vmatpush1.bf16.msra.mxu0 0
      %1521 = vmatprep.subr.bf16.mxu0 0
      %1522 = vmatpush1.bf16.msra.mxu0 0
      %1523 = vmatprep.subr.bf16.mxu0 0
      %1524 = vmatpush1.bf16.msra.mxu0 0
      %1525 = vmatprep.subr.bf16.mxu0 0
      %1526 = vmatpush1.bf16.msra.mxu0 0
      %1527 = vmatprep.subr.bf16.mxu0 0
      %1528 = vmatpush1.bf16.msra.mxu0 0
      %1529 = vmatprep.subr.bf16.mxu0 0
      %1530 = vmatpush1.bf16.msra.mxu0 0
      %1531 = vmatprep.subr.bf16.mxu0 0
      %1532 = vmatpush1.bf16.msra.mxu0 0
      %1533 = vmatprep.subr.bf16.mxu0 0
      %1534 = vmatpush1.bf16.msra.mxu0 0
      %1535 = vmatprep.subr.bf16.mxu0 0
      %1536 = vmatpush1.bf16.msra.mxu0 0
      %1537 = vmatprep.subr.bf16.mxu0 0
      %1538 = vmatpush1.bf16.msra.mxu0 0
      %1539 = vmatprep.mubr.bf16.mxu0 0
      %1540 = vmatmul.mubr.bf16.gmra.mrb[0].mxu0 %v1505
      %v1541 = vpop.f32.mrb[0].mxu0
      %v1542 = vadd.f32 %v1492, %v1541
      %v1543 = vpop.f32.mrb[0].mxu0
      %v1544 = vpop.f32.mrb[0].mxu0
      %v1545 = vadd.f32 %v1497, %v1544
      %v1546 = vpop.f32.mrb[0].mxu0
      %1547 = vdwg.mxu0
      %vm1548 = vcmp.gt.f32.partialorder %v1542, 0.0
      %vm1549 = vcmp.gt.f32.partialorder %v1545, 0.0
      %v1550 = vmin.f32 %v1542, 0.0
      %v1551 = vmin.f32 %v1545, 0.0
      %v1552 = vmul.f32 %v1550, 1.442695
      %v1553 = vpow.pop %v1552
      %v1554 = vmul.f32 %v1551, 1.442695
      %v1555 = vpow.pop %v1554
      %v1556 = vsub.f32 %v1553, 1.0
      %v1557 = vsub.f32 %v1555, 1.0
      %v1558 = vsel %vm1548, %v1542, %v1556
      %v1559 = vsel %vm1549, %v1545, %v1557
      %v1560 = vpack.c.bf16 %v1559, %v1558
      %1562 = vrot.lane.b32.xlu0 %v1560, 8
      %v1563 = vpop.permute.xlu0 %1562
      %1565 = vst.msk [vmem:[#allocation2] sm:$0xff] %vm503, %v1563
      %s1566 = scalar_lea.vmem %s3, 48
      %v1567 = vld [vmem:[%s1566] sm:$0xf]
      %v1568 = vld [vmem:[%s1566 + $0x4] sm:$0xf]
      %v1569 = vld [vmem:[#allocation2] sm:$0xff]
      %s1570 = scalar_lea.vmem %s3, 56
      %v1571 = vld [vmem:[%s1570] sm:$0xf]
      %v1572 = vld [vmem:[%s1570 + $0x4] sm:$0xf]
      %v1575 = vunpack.c.l.b16 %v1571
      %v1576 = vunpack.c.l.b16 %v1572
      %v1577 = vpack.c.b16 %v1576, %v1575
      %1579 = vrot.lane.b32.xlu0 %v1569, 120
      %v1580 = vpop.permute.xlu0 %1579
      %v1583 = vsel %vm520, %v1577, 0
      %1585 = vmatprep.subr.bf16.mxu0 0
      %1586 = vmatpush1.bf16.msra.mxu0 %v1580
      %1587 = vmatprep.subr.bf16.mxu0 0
      %1588 = vmatpush1.bf16.msra.mxu0 0
      %1589 = vmatprep.subr.bf16.mxu0 0
      %1590 = vmatpush1.bf16.msra.mxu0 0
      %1591 = vmatprep.subr.bf16.mxu0 0
      %1592 = vmatpush1.bf16.msra.mxu0 0
      %1593 = vmatprep.subr.bf16.mxu0 0
      %1594 = vmatpush1.bf16.msra.mxu0 0
      %1595 = vmatprep.subr.bf16.mxu0 0
      %1596 = vmatpush1.bf16.msra.mxu0 0
      %1597 = vmatprep.subr.bf16.mxu0 0
      %1598 = vmatpush1.bf16.msra.mxu0 0
      %1599 = vmatprep.subr.bf16.mxu0 0
      %1600 = vmatpush1.bf16.msra.mxu0 0
      %1601 = vmatprep.subr.bf16.mxu0 0
      %1602 = vmatpush1.bf16.msra.mxu0 0
      %1603 = vmatprep.subr.bf16.mxu0 0
      %1604 = vmatpush1.bf16.msra.mxu0 0
      %1605 = vmatprep.subr.bf16.mxu0 0
      %1606 = vmatpush1.bf16.msra.mxu0 0
      %1607 = vmatprep.subr.bf16.mxu0 0
      %1608 = vmatpush1.bf16.msra.mxu0 0
      %1609 = vmatprep.subr.bf16.mxu0 0
      %1610 = vmatpush1.bf16.msra.mxu0 0
      %1611 = vmatprep.subr.bf16.mxu0 0
      %1612 = vmatpush1.bf16.msra.mxu0 0
      %1613 = vmatprep.subr.bf16.mxu0 0
      %1614 = vmatpush1.bf16.msra.mxu0 0
      %1615 = vmatprep.subr.bf16.mxu0 0
      %1616 = vmatpush1.bf16.msra.mxu0 0
      %1617 = vmatprep.mubr.bf16.mxu0 0
      %1618 = vmatmul.mubr.bf16.gmra.mrb[0].mxu0 %v1583
      %v1619 = vpop.f32.mrb[0].mxu0
      %v1620 = vadd.f32 0.0, %v1619
      %v1621 = vpop.f32.mrb[0].mxu0
      %v1622 = vpop.f32.mrb[0].mxu0
      %v1623 = vadd.f32 0.0, %v1622
      %v1624 = vpop.f32.mrb[0].mxu0
      %1625 = vdwg.mxu0
      %s1626 = scalar_lea.vmem %s3, 64
      %v1627 = vld [vmem:[%s1626] sm:$0xf]
      %v1628 = vld [vmem:[%s1626 + $0x4] sm:$0xf]
      %v1631 = vunpack.c.l.b16 %v1627
      %v1632 = vunpack.c.l.b16 %v1628
      %v1633 = vpack.c.b16 %v1632, %v1631
      %1634 = vrot.lane.b32.xlu0 %v1569, 116
      %v1635 = vpop.permute.xlu0 %1634
      %v1638 = vsel %vm520, %v1633, 0
      %1640 = vmatprep.subr.bf16.mxu0 0
      %1641 = vmatpush1.bf16.msra.mxu0 %v1635
      %1642 = vmatprep.subr.bf16.mxu0 0
      %1643 = vmatpush1.bf16.msra.mxu0 0
      %1644 = vmatprep.subr.bf16.mxu0 0
      %1645 = vmatpush1.bf16.msra.mxu0 0
      %1646 = vmatprep.subr.bf16.mxu0 0
      %1647 = vmatpush1.bf16.msra.mxu0 0
      %1648 = vmatprep.subr.bf16.mxu0 0
      %1649 = vmatpush1.bf16.msra.mxu0 0
      %1650 = vmatprep.subr.bf16.mxu0 0
      %1651 = vmatpush1.bf16.msra.mxu0 0
      %1652 = vmatprep.subr.bf16.mxu0 0
      %1653 = vmatpush1.bf16.msra.mxu0 0
      %1654 = vmatprep.subr.bf16.mxu0 0
      %1655 = vmatpush1.bf16.msra.mxu0 0
      %1656 = vmatprep.subr.bf16.mxu0 0
      %1657 = vmatpush1.bf16.msra.mxu0 0
      %1658 = vmatprep.subr.bf16.mxu0 0
      %1659 = vmatpush1.bf16.msra.mxu0 0
      %1660 = vmatprep.subr.bf16.mxu0 0
      %1661 = vmatpush1.bf16.msra.mxu0 0
      %1662 = vmatprep.subr.bf16.mxu0 0
      %1663 = vmatpush1.bf16.msra.mxu0 0
      %1664 = vmatprep.subr.bf16.mxu0 0
      %1665 = vmatpush1.bf16.msra.mxu0 0
      %1666 = vmatprep.subr.bf16.mxu0 0
      %1667 = vmatpush1.bf16.msra.mxu0 0
      %1668 = vmatprep.subr.bf16.mxu0 0
      %1669 = vmatpush1.bf16.msra.mxu0 0
      %1670 = vmatprep.subr.bf16.mxu0 0
      %1671 = vmatpush1.bf16.msra.mxu0 0
      %1672 = vmatprep.mubr.bf16.mxu0 0
      %1673 = vmatmul.mubr.bf16.gmra.mrb[0].mxu0 %v1638
      %v1674 = vpop.f32.mrb[0].mxu0
      %v1675 = vadd.f32 0.0, %v1674
      %v1676 = vpop.f32.mrb[0].mxu0
      %v1677 = vpop.f32.mrb[0].mxu0
      %v1678 = vadd.f32 0.0, %v1677
      %v1679 = vpop.f32.mrb[0].mxu0
      %1680 = vdwg.mxu0
      %v1683 = vunpack.c.l.b16 %v1567
      %v1684 = vunpack.c.l.b16 %v1568
      %v1685 = vpack.c.b16 %v1684, %v1683
      %1686 = vrot.lane.b32.xlu0 %v1569, 124
      %v1687 = vpop.permute.xlu0 %1686
      %v1690 = vsel %vm520, %v1685, 0
      %1692 = vmatprep.subr.bf16.mxu0 0
      %1693 = vmatpush1.bf16.msra.mxu0 %v1687
      %1694 = vmatprep.subr.bf16.mxu0 0
      %1695 = vmatpush1.bf16.msra.mxu0 0
      %1696 = vmatprep.subr.bf16.mxu0 0
      %1697 = vmatpush1.bf16.msra.mxu0 0
      %1698 = vmatprep.subr.bf16.mxu0 0
      %1699 = vmatpush1.bf16.msra.mxu0 0
      %1700 = vmatprep.subr.bf16.mxu0 0
      %1701 = vmatpush1.bf16.msra.mxu0 0
      %1702 = vmatprep.subr.bf16.mxu0 0
      %1703 = vmatpush1.bf16.msra.mxu0 0
      %1704 = vmatprep.subr.bf16.mxu0 0
      %1705 = vmatpush1.bf16.msra.mxu0 0
      %1706 = vmatprep.subr.bf16.mxu0 0
      %1707 = vmatpush1.bf16.msra.mxu0 0
      %1708 = vmatprep.subr.bf16.mxu0 0
      %1709 = vmatpush1.bf16.msra.mxu0 0
      %1710 = vmatprep.subr.bf16.mxu0 0
      %1711 = vmatpush1.bf16.msra.mxu0 0
      %1712 = vmatprep.subr.bf16.mxu0 0
      %1713 = vmatpush1.bf16.msra.mxu0 0
      %1714 = vmatprep.subr.bf16.mxu0 0
      %1715 = vmatpush1.bf16.msra.mxu0 0
      %1716 = vmatprep.subr.bf16.mxu0 0
      %1717 = vmatpush1.bf16.msra.mxu0 0
      %1718 = vmatprep.subr.bf16.mxu0 0
      %1719 = vmatpush1.bf16.msra.mxu0 0
      %1720 = vmatprep.subr.bf16.mxu0 0
      %1721 = vmatpush1.bf16.msra.mxu0 0
      %1722 = vmatprep.subr.bf16.mxu0 0
      %1723 = vmatpush1.bf16.msra.mxu0 0
      %1724 = vmatprep.mubr.bf16.mxu0 0
      %1725 = vmatmul.mubr.bf16.gmra.mrb[0].mxu0 %v1690
      %v1726 = vpop.f32.mrb[0].mxu0
      %v1727 = vadd.f32 %v1620, %v1726
      %v1728 = vpop.f32.mrb[0].mxu0
      %v1729 = vpop.f32.mrb[0].mxu0
      %v1730 = vadd.f32 %v1623, %v1729
      %v1731 = vpop.f32.mrb[0].mxu0
      %1732 = vdwg.mxu0
      %v1733 = vadd.f32 %v1727, %v1675
      %v1734 = vadd.f32 %v1730, %v1678
      %s1735 = scalar_lea.vmem %s4, 32
      %v1736 = vld [vmem:[%s1735] sm:$0xff]
      %v1737 = vld [vmem:[%s1735 + $0x8] sm:$0xff]
      %1739 = vset.pattern.permute.xlu0 0
      %1740 = vperm.xlu0 %1739, %v1736
      %v1741 = vpop.permute.xlu0 %1740
      %1744 = vset.pattern.permute.xlu0 0
      %1745 = vperm.xlu0 %1744, %v1737
      %v1746 = vpop.permute.xlu0 %1745
      %v1748 = vadd.f32 %v1733, %v1741
      %v1749 = vadd.f32 %v1734, %v1746
      %s1750 = scalar_lea.vmem %s5, 32
      %v1751 = vld [vmem:[%s1750] sm:$0xf]
      %v1752 = vld [vmem:[%s1750 + $0x4] sm:$0xf]
      %v1753 = vld [vmem:[%s1750 + $0x8] sm:$0xf]
      %v1754 = vld [vmem:[%s1750 + $0xc] sm:$0xf]
      %vm1755 = vcmp.gt.f32.partialorder %v1748, 0.0
      %vm1756 = vcmp.gt.f32.partialorder %v1749, 0.0
      %v1757 = vmin.f32 %v1748, 0.0
      %v1758 = vmin.f32 %v1749, 0.0
      %v1759 = vmul.f32 %v1757, 1.442695
      %v1760 = vpow.pop %v1759
      %v1761 = vmul.f32 %v1758, 1.442695
      %v1762 = vpow.pop %v1761
      %v1763 = vsub.f32 %v1760, 1.0
      %v1764 = vsub.f32 %v1762, 1.0
      %v1765 = vsel %vm1755, %v1748, %v1763
      %v1766 = vsel %vm1756, %v1749, %v1764
      %v1767 = vpack.c.bf16 %v1766, %v1765
      %s1768 = scalar_lea.vmem %s6, 64
      %v1769 = vld [vmem:[%s1768] sm:$0xff]
      %v1770 = vld [vmem:[%s1768 + $0x8] sm:$0xff]
      %v1771 = vld [vmem:[%s1768 + $0x10] sm:$0xff]
      %v1772 = vld [vmem:[%s1768 + $0x18] sm:$0xff]
      %1774 = vset.pattern.permute.xlu0 0
      %1775 = vperm.xlu0 %1774, %v1769
      %v1776 = vpop.permute.xlu0 %1775
      %1779 = vset.pattern.permute.xlu0 0
      %1780 = vperm.xlu0 %1779, %v1770
      %v1781 = vpop.permute.xlu0 %1780
      %1784 = vset.pattern.permute.xlu0 0
      %1785 = vperm.xlu0 %1784, %v1771
      %v1786 = vpop.permute.xlu0 %1785
      %1789 = vset.pattern.permute.xlu0 0
      %1790 = vperm.xlu0 %1789, %v1772
      %v1791 = vpop.permute.xlu0 %1790
      %v1797 = vunpack.c.l.b16 %v1751
      %v1798 = vunpack.c.l.b16 %v1752
      %v1799 = vunpack.c.l.b16 %v1753
      %v1800 = vunpack.c.l.b16 %v1754
      %v1801 = vpack.c.b16 %v1798, %v1797
      %v1802 = vpack.c.b16 %v1800, %v1799
      %v1804 = vsel %vm520, %v1801, 0
      %v1807 = vsel %vm520, %v1802, 0
      %1809 = vmatprep.subr.bf16.mxu0 0
      %1810 = vmatpush1.bf16.msra.mxu0 %v1767
      %1811 = vmatprep.subr.bf16.mxu0 0
      %1812 = vmatpush1.bf16.msra.mxu0 0
      %1813 = vmatprep.subr.bf16.mxu0 0
      %1814 = vmatpush1.bf16.msra.mxu0 0
      %1815 = vmatprep.subr.bf16.mxu0 0
      %1816 = vmatpush1.bf16.msra.mxu0 0
      %1817 = vmatprep.subr.bf16.mxu0 0
      %1818 = vmatpush1.bf16.msra.mxu0 0
      %1819 = vmatprep.subr.bf16.mxu0 0
      %1820 = vmatpush1.bf16.msra.mxu0 0
      %1821 = vmatprep.subr.bf16.mxu0 0
      %1822 = vmatpush1.bf16.msra.mxu0 0
      %1823 = vmatprep.subr.bf16.mxu0 0
      %1824 = vmatpush1.bf16.msra.mxu0 0
      %1825 = vmatprep.subr.bf16.mxu0 0
      %1826 = vmatpush1.bf16.msra.mxu0 0
      %1827 = vmatprep.subr.bf16.mxu0 0
      %1828 = vmatpush1.bf16.msra.mxu0 0
      %1829 = vmatprep.subr.bf16.mxu0 0
      %1830 = vmatpush1.bf16.msra.mxu0 0
      %1831 = vmatprep.subr.bf16.mxu0 0
      %1832 = vmatpush1.bf16.msra.mxu0 0
      %1833 = vmatprep.subr.bf16.mxu0 0
      %1834 = vmatpush1.bf16.msra.mxu0 0
      %1835 = vmatprep.subr.bf16.mxu0 0
      %1836 = vmatpush1.bf16.msra.mxu0 0
      %1837 = vmatprep.subr.bf16.mxu0 0
      %1838 = vmatpush1.bf16.msra.mxu0 0
      %1839 = vmatprep.subr.bf16.mxu0 0
      %1840 = vmatpush1.bf16.msra.mxu0 0
      %1841 = vmatprep.mubr.bf16.mxu0 0
      %1842 = vmatmul.mubr.bf16.gmra.mrb[0].mxu0 %v1804
      %v1843 = vpop.f32.mrb[0].mxu0
      %v1844 = vadd.f32 %v1776, %v1843
      %v1845 = vpop.f32.mrb[0].mxu0
      %v1846 = vpop.f32.mrb[0].mxu0
      %v1847 = vadd.f32 %v1781, %v1846
      %v1848 = vpop.f32.mrb[0].mxu0
      %1849 = vmatprep.mubr.bf16.mxu0 0
      %1850 = vmatmul.mubr.bf16.gmra.mrb[0].mxu0 %v1807
      %v1851 = vpop.f32.mrb[0].mxu0
      %v1852 = vadd.f32 %v1786, %v1851
      %v1853 = vpop.f32.mrb[0].mxu0
      %v1854 = vpop.f32.mrb[0].mxu0
      %v1855 = vadd.f32 %v1791, %v1854
      %v1856 = vpop.f32.mrb[0].mxu0
      %1857 = vdwg.mxu0
      %v1858 = vsel %vm520, %v1844, 0.0
      %1859 = vadd.xlane.f32.xlu0 %v1858
      %v1860 = vpop.xlane.xlu0 %1859
      %v1861 = vsel %vm520, %v1847, 0.0
      %1862 = vadd.xlane.f32.xlu0 %v1861
      %v1863 = vpop.xlane.xlu0 %1862
      %v1864 = vsel %vm520, %v1852, 0.0
      %1865 = vadd.xlane.f32.xlu0 %v1864
      %v1866 = vpop.xlane.xlu0 %1865
      %v1867 = vsel %vm520, %v1855, 0.0
      %1868 = vadd.xlane.f32.xlu0 %v1867
      %v1869 = vpop.xlane.xlu0 %1868
      %v1870 = vmul.f32 %v1860, %v806
      %v1871 = vmul.f32 %v1863, %v806
      %v1872 = vmul.f32 %v1866, %v806
      %v1873 = vmul.f32 %v1869, %v806
      %s1874 = scalar_lea.vmem %s7, 64
      %v1875 = vld [vmem:[%s1874] sm:$0xff]
      %v1876 = vld [vmem:[%s1874 + $0x8] sm:$0xff]
      %v1877 = vld [vmem:[%s1874 + $0x10] sm:$0xff]
      %v1878 = vld [vmem:[%s1874 + $0x18] sm:$0xff]
      %v1879 = vmul.f32 %v1875, %v1870
      %v1880 = vmul.f32 %v1876, %v1871
      %v1881 = vmul.f32 %v1877, %v1872
      %v1882 = vmul.f32 %v1878, %v1873
      %v1883 = vsel %vm819, %v1879, 0.0
      %v1884 = vsel %vm819, %v1880, 0.0
      %v1885 = vadd.f32 %v1883, %v1884
      %v1886 = vsel %vm819, %v1881, 0.0
      %v1887 = vadd.f32 %v1885, %v1886
      %v1888 = vsel %vm819, %v1882, 0.0
      %v1889 = vadd.f32 %v1887, %v1888
      %v1890 = vrot.slane %v1889, 4
      %v1891 = vadd.f32 %v1889, %v1890
      %v1892 = vrot.slane %v1891, 2
      %v1893 = vadd.f32 %v1891, %v1892
      %v1894 = vrot.slane %v1893, 1
      %v1895 = vadd.f32 %v1893, %v1894
      %s1896 = scalar_lea.vmem %s8, 2
      %v1897 = vld [vmem:[%s1896] sm:$0x1]
      %v1898 = vadd.f32 %v1895, %v1897
      %v1899 = vmax.f32 %v1898, 0.0
      %s1900 = scalar_lea.vmem %s9, 64
      %v1901 = vld [vmem:[%s1900] sm:$0xff]
      %v1902 = vld [vmem:[%s1900 + $0x8] sm:$0xff]
      %v1903 = vld [vmem:[%s1900 + $0x10] sm:$0xff]
      %v1904 = vld [vmem:[%s1900 + $0x18] sm:$0xff]
      %v1905 = vlaneseq
      %v1906 = vshrl.u32 %v1905, 7
      %v1907 = vsub.s32 0, %v1906
      %v1908 = vrot.slane %v1899, %v1907
      %v1909 = vmul.f32 %v1901, %v1908
      %v1910 = vmul.f32 %v1902, %v1908
      %v1911 = vmul.f32 %v1903, %v1908
      %v1912 = vmul.f32 %v1904, %v1908
      %v1913 = vsel %vm819, %v1909, 0.0
      %1914 = vadd.xlane.f32.xlu0 %v1913
      %v1915 = vpop.xlane.xlu0 %1914
      %v1916 = vsel %vm819, %v1910, 0.0
      %1917 = vadd.xlane.f32.xlu0 %v1916
      %v1918 = vpop.xlane.xlu0 %1917
      %v1919 = vsel %vm819, %v1911, 0.0
      %1920 = vadd.xlane.f32.xlu0 %v1919
      %v1921 = vpop.xlane.xlu0 %1920
      %v1922 = vsel %vm819, %v1912, 0.0
      %1923 = vadd.xlane.f32.xlu0 %v1922
      %v1924 = vpop.xlane.xlu0 %1923
      %s1925 = scalar_lea.vmem %s10, 64
      %v1926 = vld [vmem:[%s1925] sm:$0xff]
      %v1927 = vld [vmem:[%s1925 + $0x8] sm:$0xff]
      %v1928 = vld [vmem:[%s1925 + $0x10] sm:$0xff]
      %v1929 = vld [vmem:[%s1925 + $0x18] sm:$0xff]
      %v1930 = vadd.f32 %v1915, %v1926
      %v1931 = vadd.f32 %v1918, %v1927
      %v1932 = vadd.f32 %v1921, %v1928
      %v1933 = vadd.f32 %v1924, %v1929
      %v1934 = vmax.f32 %v1930, 0.0
      %v1935 = vmax.f32 %v1931, 0.0
      %v1936 = vmax.f32 %v1932, 0.0
      %v1937 = vmax.f32 %v1933, 0.0
      %v1938 = vxor.u32 %v1934, 2147483648
      %v1939 = vxor.u32 %v1935, 2147483648
      %v1940 = vxor.u32 %v1936, 2147483648
      %v1941 = vxor.u32 %v1937, 2147483648
      %v1942 = vmul.f32 %v1938, 1.442695
      %v1943 = vpow.pop %v1942
      %v1944 = vmul.f32 %v1939, 1.442695
      %v1945 = vpow.pop %v1944
      %v1946 = vmul.f32 %v1940, 1.442695
      %v1947 = vpow.pop %v1946
      %v1948 = vmul.f32 %v1941, 1.442695
      %v1949 = vpow.pop %v1948
      %v1950 = vadd.f32 %v1943, 1.0
      %v1951 = vadd.f32 %v1945, 1.0
      %v1952 = vadd.f32 %v1947, 1.0
      %v1953 = vadd.f32 %v1949, 1.0
      %v1954 = vrcp.pop %v1950
      %v1955 = vmul.f32 1.0, %v1954
      %v1956 = vrcp.pop %v1951
      %v1957 = vmul.f32 1.0, %v1956
      %v1958 = vrcp.pop %v1952
      %v1959 = vmul.f32 1.0, %v1958
      %v1960 = vrcp.pop %v1953
      %v1961 = vmul.f32 1.0, %v1960
      %1963 = vset.pattern.permute.xlu0 0
      %1964 = vperm.xlu0 %1963, %v1955
      %v1965 = vpop.permute.xlu0 %1964
      %1968 = vset.pattern.permute.xlu0 0
      %1969 = vperm.xlu0 %1968, %v1957
      %v1970 = vpop.permute.xlu0 %1969
      %1973 = vset.pattern.permute.xlu0 0
      %1974 = vperm.xlu0 %1973, %v1959
      %v1975 = vpop.permute.xlu0 %1974
      %1978 = vset.pattern.permute.xlu0 0
      %1979 = vperm.xlu0 %1978, %v1961
      %v1980 = vpop.permute.xlu0 %1979
      %v1982 = vmul.f32 %v1844, %v1965
      %v1983 = vmul.f32 %v1847, %v1970
      %v1984 = vmul.f32 %v1852, %v1975
      %v1985 = vmul.f32 %v1855, %v1980
      %v1986 = vadd.f32 %v1982, %v1453
      %v1987 = vadd.f32 %v1983, %v1454
      %v1988 = vadd.f32 %v1984, %v1455
      %v1989 = vadd.f32 %v1985, %v1456
      %s1990 = scalar_lea.vmem %s1, 24
      %v1991 = vld [vmem:[%s1990] sm:$0xf]
      %v1992 = vld [vmem:[%s1990 + $0x4] sm:$0xf]
      %vm1993 = vcmp.gt.f32.partialorder %v1986, 0.0
      %vm1994 = vcmp.gt.f32.partialorder %v1987, 0.0
      %vm1995 = vcmp.gt.f32.partialorder %v1988, 0.0
      %vm1996 = vcmp.gt.f32.partialorder %v1989, 0.0
      %v1997 = vmin.f32 %v1986, 0.0
      %v1998 = vmin.f32 %v1987, 0.0
      %v1999 = vmin.f32 %v1988, 0.0
      %v2000 = vmin.f32 %v1989, 0.0
      %v2001 = vmul.f32 %v1997, 1.442695
      %v2002 = vpow.pop %v2001
      %v2003 = vmul.f32 %v1998, 1.442695
      %v2004 = vpow.pop %v2003
      %v2005 = vmul.f32 %v1999, 1.442695
      %v2006 = vpow.pop %v2005
      %v2007 = vmul.f32 %v2000, 1.442695
      %v2008 = vpow.pop %v2007
      %v2009 = vsub.f32 %v2002, 1.0
      %v2010 = vsub.f32 %v2004, 1.0
      %v2011 = vsub.f32 %v2006, 1.0
      %v2012 = vsub.f32 %v2008, 1.0
      %v2013 = vsel %vm1993, %v1986, %v2009
      %v2014 = vsel %vm1994, %v1987, %v2010
      %v2015 = vsel %vm1995, %v1988, %v2011
      %v2016 = vsel %vm1996, %v1989, %v2012
      %v2017 = vpack.c.bf16 %v2014, %v2013
      %v2018 = vpack.c.bf16 %v2016, %v2015
      %s2019 = scalar_lea.vmem %s2, 48
      %v2020 = vld [vmem:[%s2019] sm:$0xff]
      %v2021 = vld [vmem:[%s2019 + $0x8] sm:$0xff]
      %2023 = vset.pattern.permute.xlu0 0
      %2024 = vperm.xlu0 %2023, %v2020
      %v2025 = vpop.permute.xlu0 %2024
      %2028 = vset.pattern.permute.xlu0 0
      %2029 = vperm.xlu0 %2028, %v2021
      %v2030 = vpop.permute.xlu0 %2029
      %v2034 = vunpack.c.l.b16 %v1991
      %v2035 = vunpack.c.l.b16 %v1992
      %v2036 = vpack.c.b16 %v2035, %v2034
      %v2038 = vsel %vm441, %v2036, 0
      %2040 = vmatprep.subr.bf16.mxu0 0
      %2041 = vmatpush1.bf16.msra.mxu0 %v2017
      %2042 = vmatprep.subr.bf16.mxu0 0
      %2043 = vmatpush1.bf16.msra.mxu0 %v2018
      %2044 = vmatprep.subr.bf16.mxu0 0
      %2045 = vmatpush1.bf16.msra.mxu0 0
      %2046 = vmatprep.subr.bf16.mxu0 0
      %2047 = vmatpush1.bf16.msra.mxu0 0
      %2048 = vmatprep.subr.bf16.mxu0 0
      %2049 = vmatpush1.bf16.msra.mxu0 0
      %2050 = vmatprep.subr.bf16.mxu0 0
      %2051 = vmatpush1.bf16.msra.mxu0 0
      %2052 = vmatprep.subr.bf16.mxu0 0
      %2053 = vmatpush1.bf16.msra.mxu0 0
      %2054 = vmatprep.subr.bf16.mxu0 0
      %2055 = vmatpush1.bf16.msra.mxu0 0
      %2056 = vmatprep.subr.bf16.mxu0 0
      %2057 = vmatpush1.bf16.msra.mxu0 0
      %2058 = vmatprep.subr.bf16.mxu0 0
      %2059 = vmatpush1.bf16.msra.mxu0 0
      %2060 = vmatprep.subr.bf16.mxu0 0
      %2061 = vmatpush1.bf16.msra.mxu0 0
      %2062 = vmatprep.subr.bf16.mxu0 0
      %2063 = vmatpush1.bf16.msra.mxu0 0
      %2064 = vmatprep.subr.bf16.mxu0 0
      %2065 = vmatpush1.bf16.msra.mxu0 0
      %2066 = vmatprep.subr.bf16.mxu0 0
      %2067 = vmatpush1.bf16.msra.mxu0 0
      %2068 = vmatprep.subr.bf16.mxu0 0
      %2069 = vmatpush1.bf16.msra.mxu0 0
      %2070 = vmatprep.subr.bf16.mxu0 0
      %2071 = vmatpush1.bf16.msra.mxu0 0
      %2072 = vmatprep.mubr.bf16.mxu0 0
      %2073 = vmatmul.mubr.bf16.gmra.mrb[0].mxu0 %v2038
      %v2074 = vpop.f32.mrb[0].mxu0
      %v2075 = vadd.f32 %v2025, %v2074
      %v2076 = vpop.f32.mrb[0].mxu0
      %v2077 = vpop.f32.mrb[0].mxu0
      %v2078 = vadd.f32 %v2030, %v2077
      %v2079 = vpop.f32.mrb[0].mxu0
      %2080 = vdwg.mxu0
      %vm2081 = vcmp.gt.f32.partialorder %v2075, 0.0
      %vm2082 = vcmp.gt.f32.partialorder %v2078, 0.0
      %v2083 = vmin.f32 %v2075, 0.0
      %v2084 = vmin.f32 %v2078, 0.0
      %v2085 = vmul.f32 %v2083, 1.442695
      %v2086 = vpow.pop %v2085
      %v2087 = vmul.f32 %v2084, 1.442695
      %v2088 = vpow.pop %v2087
      %v2089 = vsub.f32 %v2086, 1.0
      %v2090 = vsub.f32 %v2088, 1.0
      %v2091 = vsel %vm2081, %v2075, %v2089
      %v2092 = vsel %vm2082, %v2078, %v2090
      %v2093 = vpack.c.bf16 %v2092, %v2091
      %2095 = vrot.lane.b32.xlu0 %v2093, 8
      %v2096 = vpop.permute.xlu0 %2095
      %2098 = vst.msk [vmem:[#allocation2] sm:$0xff] %vm503, %v2096
      %s2099 = scalar_lea.vmem %s3, 72
      %v2100 = vld [vmem:[%s2099] sm:$0xf]
      %v2101 = vld [vmem:[%s2099 + $0x4] sm:$0xf]
      %v2102 = vld [vmem:[#allocation2] sm:$0xff]
      %s2103 = scalar_lea.vmem %s3, 80
      %v2104 = vld [vmem:[%s2103] sm:$0xf]
      %v2105 = vld [vmem:[%s2103 + $0x4] sm:$0xf]
      %v2108 = vunpack.c.l.b16 %v2104
      %v2109 = vunpack.c.l.b16 %v2105
      %v2110 = vpack.c.b16 %v2109, %v2108
      %2112 = vrot.lane.b32.xlu0 %v2102, 120
      %v2113 = vpop.permute.xlu0 %2112
      %v2116 = vsel %vm520, %v2110, 0
      %2118 = vmatprep.subr.bf16.mxu0 0
      %2119 = vmatpush1.bf16.msra.mxu0 %v2113
      %2120 = vmatprep.subr.bf16.mxu0 0
      %2121 = vmatpush1.bf16.msra.mxu0 0
      %2122 = vmatprep.subr.bf16.mxu0 0
      %2123 = vmatpush1.bf16.msra.mxu0 0
      %2124 = vmatprep.subr.bf16.mxu0 0
      %2125 = vmatpush1.bf16.msra.mxu0 0
      %2126 = vmatprep.subr.bf16.mxu0 0
      %2127 = vmatpush1.bf16.msra.mxu0 0
      %2128 = vmatprep.subr.bf16.mxu0 0
      %2129 = vmatpush1.bf16.msra.mxu0 0
      %2130 = vmatprep.subr.bf16.mxu0 0
      %2131 = vmatpush1.bf16.msra.mxu0 0
      %2132 = vmatprep.subr.bf16.mxu0 0
      %2133 = vmatpush1.bf16.msra.mxu0 0
      %2134 = vmatprep.subr.bf16.mxu0 0
      %2135 = vmatpush1.bf16.msra.mxu0 0
      %2136 = vmatprep.subr.bf16.mxu0 0
      %2137 = vmatpush1.bf16.msra.mxu0 0
      %2138 = vmatprep.subr.bf16.mxu0 0
      %2139 = vmatpush1.bf16.msra.mxu0 0
      %2140 = vmatprep.subr.bf16.mxu0 0
      %2141 = vmatpush1.bf16.msra.mxu0 0
      %2142 = vmatprep.subr.bf16.mxu0 0
      %2143 = vmatpush1.bf16.msra.mxu0 0
      %2144 = vmatprep.subr.bf16.mxu0 0
      %2145 = vmatpush1.bf16.msra.mxu0 0
      %2146 = vmatprep.subr.bf16.mxu0 0
      %2147 = vmatpush1.bf16.msra.mxu0 0
      %2148 = vmatprep.subr.bf16.mxu0 0
      %2149 = vmatpush1.bf16.msra.mxu0 0
      %2150 = vmatprep.mubr.bf16.mxu0 0
      %2151 = vmatmul.mubr.bf16.gmra.mrb[0].mxu0 %v2116
      %v2152 = vpop.f32.mrb[0].mxu0
      %v2153 = vadd.f32 0.0, %v2152
      %v2154 = vpop.f32.mrb[0].mxu0
      %v2155 = vpop.f32.mrb[0].mxu0
      %v2156 = vadd.f32 0.0, %v2155
      %v2157 = vpop.f32.mrb[0].mxu0
      %2158 = vdwg.mxu0
      %s2159 = scalar_lea.vmem %s3, 88
      %v2160 = vld [vmem:[%s2159] sm:$0xf]
      %v2161 = vld [vmem:[%s2159 + $0x4] sm:$0xf]
      %v2164 = vunpack.c.l.b16 %v2160
      %v2165 = vunpack.c.l.b16 %v2161
      %v2166 = vpack.c.b16 %v2165, %v2164
      %2167 = vrot.lane.b32.xlu0 %v2102, 112
      %v2168 = vpop.permute.xlu0 %2167
      %v2171 = vsel %vm520, %v2166, 0
      %2173 = vmatprep.subr.bf16.mxu0 0
      %2174 = vmatpush1.bf16.msra.mxu0 %v2168
      %2175 = vmatprep.subr.bf16.mxu0 0
      %2176 = vmatpush1.bf16.msra.mxu0 0
      %2177 = vmatprep.subr.bf16.mxu0 0
      %2178 = vmatpush1.bf16.msra.mxu0 0
      %2179 = vmatprep.subr.bf16.mxu0 0
      %2180 = vmatpush1.bf16.msra.mxu0 0
      %2181 = vmatprep.subr.bf16.mxu0 0
      %2182 = vmatpush1.bf16.msra.mxu0 0
      %2183 = vmatprep.subr.bf16.mxu0 0
      %2184 = vmatpush1.bf16.msra.mxu0 0
      %2185 = vmatprep.subr.bf16.mxu0 0
      %2186 = vmatpush1.bf16.msra.mxu0 0
      %2187 = vmatprep.subr.bf16.mxu0 0
      %2188 = vmatpush1.bf16.msra.mxu0 0
      %2189 = vmatprep.subr.bf16.mxu0 0
      %2190 = vmatpush1.bf16.msra.mxu0 0
      %2191 = vmatprep.subr.bf16.mxu0 0
      %2192 = vmatpush1.bf16.msra.mxu0 0
      %2193 = vmatprep.subr.bf16.mxu0 0
      %2194 = vmatpush1.bf16.msra.mxu0 0
      %2195 = vmatprep.subr.bf16.mxu0 0
      %2196 = vmatpush1.bf16.msra.mxu0 0
      %2197 = vmatprep.subr.bf16.mxu0 0
      %2198 = vmatpush1.bf16.msra.mxu0 0
      %2199 = vmatprep.subr.bf16.mxu0 0
      %2200 = vmatpush1.bf16.msra.mxu0 0
      %2201 = vmatprep.subr.bf16.mxu0 0
      %2202 = vmatpush1.bf16.msra.mxu0 0
      %2203 = vmatprep.subr.bf16.mxu0 0
      %2204 = vmatpush1.bf16.msra.mxu0 0
      %2205 = vmatprep.mubr.bf16.mxu0 0
      %2206 = vmatmul.mubr.bf16.gmra.mrb[0].mxu0 %v2171
      %v2207 = vpop.f32.mrb[0].mxu0
      %v2208 = vadd.f32 0.0, %v2207
      %v2209 = vpop.f32.mrb[0].mxu0
      %v2210 = vpop.f32.mrb[0].mxu0
      %v2211 = vadd.f32 0.0, %v2210
      %v2212 = vpop.f32.mrb[0].mxu0
      %2213 = vdwg.mxu0
      %v2216 = vunpack.c.l.b16 %v2100
      %v2217 = vunpack.c.l.b16 %v2101
      %v2218 = vpack.c.b16 %v2217, %v2216
      %v2220 = vsel %vm520, %v2218, 0
      %2222 = vmatprep.subr.bf16.mxu0 0
      %2223 = vmatpush1.bf16.msra.mxu0 %v2102
      %2224 = vmatprep.subr.bf16.mxu0 0
      %2225 = vmatpush1.bf16.msra.mxu0 0
      %2226 = vmatprep.subr.bf16.mxu0 0
      %2227 = vmatpush1.bf16.msra.mxu0 0
      %2228 = vmatprep.subr.bf16.mxu0 0
      %2229 = vmatpush1.bf16.msra.mxu0 0
      %2230 = vmatprep.subr.bf16.mxu0 0
      %2231 = vmatpush1.bf16.msra.mxu0 0
      %2232 = vmatprep.subr.bf16.mxu0 0
      %2233 = vmatpush1.bf16.msra.mxu0 0
      %2234 = vmatprep.subr.bf16.mxu0 0
      %2235 = vmatpush1.bf16.msra.mxu0 0
      %2236 = vmatprep.subr.bf16.mxu0 0
      %2237 = vmatpush1.bf16.msra.mxu0 0
      %2238 = vmatprep.subr.bf16.mxu0 0
      %2239 = vmatpush1.bf16.msra.mxu0 0
      %2240 = vmatprep.subr.bf16.mxu0 0
      %2241 = vmatpush1.bf16.msra.mxu0 0
      %2242 = vmatprep.subr.bf16.mxu0 0
      %2243 = vmatpush1.bf16.msra.mxu0 0
      %2244 = vmatprep.subr.bf16.mxu0 0
      %2245 = vmatpush1.bf16.msra.mxu0 0
      %2246 = vmatprep.subr.bf16.mxu0 0
      %2247 = vmatpush1.bf16.msra.mxu0 0
      %2248 = vmatprep.subr.bf16.mxu0 0
      %2249 = vmatpush1.bf16.msra.mxu0 0
      %2250 = vmatprep.subr.bf16.mxu0 0
      %2251 = vmatpush1.bf16.msra.mxu0 0
      %2252 = vmatprep.subr.bf16.mxu0 0
      %2253 = vmatpush1.bf16.msra.mxu0 0
      %2254 = vmatprep.mubr.bf16.mxu0 0
      %2255 = vmatmul.mubr.bf16.gmra.mrb[0].mxu0 %v2220
      %v2256 = vpop.f32.mrb[0].mxu0
      %v2257 = vadd.f32 %v2153, %v2256
      %v2258 = vpop.f32.mrb[0].mxu0
      %v2259 = vpop.f32.mrb[0].mxu0
      %v2260 = vadd.f32 %v2156, %v2259
      %v2261 = vpop.f32.mrb[0].mxu0
      %2262 = vdwg.mxu0
      %v2263 = vadd.f32 %v2257, %v2208
      %v2264 = vadd.f32 %v2260, %v2211
      %s2265 = scalar_lea.vmem %s4, 48
      %v2266 = vld [vmem:[%s2265] sm:$0xff]
      %v2267 = vld [vmem:[%s2265 + $0x8] sm:$0xff]
      %2269 = vset.pattern.permute.xlu0 0
      %2270 = vperm.xlu0 %2269, %v2266
      %v2271 = vpop.permute.xlu0 %2270
      %2274 = vset.pattern.permute.xlu0 0
      %2275 = vperm.xlu0 %2274, %v2267
      %v2276 = vpop.permute.xlu0 %2275
      %v2278 = vadd.f32 %v2263, %v2271
      %v2279 = vadd.f32 %v2264, %v2276
      %s2280 = scalar_lea.vmem %s5, 48
      %v2281 = vld [vmem:[%s2280] sm:$0xf]
      %v2282 = vld [vmem:[%s2280 + $0x4] sm:$0xf]
      %v2283 = vld [vmem:[%s2280 + $0x8] sm:$0xf]
      %v2284 = vld [vmem:[%s2280 + $0xc] sm:$0xf]
      %vm2285 = vcmp.gt.f32.partialorder %v2278, 0.0
      %vm2286 = vcmp.gt.f32.partialorder %v2279, 0.0
      %v2287 = vmin.f32 %v2278, 0.0
      %v2288 = vmin.f32 %v2279, 0.0
      %v2289 = vmul.f32 %v2287, 1.442695
      %v2290 = vpow.pop %v2289
      %v2291 = vmul.f32 %v2288, 1.442695
      %v2292 = vpow.pop %v2291
      %v2293 = vsub.f32 %v2290, 1.0
      %v2294 = vsub.f32 %v2292, 1.0
      %v2295 = vsel %vm2285, %v2278, %v2293
      %v2296 = vsel %vm2286, %v2279, %v2294
      %v2297 = vpack.c.bf16 %v2296, %v2295
      %s2298 = scalar_lea.vmem %s6, 96
      %v2299 = vld [vmem:[%s2298] sm:$0xff]
      %v2300 = vld [vmem:[%s2298 + $0x8] sm:$0xff]
      %v2301 = vld [vmem:[%s2298 + $0x10] sm:$0xff]
      %v2302 = vld [vmem:[%s2298 + $0x18] sm:$0xff]
      %2304 = vset.pattern.permute.xlu0 0
      %2305 = vperm.xlu0 %2304, %v2299
      %v2306 = vpop.permute.xlu0 %2305
      %2309 = vset.pattern.permute.xlu0 0
      %2310 = vperm.xlu0 %2309, %v2300
      %v2311 = vpop.permute.xlu0 %2310
      %2314 = vset.pattern.permute.xlu0 0
      %2315 = vperm.xlu0 %2314, %v2301
      %v2316 = vpop.permute.xlu0 %2315
      %2319 = vset.pattern.permute.xlu0 0
      %2320 = vperm.xlu0 %2319, %v2302
      %v2321 = vpop.permute.xlu0 %2320
      %v2327 = vunpack.c.l.b16 %v2281
      %v2328 = vunpack.c.l.b16 %v2282
      %v2329 = vunpack.c.l.b16 %v2283
      %v2330 = vunpack.c.l.b16 %v2284
      %v2331 = vpack.c.b16 %v2328, %v2327
      %v2332 = vpack.c.b16 %v2330, %v2329
      %v2334 = vsel %vm520, %v2331, 0
      %v2337 = vsel %vm520, %v2332, 0
      %2339 = vmatprep.subr.bf16.mxu0 0
      %2340 = vmatpush1.bf16.msra.mxu0 %v2297
      %2341 = vmatprep.subr.bf16.mxu0 0
      %2342 = vmatpush1.bf16.msra.mxu0 0
      %2343 = vmatprep.subr.bf16.mxu0 0
      %2344 = vmatpush1.bf16.msra.mxu0 0
      %2345 = vmatprep.subr.bf16.mxu0 0
      %2346 = vmatpush1.bf16.msra.mxu0 0
      %2347 = vmatprep.subr.bf16.mxu0 0
      %2348 = vmatpush1.bf16.msra.mxu0 0
      %2349 = vmatprep.subr.bf16.mxu0 0
      %2350 = vmatpush1.bf16.msra.mxu0 0
      %2351 = vmatprep.subr.bf16.mxu0 0
      %2352 = vmatpush1.bf16.msra.mxu0 0
      %2353 = vmatprep.subr.bf16.mxu0 0
      %2354 = vmatpush1.bf16.msra.mxu0 0
      %2355 = vmatprep.subr.bf16.mxu0 0
      %2356 = vmatpush1.bf16.msra.mxu0 0
      %2357 = vmatprep.subr.bf16.mxu0 0
      %2358 = vmatpush1.bf16.msra.mxu0 0
      %2359 = vmatprep.subr.bf16.mxu0 0
      %2360 = vmatpush1.bf16.msra.mxu0 0
      %2361 = vmatprep.subr.bf16.mxu0 0
      %2362 = vmatpush1.bf16.msra.mxu0 0
      %2363 = vmatprep.subr.bf16.mxu0 0
      %2364 = vmatpush1.bf16.msra.mxu0 0
      %2365 = vmatprep.subr.bf16.mxu0 0
      %2366 = vmatpush1.bf16.msra.mxu0 0
      %2367 = vmatprep.subr.bf16.mxu0 0
      %2368 = vmatpush1.bf16.msra.mxu0 0
      %2369 = vmatprep.subr.bf16.mxu0 0
      %2370 = vmatpush1.bf16.msra.mxu0 0
      %2371 = vmatprep.mubr.bf16.mxu0 0
      %2372 = vmatmul.mubr.bf16.gmra.mrb[0].mxu0 %v2334
      %v2373 = vpop.f32.mrb[0].mxu0
      %v2374 = vadd.f32 %v2306, %v2373
      %v2375 = vpop.f32.mrb[0].mxu0
      %v2376 = vpop.f32.mrb[0].mxu0
      %v2377 = vadd.f32 %v2311, %v2376
      %v2378 = vpop.f32.mrb[0].mxu0
      %2379 = vmatprep.mubr.bf16.mxu0 0
      %2380 = vmatmul.mubr.bf16.gmra.mrb[0].mxu0 %v2337
      %v2381 = vpop.f32.mrb[0].mxu0
      %v2382 = vadd.f32 %v2316, %v2381
      %v2383 = vpop.f32.mrb[0].mxu0
      %v2384 = vpop.f32.mrb[0].mxu0
      %v2385 = vadd.f32 %v2321, %v2384
      %v2386 = vpop.f32.mrb[0].mxu0
      %2387 = vdwg.mxu0
      %v2388 = vsel %vm520, %v2374, 0.0
      %2389 = vadd.xlane.f32.xlu0 %v2388
      %v2390 = vpop.xlane.xlu0 %2389
      %v2391 = vsel %vm520, %v2377, 0.0
      %2392 = vadd.xlane.f32.xlu0 %v2391
      %v2393 = vpop.xlane.xlu0 %2392
      %v2394 = vsel %vm520, %v2382, 0.0
      %2395 = vadd.xlane.f32.xlu0 %v2394
      %v2396 = vpop.xlane.xlu0 %2395
      %v2397 = vsel %vm520, %v2385, 0.0
      %2398 = vadd.xlane.f32.xlu0 %v2397
      %v2399 = vpop.xlane.xlu0 %2398
      %v2400 = vmul.f32 %v2390, %v806
      %v2401 = vmul.f32 %v2393, %v806
      %v2402 = vmul.f32 %v2396, %v806
      %v2403 = vmul.f32 %v2399, %v806
      %s2404 = scalar_lea.vmem %s7, 96
      %v2405 = vld [vmem:[%s2404] sm:$0xff]
      %v2406 = vld [vmem:[%s2404 + $0x8] sm:$0xff]
      %v2407 = vld [vmem:[%s2404 + $0x10] sm:$0xff]
      %v2408 = vld [vmem:[%s2404 + $0x18] sm:$0xff]
      %v2409 = vmul.f32 %v2405, %v2400
      %v2410 = vmul.f32 %v2406, %v2401
      %v2411 = vmul.f32 %v2407, %v2402
      %v2412 = vmul.f32 %v2408, %v2403
      %v2413 = vsel %vm819, %v2409, 0.0
      %v2414 = vsel %vm819, %v2410, 0.0
      %v2415 = vadd.f32 %v2413, %v2414
      %v2416 = vsel %vm819, %v2411, 0.0
      %v2417 = vadd.f32 %v2415, %v2416
      %v2418 = vsel %vm819, %v2412, 0.0
      %v2419 = vadd.f32 %v2417, %v2418
      %v2420 = vrot.slane %v2419, 4
      %v2421 = vadd.f32 %v2419, %v2420
      %v2422 = vrot.slane %v2421, 2
      %v2423 = vadd.f32 %v2421, %v2422
      %v2424 = vrot.slane %v2423, 1
      %v2425 = vadd.f32 %v2423, %v2424
      %s2426 = scalar_lea.vmem %s8, 3
      %v2427 = vld [vmem:[%s2426] sm:$0x1]
      %v2428 = vadd.f32 %v2425, %v2427
      %v2429 = vmax.f32 %v2428, 0.0
      %s2430 = scalar_lea.vmem %s9, 96
      %v2431 = vld [vmem:[%s2430] sm:$0xff]
      %v2432 = vld [vmem:[%s2430 + $0x8] sm:$0xff]
      %v2433 = vld [vmem:[%s2430 + $0x10] sm:$0xff]
      %v2434 = vld [vmem:[%s2430 + $0x18] sm:$0xff]
      %v2435 = vlaneseq
      %v2436 = vshrl.u32 %v2435, 7
      %v2437 = vsub.s32 0, %v2436
      %v2438 = vrot.slane %v2429, %v2437
      %v2439 = vmul.f32 %v2431, %v2438
      %v2440 = vmul.f32 %v2432, %v2438
      %v2441 = vmul.f32 %v2433, %v2438
      %v2442 = vmul.f32 %v2434, %v2438
      %v2443 = vsel %vm819, %v2439, 0.0
      %2444 = vadd.xlane.f32.xlu0 %v2443
      %v2445 = vpop.xlane.xlu0 %2444
      %v2446 = vsel %vm819, %v2440, 0.0
      %2447 = vadd.xlane.f32.xlu0 %v2446
      %v2448 = vpop.xlane.xlu0 %2447
      %v2449 = vsel %vm819, %v2441, 0.0
      %2450 = vadd.xlane.f32.xlu0 %v2449
      %v2451 = vpop.xlane.xlu0 %2450
      %v2452 = vsel %vm819, %v2442, 0.0
      %2453 = vadd.xlane.f32.xlu0 %v2452
      %v2454 = vpop.xlane.xlu0 %2453
      %s2455 = scalar_lea.vmem %s10, 96
      %v2456 = vld [vmem:[%s2455] sm:$0xff]
      %v2457 = vld [vmem:[%s2455 + $0x8] sm:$0xff]
      %v2458 = vld [vmem:[%s2455 + $0x10] sm:$0xff]
      %v2459 = vld [vmem:[%s2455 + $0x18] sm:$0xff]
      %v2460 = vadd.f32 %v2445, %v2456
      %v2461 = vadd.f32 %v2448, %v2457
      %v2462 = vadd.f32 %v2451, %v2458
      %v2463 = vadd.f32 %v2454, %v2459
      %v2464 = vmax.f32 %v2460, 0.0
      %v2465 = vmax.f32 %v2461, 0.0
      %v2466 = vmax.f32 %v2462, 0.0
      %v2467 = vmax.f32 %v2463, 0.0
      %v2468 = vxor.u32 %v2464, 2147483648
      %v2469 = vxor.u32 %v2465, 2147483648
      %v2470 = vxor.u32 %v2466, 2147483648
      %v2471 = vxor.u32 %v2467, 2147483648
      %v2472 = vmul.f32 %v2468, 1.442695
      %v2473 = vpow.pop %v2472
      %v2474 = vmul.f32 %v2469, 1.442695
      %v2475 = vpow.pop %v2474
      %v2476 = vmul.f32 %v2470, 1.442695
      %v2477 = vpow.pop %v2476
      %v2478 = vmul.f32 %v2471, 1.442695
      %v2479 = vpow.pop %v2478
      %v2480 = vadd.f32 %v2473, 1.0
      %v2481 = vadd.f32 %v2475, 1.0
      %v2482 = vadd.f32 %v2477, 1.0
      %v2483 = vadd.f32 %v2479, 1.0
      %v2484 = vrcp.pop %v2480
      %v2485 = vmul.f32 1.0, %v2484
      %v2486 = vrcp.pop %v2481
      %v2487 = vmul.f32 1.0, %v2486
      %v2488 = vrcp.pop %v2482
      %v2489 = vmul.f32 1.0, %v2488
      %v2490 = vrcp.pop %v2483
      %v2491 = vmul.f32 1.0, %v2490
      %2493 = vset.pattern.permute.xlu0 0
      %2494 = vperm.xlu0 %2493, %v2485
      %v2495 = vpop.permute.xlu0 %2494
      %2498 = vset.pattern.permute.xlu0 0
      %2499 = vperm.xlu0 %2498, %v2487
      %v2500 = vpop.permute.xlu0 %2499
      %2503 = vset.pattern.permute.xlu0 0
      %2504 = vperm.xlu0 %2503, %v2489
      %v2505 = vpop.permute.xlu0 %2504
      %2508 = vset.pattern.permute.xlu0 0
      %2509 = vperm.xlu0 %2508, %v2491
      %v2510 = vpop.permute.xlu0 %2509
      %v2512 = vmul.f32 %v2374, %v2495
      %v2513 = vmul.f32 %v2377, %v2500
      %v2514 = vmul.f32 %v2382, %v2505
      %v2515 = vmul.f32 %v2385, %v2510
      %v2516 = vadd.f32 %v2512, %v1986
      %v2517 = vadd.f32 %v2513, %v1987
      %v2518 = vadd.f32 %v2514, %v1988
      %v2519 = vadd.f32 %v2515, %v1989
      %2520 = vst.msk [vmem:[%s386] sm:$0xff] %vm520, %v2516
      %2521 = vst.msk [vmem:[%s386 + $0x8] sm:$0xff] %vm520, %v2517
      %2522 = vst.msk [vmem:[%s386 + $0x10] sm:$0xff] %vm520, %v2518
      %2523 = vst.msk [vmem:[%s386 + $0x18] sm:$0xff] %vm520, %v2519
      %p2524 = scmp.lt.s32.totalorder %s22, 1
      %s2525 = scalar_select %p2524, %s22, 1
      %s2526 = smul.addr %s2525, 4
      %s2527 = smul.addr %s2526, 8
      %s2528 = scalar_lea.vmem %s11, %s2527
      // Predicated region
      $region65: #{resnet1d_forward.1} parent=63 // pred_check
        %p2529 = pneg %p276
      $region66: #{resnet1d_forward.1} parent=63 // pred_check_branch
        %2531 = sbr.rel (%p2529) target = $region68
      $region67: #{resnet1d_forward.1} parent=63 // pred_region
        _
      $region68: #{resnet1d_forward.1} parent=63 // pred_fallthru
        _
    $region64: #{resnet1d_forward.1} parent=5 // pred_fallthru
      _
    %p2532 = scmp.le.s32.totalorder 2, %s17
    // Predicated region
    $region69: #{resnet1d_forward.1} parent=5 // pred_check
      %p2533 = pneg %p2532
    $region70: #{resnet1d_forward.1} parent=5 // pred_check_branch
      %2535 = sbr.rel (%p2533) target = $region72
    $region71: #{resnet1d_forward.1} parent=5 // pred_region
      %s2536 = ssub.s32 %s17, 2
      // Predicated region
      $region73: #{resnet1d_forward.1} parent=71 // pred_check
        %p2537 = pneg %p282
      $region74: #{resnet1d_forward.1} parent=71 // pred_check_branch
        %2539 = sbr.rel (%p2537) target = $region76
      $region75: #{resnet1d_forward.1} parent=71 // pred_region
        %p2540 = scmp.lt.s32.totalorder %s23, 1
        %s2541 = scalar_select %p2540, %s23, 1
        %s2542 = smul.addr %s2541, 4
        %s2543 = smul.addr %s2542, 8
        %s2544 = scalar_lea.vmem %s11, %s2543
      $region76: #{resnet1d_forward.1} parent=71 // pred_fallthru
        _
    $region72: #{resnet1d_forward.1} parent=5 // pred_fallthru
      _
  $region6: #{resnet1d_forward.1} parent=0 // loop_footer
    %s21 = sadd.s32 1, %s17
  $region7: #{resnet1d_forward.1} parent=0 // loop_footer_branch
    %16 = sbr.rel target = $region3
  $region8: #{resnet1d_forward.1} parent=0 // loop_exit
    _

</llo_original>
